<compile_context>
chip_gen: v5e
topology: v5e:2x2
jax: 0.10.0
libtpu: 0.0.40
codegen_flags: <defaults>
</compile_context>

<pallas_src>
import functools

import jax
import jax.numpy as jnp
from jax.experimental import pallas as pl
from jax.experimental.pallas import tpu as pltpu

FEAT = 1024          # flattened input / encoder feature width (Linear(1024, ...))
TILE_B_MAX = 512     # max batch tile (multiple of 8 sublanes; fills 256-wide MXU M)
CLASS_PAD = 128      # pad num_classes up to a lane-dense multiple of 128


def _round_up(x, m):
    return (x + m - 1) // m * m


def _pick_tile_b(batch):
    """Choose the batch tile: big enough to amortize grid-step overhead, small
    enough to give >= 2 grid tiles (dual-TC v7x) whenever the batch allows."""
    if batch <= 8:
        return 8
    if batch <= 2 * TILE_B_MAX:
        return min(TILE_B_MAX, _round_up(pl.cdiv(batch, 2), 8))
    return TILE_B_MAX


def _ds_kernel(x_ref, w_enc_ref, b_enc_ref, w_last_ref, b_last_ref, o_ref):
    # x_ref:      (TILE_B, 1024)  f32   flattened image tile (cast to bf16 in-kernel)
    # w_enc_ref:  (1024, 1024)    bf16  encoder weight, (in, out) layout, VMEM-resident
    # b_enc_ref:  (1, 1024)       f32
    # w_last_ref: (1024, C_pad)   bf16  classifier weight, (in, out) layout
    # b_last_ref: (1, C_pad)      f32
    # o_ref:      (TILE_B, C_pad) f32   logits tile
    x = x_ref[...].astype(jnp.bfloat16)                    # in-kernel cast (VPU filler)
    h = jnp.dot(x, w_enc_ref[...], preferred_element_type=jnp.float32)
    h = jnp.maximum(h + b_enc_ref[...], 0.0)               # encoder backbone + ReLU
    # projection head == Identity -> nothing to do
    h = h.astype(w_last_ref.dtype)                         # bf16 MXU path for 2nd matmul
    logits = jnp.dot(h, w_last_ref[...], preferred_element_type=jnp.float32)
    o_ref[...] = (logits + b_last_ref[...]).astype(o_ref.dtype)


def prepare_ds_params(w_enc, b_enc, w_last, b_last):
    """One-time parameter prep (NOT per forward call).

    Takes PyTorch-convention weights (out, in) and returns (in, out)-layout,
    bf16, lane-padded parameters ready for the kernel.
    """
    num_classes = w_last.shape[0]
    c_pad = _round_up(max(num_classes, 1), CLASS_PAD)

    w_enc_t = jnp.asarray(w_enc, jnp.float32).T.astype(jnp.bfloat16)      # (1024, 1024)
    b_enc_2d = jnp.asarray(b_enc, jnp.float32).reshape(1, FEAT)            # (1, 1024)

    w_last_t = jnp.asarray(w_last, jnp.float32).T                          # (1024, C)
    w_last_t = jnp.pad(w_last_t, ((0, 0), (0, c_pad - num_classes)))
    w_last_t = w_last_t.astype(jnp.bfloat16)                               # (1024, C_pad)

    b_last_2d = jnp.asarray(b_last, jnp.float32).reshape(1, num_classes)
    b_last_2d = jnp.pad(b_last_2d, ((0, 0), (0, c_pad - num_classes)))     # (1, C_pad)

    return {
        "w_enc": w_enc_t,
        "b_enc": b_enc_2d,
        "w_last": w_last_t,
        "b_last": b_last_2d,
        "num_classes": num_classes,
        "c_pad": c_pad,
    }


@functools.partial(jax.jit, static_argnames=("num_classes", "c_pad"))
def _ds_forward_padded(x_nchw, w_enc, b_enc, w_last, b_last, *, num_classes, c_pad):
    B = x_nchw.shape[0]
    feat = x_nchw.shape[1] * x_nchw.shape[2] * x_nchw.shape[3]
    assert feat == FEAT, "flattened input must match Linear(1024, ...) head"

    # Flatten exactly like torch.flatten(x, 1). Keep f32 (bf16 cast happens
    # inside the kernel); pad only the batch rows up to a tile multiple.
    tile_b = _pick_tile_b(B)
    b_pad = _round_up(max(B, 1), tile_b)
    n_tiles = b_pad // tile_b

    x_flat = x_nchw.reshape(B, FEAT)
    if b_pad != B:
        x_flat = jnp.pad(x_flat, ((0, b_pad - B), (0, 0)))

    cost = pl.CostEstimate(
        flops=2 * b_pad * FEAT * (FEAT + c_pad),
        transcendentals=0,
        bytes_accessed=(
            b_pad * FEAT * 4               # x (f32, cast in-kernel)
            + FEAT * FEAT * 2              # encoder weight (bf16)
            + FEAT * 4                     # encoder bias (f32)
            + FEAT * c_pad * 2             # classifier weight (bf16)
            + c_pad * 4                    # classifier bias (f32)
            + b_pad * c_pad * 4            # logits out (f32)
        ),
    )

    logits_padded = pl.pallas_call(
        _ds_kernel,
        out_shape=jax.ShapeDtypeStruct((b_pad, c_pad), jnp.float32),
        grid=(n_tiles,),
        in_specs=[
            # x: batch-tiled, auto-pipelined (double-buffered by default).
            pl.BlockSpec((tile_b, FEAT), lambda i: (i, 0)),
            # Resident parameters: constant index_map -> fetched once; single-
            # buffered (no wasted second VMEM copy).
            pl.BlockSpec((FEAT, FEAT), lambda i: (0, 0),
                         pipeline_mode=pl.Buffered(1)),
            pl.BlockSpec((1, FEAT), lambda i: (0, 0),
                         pipeline_mode=pl.Buffered(1)),
            pl.BlockSpec((FEAT, c_pad), lambda i: (0, 0),
                         pipeline_mode=pl.Buffered(1)),
            pl.BlockSpec((1, c_pad), lambda i: (0, 0),
                         pipeline_mode=pl.Buffered(1)),
        ],
        out_specs=pl.BlockSpec((tile_b, c_pad), lambda i: (i, 0)),
        compiler_params=pltpu.CompilerParams(
            dimension_semantics=("parallel",),   # shard batch tiles across TCs (v7x)
            vmem_limit_bytes=32 * 1024 * 1024,   # headroom for TILE_B=512 on v5e too
        ),
        cost_estimate=cost,
    )(x_flat, w_enc, b_enc, w_last, b_last)

    # Slice off batch padding and the padded logit columns.
    return logits_padded[:B, :num_classes]


def ds_model_forward(x_nchw, params):
    """x_nchw: (B, C, H, W). params: output of prepare_ds_params.
    Returns (B, num_classes) f32 logits."""
    return _ds_forward_padded(
        x_nchw,
        params["w_enc"], params["b_enc"], params["w_last"], params["b_last"],
        num_classes=params["num_classes"], c_pad=params["c_pad"],
    )


if __name__ == "__main__":
    key = jax.random.PRNGKey(0)
    k_x, k_we, k_be, k_wl, k_bl = jax.random.split(key, 5)

    B, C, H, W = 2, 4, 16, 16            # C*H*W = 1024 -> matches Linear(1024, .)
    num_classes = 10
    feat = C * H * W

    x = jax.random.normal(k_x, (B, C, H, W), dtype=jnp.float32)

    # Deterministic parameter init (PyTorch Linear convention: W is (out, in)).
    w_enc = jax.random.normal(k_we, (feat, feat), dtype=jnp.float32) * 0.02
    b_enc = jax.random.normal(k_be, (feat,), dtype=jnp.float32) * 0.02
    w_last = jax.random.normal(k_wl, (num_classes, feat), dtype=jnp.float32) * 0.02
    b_last = jax.random.normal(k_bl, (num_classes,), dtype=jnp.float32) * 0.02

    params = prepare_ds_params(w_enc, b_enc, w_last, b_last)   # one-time prep

    out = ds_model_forward(x, params)
    out = jax.block_until_ready(out)
    assert out.shape == (B, num_classes)

    # Pure-JAX reference with the same bf16 weight/activation quantization
    # (f32 accumulate), matching the kernel's numerics.
    xb = x.reshape(B, feat).astype(jnp.bfloat16)
    h_ref = jnp.maximum(
        jnp.dot(xb, w_enc.T.astype(jnp.bfloat16), preferred_element_type=jnp.float32)
        + b_enc, 0.0)
    ref = jnp.dot(h_ref.astype(jnp.bfloat16), w_last.T.astype(jnp.bfloat16),
                  preferred_element_type=jnp.float32) + b_last
    assert jnp.allclose(out, ref, atol=1e-2, rtol=1e-2)

    # Sanity vs. the full-f32 PyTorch-equivalent math (looser, bf16 quantization).
    h_f32 = jnp.maximum(x.reshape(B, feat) @ w_enc.T + b_enc, 0.0)
    ref_f32 = h_f32 @ w_last.T + b_last
    assert jnp.allclose(out, ref_f32, atol=5e-2, rtol=5e-2)

    print("KERNEL_OK")
</pallas_src>

<mosaic_0001>
module attributes {stable_mosaic.version = 11 : i64} {
  func.func @_ds_kernel(%arg0: i32, %arg1: memref<8x1024xf32, #tpu.memory_space<vmem>>, %arg2: memref<1024x1024xbf16, #tpu.memory_space<vmem>>, %arg3: memref<1x1024xf32, #tpu.memory_space<vmem>>, %arg4: memref<1024x128xbf16, #tpu.memory_space<vmem>>, %arg5: memref<1x128xf32, #tpu.memory_space<vmem>>, %arg6: memref<8x128xf32, #tpu.memory_space<vmem>>) attributes {dimension_semantics = [#tpu.dimension_semantics<parallel>], iteration_bounds = array<i64: 1>, scalar_prefetch = 0 : i64, scratch_operands = 0 : i64, tpu.core_type = #tpu.core_type<tc>, window_params = [{transform_indices = @transform_0, window_bounds = array<i64: 8, 1024>}, {pipeline_mode = #tpu.pipeline_mode<synchronous>, transform_indices = @transform_1, window_bounds = array<i64: 1024, 1024>}, {pipeline_mode = #tpu.pipeline_mode<synchronous>, transform_indices = @transform_2, window_bounds = array<i64: 1, 1024>}, {pipeline_mode = #tpu.pipeline_mode<synchronous>, transform_indices = @transform_3, window_bounds = array<i64: 1024, 128>}, {pipeline_mode = #tpu.pipeline_mode<synchronous>, transform_indices = @transform_4, window_bounds = array<i64: 1, 128>}, {transform_indices = @transform_5, window_bounds = array<i64: 8, 128>}]} {
    %c0 = arith.constant 0 : index
    %c0_0 = arith.constant 0 : index
    %0 = vector.load %arg1[%c0, %c0_0] : memref<8x1024xf32, #tpu.memory_space<vmem>>, vector<8x1024xf32>
    %1 = arith.truncf %0 : vector<8x1024xf32> to vector<8x1024xbf16>
    %c0_1 = arith.constant 0 : index
    %c0_2 = arith.constant 0 : index
    %2 = vector.load %arg2[%c0_1, %c0_2] : memref<1024x1024xbf16, #tpu.memory_space<vmem>>, vector<1024x1024xbf16>
    %cst = arith.constant dense<0.000000e+00> : vector<8x1024xf32>
    %3 = tpu.matmul %1, %2, %cst {dimension_numbers = #tpu.dot_dimension_numbers<[1], [0], [0], [1], [0, 0, 1, 1], [], []>} : vector<8x1024xbf16>, vector<1024x1024xbf16>, vector<8x1024xf32> -> vector<8x1024xf32>
    %c0_3 = arith.constant 0 : index
    %c0_4 = arith.constant 0 : index
    %4 = vector.load %arg3[%c0_3, %c0_4] : memref<1x1024xf32, #tpu.memory_space<vmem>>, vector<1x1024xf32>
    %5 = vector.broadcast %4 : vector<1x1024xf32> to vector<8x1024xf32>
    %6 = arith.addf %3, %5 : vector<8x1024xf32>
    %cst_5 = arith.constant 0.000000e+00 : f32
    %7 = vector.broadcast %cst_5 : f32 to vector<8x1024xf32>
    %8 = arith.maximumf %6, %7 : vector<8x1024xf32>
    %9 = arith.truncf %8 : vector<8x1024xf32> to vector<8x1024xbf16>
    %c0_6 = arith.constant 0 : index
    %c0_7 = arith.constant 0 : index
    %10 = vector.load %arg4[%c0_6, %c0_7] : memref<1024x128xbf16, #tpu.memory_space<vmem>>, vector<1024x128xbf16>
    %cst_8 = arith.constant dense<0.000000e+00> : vector<8x128xf32>
    %11 = tpu.matmul %9, %10, %cst_8 {dimension_numbers = #tpu.dot_dimension_numbers<[1], [0], [0], [1], [0, 0, 1, 1], [], []>} : vector<8x1024xbf16>, vector<1024x128xbf16>, vector<8x128xf32> -> vector<8x128xf32>
    %c0_9 = arith.constant 0 : index
    %c0_10 = arith.constant 0 : index
    %12 = vector.load %arg5[%c0_9, %c0_10] : memref<1x128xf32, #tpu.memory_space<vmem>>, vector<1x128xf32>
    %13 = vector.broadcast %12 : vector<1x128xf32> to vector<8x128xf32>
    %14 = arith.addf %11, %13 : vector<8x128xf32>
    %c0_11 = arith.constant 0 : index
    %c0_12 = arith.constant 0 : index
    %15 = vector.load %arg6[%c0_11, %c0_12] : memref<8x128xf32, #tpu.memory_space<vmem>>, vector<8x128xf32>
    tpu.vector_store %arg6[%c0_11, %c0_12], %14 {strides = array<i32>} : memref<8x128xf32, #tpu.memory_space<vmem>>, vector<8x128xf32>,
    return
  }
  func.func @transform_0(%arg0: i32) -> (i32, i32) {
    %c0_i32 = arith.constant 0 : i32
    %c0_i32_0 = arith.constant 0 : i32
    return %arg0, %c0_i32 : i32, i32
  }
  func.func @transform_1(%arg0: i32) -> (i32, i32) {
    %c0_i32 = arith.constant 0 : i32
    %c0_i32_0 = arith.constant 0 : i32
    %c0_i32_1 = arith.constant 0 : i32
    return %c0_i32, %c0_i32_0 : i32, i32
  }
  func.func @transform_2(%arg0: i32) -> (i32, i32) {
    %c0_i32 = arith.constant 0 : i32
    %c0_i32_0 = arith.constant 0 : i32
    %c0_i32_1 = arith.constant 0 : i32
    return %c0_i32, %c0_i32_0 : i32, i32
  }
  func.func @transform_3(%arg0: i32) -> (i32, i32) {
    %c0_i32 = arith.constant 0 : i32
    %c0_i32_0 = arith.constant 0 : i32
    %c0_i32_1 = arith.constant 0 : i32
    return %c0_i32, %c0_i32_0 : i32, i32
  }
  func.func @transform_4(%arg0: i32) -> (i32, i32) {
    %c0_i32 = arith.constant 0 : i32
    %c0_i32_0 = arith.constant 0 : i32
    %c0_i32_1 = arith.constant 0 : i32
    return %c0_i32, %c0_i32_0 : i32, i32
  }
  func.func @transform_5(%arg0: i32) -> (i32, i32) {
    %c0_i32 = arith.constant 0 : i32
    %c0_i32_0 = arith.constant 0 : i32
    return %arg0, %c0_i32 : i32, i32
  }
}

</mosaic_0001>

<llo_original>
// kernel: _ds_forward_padded.1
$region0: #{_ds_forward_padded.1}
  #allocation0 [shape = 'u32[]', space=smem, size = 0x4, offset = 0x4, fixed_abs, tag = 'smem constant byte address 0x4 - core index']
  #allocation1 [shape = 'u32[72,128]{1,0:T(1,128)}', space=vmem, size = 0x9000, scoped, tag = 'internal scratch']
  %s0 = inlined_call_operand.vmem [shape: f32[8,1024], index: 0, kind: input, shape index: {}]
  %s1 = inlined_call_operand.hbm [shape: bf16[1024,1024], index: 1, kind: input, shape index: {}]
  %s2 = inlined_call_operand.hbm [shape: f32[1,1024], index: 2, kind: input, shape index: {}]
  %s3 = inlined_call_operand.hbm [shape: bf16[1024,128], index: 3, kind: input, shape index: {}]
  %s4 = inlined_call_operand.hbm [shape: f32[1,128], index: 4, kind: input, shape index: {}]
  %s5 = inlined_call_operand.vmem [shape: f32[8,128], index: 5, kind: output, shape index: {}]
  %s6 = sld [smem:[#allocation0]]
  $region46: #{_ds_forward_padded.1} parent=0
    _
  %s8 = ssub.s32 1, %s6
  %s9 = scalar_select 0, %s8, %s6
  $region1: #{_ds_forward_padded.1} parent=0
    #allocation2 [shape = 'u8[2097152]{0}', space=vmem, size = 0x200000, scoped, tag = 'input window, operand 1, single buffered']
    #allocation3 [shape = 's32[1]{0}', space=sflag, size = 0x4, scoped, tag = 'scoped memory for _ds_forward_padded.1']
    #allocation4 [shape = 'u8[4096]{0}', space=vmem, size = 0x1000, scoped, tag = 'input window, operand 2, single buffered']
    #allocation5 [shape = 's32[1]{0}', space=sflag, size = 0x4, scoped, tag = 'scoped memory for _ds_forward_padded.1']
    #allocation6 [shape = 'u8[262144]{0}', space=vmem, size = 0x40000, scoped, tag = 'input window, operand 3, single buffered']
    #allocation7 [shape = 'u8[512]{0}', space=vmem, size = 0x400, scoped, tag = 'input window, operand 4, single buffered']
    #allocation8 [shape = 's32[1]{0}', space=sflag, size = 0x4, scoped, tag = 'scoped memory for _ds_forward_padded.1']
    %10 = vsyncpa [#allocation3], 0
    %11 = vsyncpa [#allocation5], 0
    %12 = vsyncpa [#allocation8], 0
    // Predicated region
    $region2: #{_ds_forward_padded.1} parent=1 // pred_check
      _
    $region3: #{_ds_forward_padded.1} parent=1 // pred_check_branch
      %14 = sbr.rel (0) target = $region5
    $region4: #{_ds_forward_padded.1} parent=1 // pred_region
      _
    $region5: #{_ds_forward_padded.1} parent=1 // pred_fallthru
      _
    // Predicated region
    $region6: #{_ds_forward_padded.1} parent=1 // pred_check
      _
    $region7: #{_ds_forward_padded.1} parent=1 // pred_check_branch
      %16 = sbr.rel (0) target = $region9
    $region8: #{_ds_forward_padded.1} parent=1 // pred_region
      %18 = vsyncadd [#allocation3], 0
      %s19 = sshll.u32 %s1, 4
      %s20 = int_to_ptr.hbm [resolvable:$true] %s19
      %s21 = sshll.u32 [#allocation2], 4
      %s22 = int_to_ptr.vmem [resolvable:$true] %s21
      %27 = dma.hbm_to_vmem [thread:$0]  %s20, 65536, %s22, [#allocation3], 512, 512, 32
    $region9: #{_ds_forward_padded.1} parent=1 // pred_fallthru
      _
    // Predicated region
    $region10: #{_ds_forward_padded.1} parent=1 // pred_check
      _
    $region11: #{_ds_forward_padded.1} parent=1 // pred_check_branch
      %29 = sbr.rel (0) target = $region13
    $region12: #{_ds_forward_padded.1} parent=1 // pred_region
      %31 = vsyncadd [#allocation5], 0
      %s33 = sshll.u32 %s2, 4
      %s34 = int_to_ptr.hbm [resolvable:$true] %s33
      %s35 = sshll.u32 [#allocation4], 4
      %s36 = int_to_ptr.vmem [resolvable:$true] %s35
      %38 = dma.hbm_to_vmem [thread:$0]  %s34, 128, %s36, [#allocation5]
    $region13: #{_ds_forward_padded.1} parent=1 // pred_fallthru
      _
    // Predicated region
    $region14: #{_ds_forward_padded.1} parent=1 // pred_check
      _
    $region15: #{_ds_forward_padded.1} parent=1 // pred_check_branch
      %40 = sbr.rel (0) target = $region17
    $region16: #{_ds_forward_padded.1} parent=1 // pred_region
      %42 = vsyncadd [#allocation5], 0
      %s43 = sshll.u32 %s3, 4
      %s44 = int_to_ptr.hbm [resolvable:$true] %s43
      %s45 = sshll.u32 [#allocation6], 4
      %s46 = int_to_ptr.vmem [resolvable:$true] %s45
      %51 = dma.hbm_to_vmem [thread:$0]  %s44, 8192, %s46, [#allocation5], 64, 64, 4
    $region17: #{_ds_forward_padded.1} parent=1 // pred_fallthru
      _
    // Predicated region
    $region18: #{_ds_forward_padded.1} parent=1 // pred_check
      _
    $region19: #{_ds_forward_padded.1} parent=1 // pred_check_branch
      %53 = sbr.rel (0) target = $region21
    $region20: #{_ds_forward_padded.1} parent=1 // pred_region
      %55 = vsyncadd [#allocation8], 0
      %s57 = sshll.u32 %s4, 4
      %s58 = int_to_ptr.hbm [resolvable:$true] %s57
      %s59 = sshll.u32 [#allocation7], 4
      %s60 = int_to_ptr.vmem [resolvable:$true] %s59
      %62 = dma.hbm_to_vmem [thread:$0]  %s58, 16, %s60, [#allocation8]
    $region21: #{_ds_forward_padded.1} parent=1 // pred_fallthru
      _
    // Predicated region
    $region22: #{_ds_forward_padded.1} parent=1 // pred_check
      _
    $region23: #{_ds_forward_padded.1} parent=1 // pred_check_branch
      %64 = sbr.rel (0) target = $region25
    $region24: #{_ds_forward_padded.1} parent=1 // pred_region
      %66 = dma.done [#allocation3], 65536
    $region25: #{_ds_forward_padded.1} parent=1 // pred_fallthru
      _
    // Predicated region
    $region26: #{_ds_forward_padded.1} parent=1 // pred_check
      _
    $region27: #{_ds_forward_padded.1} parent=1 // pred_check_branch
      %68 = sbr.rel (0) target = $region29
    $region28: #{_ds_forward_padded.1} parent=1 // pred_region
      %70 = dma.done [#allocation5], 128
    $region29: #{_ds_forward_padded.1} parent=1 // pred_fallthru
      _
    // Predicated region
    $region30: #{_ds_forward_padded.1} parent=1 // pred_check
      _
    $region31: #{_ds_forward_padded.1} parent=1 // pred_check_branch
      %72 = sbr.rel (0) target = $region33
    $region32: #{_ds_forward_padded.1} parent=1 // pred_region
      %74 = dma.done [#allocation5], 8192
    $region33: #{_ds_forward_padded.1} parent=1 // pred_fallthru
      _
    // Predicated region
    $region34: #{_ds_forward_padded.1} parent=1 // pred_check
      _
    $region35: #{_ds_forward_padded.1} parent=1 // pred_check_branch
      %76 = sbr.rel (0) target = $region37
    $region36: #{_ds_forward_padded.1} parent=1 // pred_region
      %78 = dma.done [#allocation8], 16
    $region37: #{_ds_forward_padded.1} parent=1 // pred_fallthru
      _
    %v79 = vld [vmem:[%s0] sm:$0xff]
    %v80 = vld [vmem:[%s0 + $0x8] sm:$0xff]
    %v81 = vld [vmem:[%s0 + $0x10] sm:$0xff]
    %v82 = vld [vmem:[%s0 + $0x18] sm:$0xff]
    %v83 = vld [vmem:[%s0 + $0x20] sm:$0xff]
    %v84 = vld [vmem:[%s0 + $0x28] sm:$0xff]
    %v85 = vld [vmem:[%s0 + $0x30] sm:$0xff]
    %v86 = vld [vmem:[%s0 + $0x38] sm:$0xff]
    %v87 = vpack.c.bf16 %v79, %v79
    %v88 = vpack.c.bf16 %v80, %v80
    %v89 = vpack.c.bf16 %v81, %v81
    %v90 = vpack.c.bf16 %v82, %v82
    %v91 = vpack.c.bf16 %v83, %v83
    %v92 = vpack.c.bf16 %v84, %v84
    %v93 = vpack.c.bf16 %v85, %v85
    %v94 = vpack.c.bf16 %v86, %v86
    %v95 = vld [vmem:[#allocation2] sm:$0xff]
    %v96 = vld [vmem:[#allocation2 + $0x8] sm:$0xff]
    %v97 = vld [vmem:[#allocation2 + $0x10] sm:$0xff]
    %v98 = vld [vmem:[#allocation2 + $0x18] sm:$0xff]
    %v99 = vld [vmem:[#allocation2 + $0x20] sm:$0xff]
    %v100 = vld [vmem:[#allocation2 + $0x28] sm:$0xff]
    %v101 = vld [vmem:[#allocation2 + $0x30] sm:$0xff]
    %v102 = vld [vmem:[#allocation2 + $0x38] sm:$0xff]
    %v103 = vld [vmem:[#allocation2 + $0x40] sm:$0xff]
    %v104 = vld [vmem:[#allocation2 + $0x48] sm:$0xff]
    %v105 = vld [vmem:[#allocation2 + $0x50] sm:$0xff]
    %v106 = vld [vmem:[#allocation2 + $0x58] sm:$0xff]
    %v107 = vld [vmem:[#allocation2 + $0x60] sm:$0xff]
    %v108 = vld [vmem:[#allocation2 + $0x68] sm:$0xff]
    %v109 = vld [vmem:[#allocation2 + $0x70] sm:$0xff]
    %v110 = vld [vmem:[#allocation2 + $0x78] sm:$0xff]
    %v111 = vld [vmem:[#allocation2 + $0x80] sm:$0xff]
    %v112 = vld [vmem:[#allocation2 + $0x88] sm:$0xff]
    %v113 = vld [vmem:[#allocation2 + $0x90] sm:$0xff]
    %v114 = vld [vmem:[#allocation2 + $0x98] sm:$0xff]
    %v115 = vld [vmem:[#allocation2 + $0xa0] sm:$0xff]
    %v116 = vld [vmem:[#allocation2 + $0xa8] sm:$0xff]
    %v117 = vld [vmem:[#allocation2 + $0xb0] sm:$0xff]
    %v118 = vld [vmem:[#allocation2 + $0xb8] sm:$0xff]
    %v119 = vld [vmem:[#allocation2 + $0xc0] sm:$0xff]
    %v120 = vld [vmem:[#allocation2 + $0xc8] sm:$0xff]
    %v121 = vld [vmem:[#allocation2 + $0xd0] sm:$0xff]
    %v122 = vld [vmem:[#allocation2 + $0xd8] sm:$0xff]
    %v123 = vld [vmem:[#allocation2 + $0xe0] sm:$0xff]
    %v124 = vld [vmem:[#allocation2 + $0xe8] sm:$0xff]
    %v125 = vld [vmem:[#allocation2 + $0xf0] sm:$0xff]
    %v126 = vld [vmem:[#allocation2 + $0xf8] sm:$0xff]
    %v127 = vld [vmem:[#allocation2 + $0x100] sm:$0xff]
    %v128 = vld [vmem:[#allocation2 + $0x108] sm:$0xff]
    %v129 = vld [vmem:[#allocation2 + $0x110] sm:$0xff]
    %v130 = vld [vmem:[#allocation2 + $0x118] sm:$0xff]
    %v131 = vld [vmem:[#allocation2 + $0x120] sm:$0xff]
    %v132 = vld [vmem:[#allocation2 + $0x128] sm:$0xff]
    %v133 = vld [vmem:[#allocation2 + $0x130] sm:$0xff]
    %v134 = vld [vmem:[#allocation2 + $0x138] sm:$0xff]
    %v135 = vld [vmem:[#allocation2 + $0x140] sm:$0xff]
    %v136 = vld [vmem:[#allocation2 + $0x148] sm:$0xff]
    %v137 = vld [vmem:[#allocation2 + $0x150] sm:$0xff]
    %v138 = vld [vmem:[#allocation2 + $0x158] sm:$0xff]
    %v139 = vld [vmem:[#allocation2 + $0x160] sm:$0xff]
    %v140 = vld [vmem:[#allocation2 + $0x168] sm:$0xff]
    %v141 = vld [vmem:[#allocation2 + $0x170] sm:$0xff]
    %v142 = vld [vmem:[#allocation2 + $0x178] sm:$0xff]
    %v143 = vld [vmem:[#allocation2 + $0x180] sm:$0xff]
    %v144 = vld [vmem:[#allocation2 + $0x188] sm:$0xff]
    %v145 = vld [vmem:[#allocation2 + $0x190] sm:$0xff]
    %v146 = vld [vmem:[#allocation2 + $0x198] sm:$0xff]
    %v147 = vld [vmem:[#allocation2 + $0x1a0] sm:$0xff]
    %v148 = vld [vmem:[#allocation2 + $0x1a8] sm:$0xff]
    %v149 = vld [vmem:[#allocation2 + $0x1b0] sm:$0xff]
    %v150 = vld [vmem:[#allocation2 + $0x1b8] sm:$0xff]
    %v151 = vld [vmem:[#allocation2 + $0x1c0] sm:$0xff]
    %v152 = vld [vmem:[#allocation2 + $0x1c8] sm:$0xff]
    %v153 = vld [vmem:[#allocation2 + $0x1d0] sm:$0xff]
    %v154 = vld [vmem:[#allocation2 + $0x1d8] sm:$0xff]
    %v155 = vld [vmem:[#allocation2 + $0x1e0] sm:$0xff]
    %v156 = vld [vmem:[#allocation2 + $0x1e8] sm:$0xff]
    %v157 = vld [vmem:[#allocation2 + $0x1f0] sm:$0xff]
    %v158 = vld [vmem:[#allocation2 + $0x1f8] sm:$0xff]
    %v159 = vld [vmem:[#allocation2 + $0x200] sm:$0xff]
    %v160 = vld [vmem:[#allocation2 + $0x208] sm:$0xff]
    %v161 = vld [vmem:[#allocation2 + $0x210] sm:$0xff]
    %v162 = vld [vmem:[#allocation2 + $0x218] sm:$0xff]
    %v163 = vld [vmem:[#allocation2 + $0x220] sm:$0xff]
    %v164 = vld [vmem:[#allocation2 + $0x228] sm:$0xff]
    %v165 = vld [vmem:[#allocation2 + $0x230] sm:$0xff]
    %v166 = vld [vmem:[#allocation2 + $0x238] sm:$0xff]
    %v167 = vld [vmem:[#allocation2 + $0x240] sm:$0xff]
    %v168 = vld [vmem:[#allocation2 + $0x248] sm:$0xff]
    %v169 = vld [vmem:[#allocation2 + $0x250] sm:$0xff]
    %v170 = vld [vmem:[#allocation2 + $0x258] sm:$0xff]
    %v171 = vld [vmem:[#allocation2 + $0x260] sm:$0xff]
    %v172 = vld [vmem:[#allocation2 + $0x268] sm:$0xff]
    %v173 = vld [vmem:[#allocation2 + $0x270] sm:$0xff]
    %v174 = vld [vmem:[#allocation2 + $0x278] sm:$0xff]
    %v175 = vld [vmem:[#allocation2 + $0x280] sm:$0xff]
    %v176 = vld [vmem:[#allocation2 + $0x288] sm:$0xff]
    %v177 = vld [vmem:[#allocation2 + $0x290] sm:$0xff]
    %v178 = vld [vmem:[#allocation2 + $0x298] sm:$0xff]
    %v179 = vld [vmem:[#allocation2 + $0x2a0] sm:$0xff]
    %v180 = vld [vmem:[#allocation2 + $0x2a8] sm:$0xff]
    %v181 = vld [vmem:[#allocation2 + $0x2b0] sm:$0xff]
    %v182 = vld [vmem:[#allocation2 + $0x2b8] sm:$0xff]
    %v183 = vld [vmem:[#allocation2 + $0x2c0] sm:$0xff]
    %v184 = vld [vmem:[#allocation2 + $0x2c8] sm:$0xff]
    %v185 = vld [vmem:[#allocation2 + $0x2d0] sm:$0xff]
    %v186 = vld [vmem:[#allocation2 + $0x2d8] sm:$0xff]
    %v187 = vld [vmem:[#allocation2 + $0x2e0] sm:$0xff]
    %v188 = vld [vmem:[#allocation2 + $0x2e8] sm:$0xff]
    %v189 = vld [vmem:[#allocation2 + $0x2f0] sm:$0xff]
    %v190 = vld [vmem:[#allocation2 + $0x2f8] sm:$0xff]
    %v191 = vld [vmem:[#allocation2 + $0x300] sm:$0xff]
    %v192 = vld [vmem:[#allocation2 + $0x308] sm:$0xff]
    %v193 = vld [vmem:[#allocation2 + $0x310] sm:$0xff]
    %v194 = vld [vmem:[#allocation2 + $0x318] sm:$0xff]
    %v195 = vld [vmem:[#allocation2 + $0x320] sm:$0xff]
    %v196 = vld [vmem:[#allocation2 + $0x328] sm:$0xff]
    %v197 = vld [vmem:[#allocation2 + $0x330] sm:$0xff]
    %v198 = vld [vmem:[#allocation2 + $0x338] sm:$0xff]
    %v199 = vld [vmem:[#allocation2 + $0x340] sm:$0xff]
    %v200 = vld [vmem:[#allocation2 + $0x348] sm:$0xff]
    %v201 = vld [vmem:[#allocation2 + $0x350] sm:$0xff]
    %v202 = vld [vmem:[#allocation2 + $0x358] sm:$0xff]
    %v203 = vld [vmem:[#allocation2 + $0x360] sm:$0xff]
    %v204 = vld [vmem:[#allocation2 + $0x368] sm:$0xff]
    %v205 = vld [vmem:[#allocation2 + $0x370] sm:$0xff]
    %v206 = vld [vmem:[#allocation2 + $0x378] sm:$0xff]
    %v207 = vld [vmem:[#allocation2 + $0x380] sm:$0xff]
    %v208 = vld [vmem:[#allocation2 + $0x388] sm:$0xff]
    %v209 = vld [vmem:[#allocation2 + $0x390] sm:$0xff]
    %v210 = vld [vmem:[#allocation2 + $0x398] sm:$0xff]
    %v211 = vld [vmem:[#allocation2 + $0x3a0] sm:$0xff]
    %v212 = vld [vmem:[#allocation2 + $0x3a8] sm:$0xff]
    %v213 = vld [vmem:[#allocation2 + $0x3b0] sm:$0xff]
    %v214 = vld [vmem:[#allocation2 + $0x3b8] sm:$0xff]
    %v215 = vld [vmem:[#allocation2 + $0x3c0] sm:$0xff]
    %v216 = vld [vmem:[#allocation2 + $0x3c8] sm:$0xff]
    %v217 = vld [vmem:[#allocation2 + $0x3d0] sm:$0xff]
    %v218 = vld [vmem:[#allocation2 + $0x3d8] sm:$0xff]
    %v219 = vld [vmem:[#allocation2 + $0x3e0] sm:$0xff]
    %v220 = vld [vmem:[#allocation2 + $0x3e8] sm:$0xff]
    %v221 = vld [vmem:[#allocation2 + $0x3f0] sm:$0xff]
    %v222 = vld [vmem:[#allocation2 + $0x3f8] sm:$0xff]
    %v223 = vld [vmem:[#allocation2 + $0x400] sm:$0xff]
    %v224 = vld [vmem:[#allocation2 + $0x408] sm:$0xff]
    %v225 = vld [vmem:[#allocation2 + $0x410] sm:$0xff]
    %v226 = vld [vmem:[#allocation2 + $0x418] sm:$0xff]
    %v227 = vld [vmem:[#allocation2 + $0x420] sm:$0xff]
    %v228 = vld [vmem:[#allocation2 + $0x428] sm:$0xff]
    %v229 = vld [vmem:[#allocation2 + $0x430] sm:$0xff]
    %v230 = vld [vmem:[#allocation2 + $0x438] sm:$0xff]
    %v231 = vld [vmem:[#allocation2 + $0x440] sm:$0xff]
    %v232 = vld [vmem:[#allocation2 + $0x448] sm:$0xff]
    %v233 = vld [vmem:[#allocation2 + $0x450] sm:$0xff]
    %v234 = vld [vmem:[#allocation2 + $0x458] sm:$0xff]
    %v235 = vld [vmem:[#allocation2 + $0x460] sm:$0xff]
    %v236 = vld [vmem:[#allocation2 + $0x468] sm:$0xff]
    %v237 = vld [vmem:[#allocation2 + $0x470] sm:$0xff]
    %v238 = vld [vmem:[#allocation2 + $0x478] sm:$0xff]
    %v239 = vld [vmem:[#allocation2 + $0x480] sm:$0xff]
    %v240 = vld [vmem:[#allocation2 + $0x488] sm:$0xff]
    %v241 = vld [vmem:[#allocation2 + $0x490] sm:$0xff]
    %v242 = vld [vmem:[#allocation2 + $0x498] sm:$0xff]
    %v243 = vld [vmem:[#allocation2 + $0x4a0] sm:$0xff]
    %v244 = vld [vmem:[#allocation2 + $0x4a8] sm:$0xff]
    %v245 = vld [vmem:[#allocation2 + $0x4b0] sm:$0xff]
    %v246 = vld [vmem:[#allocation2 + $0x4b8] sm:$0xff]
    %v247 = vld [vmem:[#allocation2 + $0x4c0] sm:$0xff]
    %v248 = vld [vmem:[#allocation2 + $0x4c8] sm:$0xff]
    %v249 = vld [vmem:[#allocation2 + $0x4d0] sm:$0xff]
    %v250 = vld [vmem:[#allocation2 + $0x4d8] sm:$0xff]
    %v251 = vld [vmem:[#allocation2 + $0x4e0] sm:$0xff]
    %v252 = vld [vmem:[#allocation2 + $0x4e8] sm:$0xff]
    %v253 = vld [vmem:[#allocation2 + $0x4f0] sm:$0xff]
    %v254 = vld [vmem:[#allocation2 + $0x4f8] sm:$0xff]
    %v255 = vld [vmem:[#allocation2 + $0x500] sm:$0xff]
    %v256 = vld [vmem:[#allocation2 + $0x508] sm:$0xff]
    %v257 = vld [vmem:[#allocation2 + $0x510] sm:$0xff]
    %v258 = vld [vmem:[#allocation2 + $0x518] sm:$0xff]
    %v259 = vld [vmem:[#allocation2 + $0x520] sm:$0xff]
    %v260 = vld [vmem:[#allocation2 + $0x528] sm:$0xff]
    %v261 = vld [vmem:[#allocation2 + $0x530] sm:$0xff]
    %v262 = vld [vmem:[#allocation2 + $0x538] sm:$0xff]
    %v263 = vld [vmem:[#allocation2 + $0x540] sm:$0xff]
    %v264 = vld [vmem:[#allocation2 + $0x548] sm:$0xff]
    %v265 = vld [vmem:[#allocation2 + $0x550] sm:$0xff]
    %v266 = vld [vmem:[#allocation2 + $0x558] sm:$0xff]
    %v267 = vld [vmem:[#allocation2 + $0x560] sm:$0xff]
    %v268 = vld [vmem:[#allocation2 + $0x568] sm:$0xff]
    %v269 = vld [vmem:[#allocation2 + $0x570] sm:$0xff]
    %v270 = vld [vmem:[#allocation2 + $0x578] sm:$0xff]
    %v271 = vld [vmem:[#allocation2 + $0x580] sm:$0xff]
    %v272 = vld [vmem:[#allocation2 + $0x588] sm:$0xff]
    %v273 = vld [vmem:[#allocation2 + $0x590] sm:$0xff]
    %v274 = vld [vmem:[#allocation2 + $0x598] sm:$0xff]
    %v275 = vld [vmem:[#allocation2 + $0x5a0] sm:$0xff]
    %v276 = vld [vmem:[#allocation2 + $0x5a8] sm:$0xff]
    %v277 = vld [vmem:[#allocation2 + $0x5b0] sm:$0xff]
    %v278 = vld [vmem:[#allocation2 + $0x5b8] sm:$0xff]
    %v279 = vld [vmem:[#allocation2 + $0x5c0] sm:$0xff]
    %v280 = vld [vmem:[#allocation2 + $0x5c8] sm:$0xff]
    %v281 = vld [vmem:[#allocation2 + $0x5d0] sm:$0xff]
    %v282 = vld [vmem:[#allocation2 + $0x5d8] sm:$0xff]
    %v283 = vld [vmem:[#allocation2 + $0x5e0] sm:$0xff]
    %v284 = vld [vmem:[#allocation2 + $0x5e8] sm:$0xff]
    %v285 = vld [vmem:[#allocation2 + $0x5f0] sm:$0xff]
    %v286 = vld [vmem:[#allocation2 + $0x5f8] sm:$0xff]
    %v287 = vld [vmem:[#allocation2 + $0x600] sm:$0xff]
    %v288 = vld [vmem:[#allocation2 + $0x608] sm:$0xff]
    %v289 = vld [vmem:[#allocation2 + $0x610] sm:$0xff]
    %v290 = vld [vmem:[#allocation2 + $0x618] sm:$0xff]
    %v291 = vld [vmem:[#allocation2 + $0x620] sm:$0xff]
    %v292 = vld [vmem:[#allocation2 + $0x628] sm:$0xff]
    %v293 = vld [vmem:[#allocation2 + $0x630] sm:$0xff]
    %v294 = vld [vmem:[#allocation2 + $0x638] sm:$0xff]
    %v295 = vld [vmem:[#allocation2 + $0x640] sm:$0xff]
    %v296 = vld [vmem:[#allocation2 + $0x648] sm:$0xff]
    %v297 = vld [vmem:[#allocation2 + $0x650] sm:$0xff]
    %v298 = vld [vmem:[#allocation2 + $0x658] sm:$0xff]
    %v299 = vld [vmem:[#allocation2 + $0x660] sm:$0xff]
    %v300 = vld [vmem:[#allocation2 + $0x668] sm:$0xff]
    %v301 = vld [vmem:[#allocation2 + $0x670] sm:$0xff]
    %v302 = vld [vmem:[#allocation2 + $0x678] sm:$0xff]
    %v303 = vld [vmem:[#allocation2 + $0x680] sm:$0xff]
    %v304 = vld [vmem:[#allocation2 + $0x688] sm:$0xff]
    %v305 = vld [vmem:[#allocation2 + $0x690] sm:$0xff]
    %v306 = vld [vmem:[#allocation2 + $0x698] sm:$0xff]
    %v307 = vld [vmem:[#allocation2 + $0x6a0] sm:$0xff]
    %v308 = vld [vmem:[#allocation2 + $0x6a8] sm:$0xff]
    %v309 = vld [vmem:[#allocation2 + $0x6b0] sm:$0xff]
    %v310 = vld [vmem:[#allocation2 + $0x6b8] sm:$0xff]
    %v311 = vld [vmem:[#allocation2 + $0x6c0] sm:$0xff]
    %v312 = vld [vmem:[#allocation2 + $0x6c8] sm:$0xff]
    %v313 = vld [vmem:[#allocation2 + $0x6d0] sm:$0xff]
    %v314 = vld [vmem:[#allocation2 + $0x6d8] sm:$0xff]
    %v315 = vld [vmem:[#allocation2 + $0x6e0] sm:$0xff]
    %v316 = vld [vmem:[#allocation2 + $0x6e8] sm:$0xff]
    %v317 = vld [vmem:[#allocation2 + $0x6f0] sm:$0xff]
    %v318 = vld [vmem:[#allocation2 + $0x6f8] sm:$0xff]
    %v319 = vld [vmem:[#allocation2 + $0x700] sm:$0xff]
    %v320 = vld [vmem:[#allocation2 + $0x708] sm:$0xff]
    %v321 = vld [vmem:[#allocation2 + $0x710] sm:$0xff]
    %v322 = vld [vmem:[#allocation2 + $0x718] sm:$0xff]
    %v323 = vld [vmem:[#allocation2 + $0x720] sm:$0xff]
    %v324 = vld [vmem:[#allocation2 + $0x728] sm:$0xff]
    %v325 = vld [vmem:[#allocation2 + $0x730] sm:$0xff]
    %v326 = vld [vmem:[#allocation2 + $0x738] sm:$0xff]
    %v327 = vld [vmem:[#allocation2 + $0x740] sm:$0xff]
    %v328 = vld [vmem:[#allocation2 + $0x748] sm:$0xff]
    %v329 = vld [vmem:[#allocation2 + $0x750] sm:$0xff]
    %v330 = vld [vmem:[#allocation2 + $0x758] sm:$0xff]
    %v331 = vld [vmem:[#allocation2 + $0x760] sm:$0xff]
    %v332 = vld [vmem:[#allocation2 + $0x768] sm:$0xff]
    %v333 = vld [vmem:[#allocation2 + $0x770] sm:$0xff]
    %v334 = vld [vmem:[#allocation2 + $0x778] sm:$0xff]
    %v335 = vld [vmem:[#allocation2 + $0x780] sm:$0xff]
    %v336 = vld [vmem:[#allocation2 + $0x788] sm:$0xff]
    %v337 = vld [vmem:[#allocation2 + $0x790] sm:$0xff]
    %v338 = vld [vmem:[#allocation2 + $0x798] sm:$0xff]
    %v339 = vld [vmem:[#allocation2 + $0x7a0] sm:$0xff]
    %v340 = vld [vmem:[#allocation2 + $0x7a8] sm:$0xff]
    %v341 = vld [vmem:[#allocation2 + $0x7b0] sm:$0xff]
    %v342 = vld [vmem:[#allocation2 + $0x7b8] sm:$0xff]
    %v343 = vld [vmem:[#allocation2 + $0x7c0] sm:$0xff]
    %v344 = vld [vmem:[#allocation2 + $0x7c8] sm:$0xff]
    %v345 = vld [vmem:[#allocation2 + $0x7d0] sm:$0xff]
    %v346 = vld [vmem:[#allocation2 + $0x7d8] sm:$0xff]
    %v347 = vld [vmem:[#allocation2 + $0x7e0] sm:$0xff]
    %v348 = vld [vmem:[#allocation2 + $0x7e8] sm:$0xff]
    %v349 = vld [vmem:[#allocation2 + $0x7f0] sm:$0xff]
    %v350 = vld [vmem:[#allocation2 + $0x7f8] sm:$0xff]
    %v351 = vld [vmem:[#allocation2 + $0x800] sm:$0xff]
    %v352 = vld [vmem:[#allocation2 + $0x808] sm:$0xff]
    %v353 = vld [vmem:[#allocation2 + $0x810] sm:$0xff]
    %v354 = vld [vmem:[#allocation2 + $0x818] sm:$0xff]
    %v355 = vld [vmem:[#allocation2 + $0x820] sm:$0xff]
    %v356 = vld [vmem:[#allocation2 + $0x828] sm:$0xff]
    %v357 = vld [vmem:[#allocation2 + $0x830] sm:$0xff]
    %v358 = vld [vmem:[#allocation2 + $0x838] sm:$0xff]
    %v359 = vld [vmem:[#allocation2 + $0x840] sm:$0xff]
    %v360 = vld [vmem:[#allocation2 + $0x848] sm:$0xff]
    %v361 = vld [vmem:[#allocation2 + $0x850] sm:$0xff]
    %v362 = vld [vmem:[#allocation2 + $0x858] sm:$0xff]
    %v363 = vld [vmem:[#allocation2 + $0x860] sm:$0xff]
    %v364 = vld [vmem:[#allocation2 + $0x868] sm:$0xff]
    %v365 = vld [vmem:[#allocation2 + $0x870] sm:$0xff]
    %v366 = vld [vmem:[#allocation2 + $0x878] sm:$0xff]
    %v367 = vld [vmem:[#allocation2 + $0x880] sm:$0xff]
    %v368 = vld [vmem:[#allocation2 + $0x888] sm:$0xff]
    %v369 = vld [vmem:[#allocation2 + $0x890] sm:$0xff]
    %v370 = vld [vmem:[#allocation2 + $0x898] sm:$0xff]
    %v371 = vld [vmem:[#allocation2 + $0x8a0] sm:$0xff]
    %v372 = vld [vmem:[#allocation2 + $0x8a8] sm:$0xff]
    %v373 = vld [vmem:[#allocation2 + $0x8b0] sm:$0xff]
    %v374 = vld [vmem:[#allocation2 + $0x8b8] sm:$0xff]
    %v375 = vld [vmem:[#allocation2 + $0x8c0] sm:$0xff]
    %v376 = vld [vmem:[#allocation2 + $0x8c8] sm:$0xff]
    %v377 = vld [vmem:[#allocation2 + $0x8d0] sm:$0xff]
    %v378 = vld [vmem:[#allocation2 + $0x8d8] sm:$0xff]
    %v379 = vld [vmem:[#allocation2 + $0x8e0] sm:$0xff]
    %v380 = vld [vmem:[#allocation2 + $0x8e8] sm:$0xff]
    %v381 = vld [vmem:[#allocation2 + $0x8f0] sm:$0xff]
    %v382 = vld [vmem:[#allocation2 + $0x8f8] sm:$0xff]
    %v383 = vld [vmem:[#allocation2 + $0x900] sm:$0xff]
    %v384 = vld [vmem:[#allocation2 + $0x908] sm:$0xff]
    %v385 = vld [vmem:[#allocation2 + $0x910] sm:$0xff]
    %v386 = vld [vmem:[#allocation2 + $0x918] sm:$0xff]
    %v387 = vld [vmem:[#allocation2 + $0x920] sm:$0xff]
    %v388 = vld [vmem:[#allocation2 + $0x928] sm:$0xff]
    %v389 = vld [vmem:[#allocation2 + $0x930] sm:$0xff]
    %v390 = vld [vmem:[#allocation2 + $0x938] sm:$0xff]
    %v391 = vld [vmem:[#allocation2 + $0x940] sm:$0xff]
    %v392 = vld [vmem:[#allocation2 + $0x948] sm:$0xff]
    %v393 = vld [vmem:[#allocation2 + $0x950] sm:$0xff]
    %v394 = vld [vmem:[#allocation2 + $0x958] sm:$0xff]
    %v395 = vld [vmem:[#allocation2 + $0x960] sm:$0xff]
    %v396 = vld [vmem:[#allocation2 + $0x968] sm:$0xff]
    %v397 = vld [vmem:[#allocation2 + $0x970] sm:$0xff]
    %v398 = vld [vmem:[#allocation2 + $0x978] sm:$0xff]
    %v399 = vld [vmem:[#allocation2 + $0x980] sm:$0xff]
    %v400 = vld [vmem:[#allocation2 + $0x988] sm:$0xff]
    %v401 = vld [vmem:[#allocation2 + $0x990] sm:$0xff]
    %v402 = vld [vmem:[#allocation2 + $0x998] sm:$0xff]
    %v403 = vld [vmem:[#allocation2 + $0x9a0] sm:$0xff]
    %v404 = vld [vmem:[#allocation2 + $0x9a8] sm:$0xff]
    %v405 = vld [vmem:[#allocation2 + $0x9b0] sm:$0xff]
    %v406 = vld [vmem:[#allocation2 + $0x9b8] sm:$0xff]
    %v407 = vld [vmem:[#allocation2 + $0x9c0] sm:$0xff]
    %v408 = vld [vmem:[#allocation2 + $0x9c8] sm:$0xff]
    %v409 = vld [vmem:[#allocation2 + $0x9d0] sm:$0xff]
    %v410 = vld [vmem:[#allocation2 + $0x9d8] sm:$0xff]
    %v411 = vld [vmem:[#allocation2 + $0x9e0] sm:$0xff]
    %v412 = vld [vmem:[#allocation2 + $0x9e8] sm:$0xff]
    %v413 = vld [vmem:[#allocation2 + $0x9f0] sm:$0xff]
    %v414 = vld [vmem:[#allocation2 + $0x9f8] sm:$0xff]
    %v415 = vld [vmem:[#allocation2 + $0xa00] sm:$0xff]
    %v416 = vld [vmem:[#allocation2 + $0xa08] sm:$0xff]
    %v417 = vld [vmem:[#allocation2 + $0xa10] sm:$0xff]
    %v418 = vld [vmem:[#allocation2 + $0xa18] sm:$0xff]
    %v419 = vld [vmem:[#allocation2 + $0xa20] sm:$0xff]
    %v420 = vld [vmem:[#allocation2 + $0xa28] sm:$0xff]
    %v421 = vld [vmem:[#allocation2 + $0xa30] sm:$0xff]
    %v422 = vld [vmem:[#allocation2 + $0xa38] sm:$0xff]
    %v423 = vld [vmem:[#allocation2 + $0xa40] sm:$0xff]
    %v424 = vld [vmem:[#allocation2 + $0xa48] sm:$0xff]
    %v425 = vld [vmem:[#allocation2 + $0xa50] sm:$0xff]
    %v426 = vld [vmem:[#allocation2 + $0xa58] sm:$0xff]
    %v427 = vld [vmem:[#allocation2 + $0xa60] sm:$0xff]
    %v428 = vld [vmem:[#allocation2 + $0xa68] sm:$0xff]
    %v429 = vld [vmem:[#allocation2 + $0xa70] sm:$0xff]
    %v430 = vld [vmem:[#allocation2 + $0xa78] sm:$0xff]
    %v431 = vld [vmem:[#allocation2 + $0xa80] sm:$0xff]
    %v432 = vld [vmem:[#allocation2 + $0xa88] sm:$0xff]
    %v433 = vld [vmem:[#allocation2 + $0xa90] sm:$0xff]
    %v434 = vld [vmem:[#allocation2 + $0xa98] sm:$0xff]
    %v435 = vld [vmem:[#allocation2 + $0xaa0] sm:$0xff]
    %v436 = vld [vmem:[#allocation2 + $0xaa8] sm:$0xff]
    %v437 = vld [vmem:[#allocation2 + $0xab0] sm:$0xff]
    %v438 = vld [vmem:[#allocation2 + $0xab8] sm:$0xff]
    %v439 = vld [vmem:[#allocation2 + $0xac0] sm:$0xff]
    %v440 = vld [vmem:[#allocation2 + $0xac8] sm:$0xff]
    %v441 = vld [vmem:[#allocation2 + $0xad0] sm:$0xff]
    %v442 = vld [vmem:[#allocation2 + $0xad8] sm:$0xff]
    %v443 = vld [vmem:[#allocation2 + $0xae0] sm:$0xff]
    %v444 = vld [vmem:[#allocation2 + $0xae8] sm:$0xff]
    %v445 = vld [vmem:[#allocation2 + $0xaf0] sm:$0xff]
    %v446 = vld [vmem:[#allocation2 + $0xaf8] sm:$0xff]
    %v447 = vld [vmem:[#allocation2 + $0xb00] sm:$0xff]
    %v448 = vld [vmem:[#allocation2 + $0xb08] sm:$0xff]
    %v449 = vld [vmem:[#allocation2 + $0xb10] sm:$0xff]
    %v450 = vld [vmem:[#allocation2 + $0xb18] sm:$0xff]
    %v451 = vld [vmem:[#allocation2 + $0xb20] sm:$0xff]
    %v452 = vld [vmem:[#allocation2 + $0xb28] sm:$0xff]
    %v453 = vld [vmem:[#allocation2 + $0xb30] sm:$0xff]
    %v454 = vld [vmem:[#allocation2 + $0xb38] sm:$0xff]
    %v455 = vld [vmem:[#allocation2 + $0xb40] sm:$0xff]
    %v456 = vld [vmem:[#allocation2 + $0xb48] sm:$0xff]
    %v457 = vld [vmem:[#allocation2 + $0xb50] sm:$0xff]
    %v458 = vld [vmem:[#allocation2 + $0xb58] sm:$0xff]
    %v459 = vld [vmem:[#allocation2 + $0xb60] sm:$0xff]
    %v460 = vld [vmem:[#allocation2 + $0xb68] sm:$0xff]
    %v461 = vld [vmem:[#allocation2 + $0xb70] sm:$0xff]
    %v462 = vld [vmem:[#allocation2 + $0xb78] sm:$0xff]
    %v463 = vld [vmem:[#allocation2 + $0xb80] sm:$0xff]
    %v464 = vld [vmem:[#allocation2 + $0xb88] sm:$0xff]
    %v465 = vld [vmem:[#allocation2 + $0xb90] sm:$0xff]
    %v466 = vld [vmem:[#allocation2 + $0xb98] sm:$0xff]
    %v467 = vld [vmem:[#allocation2 + $0xba0] sm:$0xff]
    %v468 = vld [vmem:[#allocation2 + $0xba8] sm:$0xff]
    %v469 = vld [vmem:[#allocation2 + $0xbb0] sm:$0xff]
    %v470 = vld [vmem:[#allocation2 + $0xbb8] sm:$0xff]
    %v471 = vld [vmem:[#allocation2 + $0xbc0] sm:$0xff]
    %v472 = vld [vmem:[#allocation2 + $0xbc8] sm:$0xff]
    %v473 = vld [vmem:[#allocation2 + $0xbd0] sm:$0xff]
    %v474 = vld [vmem:[#allocation2 + $0xbd8] sm:$0xff]
    %v475 = vld [vmem:[#allocation2 + $0xbe0] sm:$0xff]
    %v476 = vld [vmem:[#allocation2 + $0xbe8] sm:$0xff]
    %v477 = vld [vmem:[#allocation2 + $0xbf0] sm:$0xff]
    %v478 = vld [vmem:[#allocation2 + $0xbf8] sm:$0xff]
    %v479 = vld [vmem:[#allocation2 + $0xc00] sm:$0xff]
    %v480 = vld [vmem:[#allocation2 + $0xc08] sm:$0xff]
    %v481 = vld [vmem:[#allocation2 + $0xc10] sm:$0xff]
    %v482 = vld [vmem:[#allocation2 + $0xc18] sm:$0xff]
    %v483 = vld [vmem:[#allocation2 + $0xc20] sm:$0xff]
    %v484 = vld [vmem:[#allocation2 + $0xc28] sm:$0xff]
    %v485 = vld [vmem:[#allocation2 + $0xc30] sm:$0xff]
    %v486 = vld [vmem:[#allocation2 + $0xc38] sm:$0xff]
    %v487 = vld [vmem:[#allocation2 + $0xc40] sm:$0xff]
    %v488 = vld [vmem:[#allocation2 + $0xc48] sm:$0xff]
    %v489 = vld [vmem:[#allocation2 + $0xc50] sm:$0xff]
    %v490 = vld [vmem:[#allocation2 + $0xc58] sm:$0xff]
    %v491 = vld [vmem:[#allocation2 + $0xc60] sm:$0xff]
    %v492 = vld [vmem:[#allocation2 + $0xc68] sm:$0xff]
    %v493 = vld [vmem:[#allocation2 + $0xc70] sm:$0xff]
    %v494 = vld [vmem:[#allocation2 + $0xc78] sm:$0xff]
    %v495 = vld [vmem:[#allocation2 + $0xc80] sm:$0xff]
    %v496 = vld [vmem:[#allocation2 + $0xc88] sm:$0xff]
    %v497 = vld [vmem:[#allocation2 + $0xc90] sm:$0xff]
    %v498 = vld [vmem:[#allocation2 + $0xc98] sm:$0xff]
    %v499 = vld [vmem:[#allocation2 + $0xca0] sm:$0xff]
    %v500 = vld [vmem:[#allocation2 + $0xca8] sm:$0xff]
    %v501 = vld [vmem:[#allocation2 + $0xcb0] sm:$0xff]
    %v502 = vld [vmem:[#allocation2 + $0xcb8] sm:$0xff]
    %v503 = vld [vmem:[#allocation2 + $0xcc0] sm:$0xff]
    %v504 = vld [vmem:[#allocation2 + $0xcc8] sm:$0xff]
    %v505 = vld [vmem:[#allocation2 + $0xcd0] sm:$0xff]
    %v506 = vld [vmem:[#allocation2 + $0xcd8] sm:$0xff]
    %v507 = vld [vmem:[#allocation2 + $0xce0] sm:$0xff]
    %v508 = vld [vmem:[#allocation2 + $0xce8] sm:$0xff]
    %v509 = vld [vmem:[#allocation2 + $0xcf0] sm:$0xff]
    %v510 = vld [vmem:[#allocation2 + $0xcf8] sm:$0xff]
    %v511 = vld [vmem:[#allocation2 + $0xd00] sm:$0xff]
    %v512 = vld [vmem:[#allocation2 + $0xd08] sm:$0xff]
    %v513 = vld [vmem:[#allocation2 + $0xd10] sm:$0xff]
    %v514 = vld [vmem:[#allocation2 + $0xd18] sm:$0xff]
    %v515 = vld [vmem:[#allocation2 + $0xd20] sm:$0xff]
    %v516 = vld [vmem:[#allocation2 + $0xd28] sm:$0xff]
    %v517 = vld [vmem:[#allocation2 + $0xd30] sm:$0xff]
    %v518 = vld [vmem:[#allocation2 + $0xd38] sm:$0xff]
    %v519 = vld [vmem:[#allocation2 + $0xd40] sm:$0xff]
    %v520 = vld [vmem:[#allocation2 + $0xd48] sm:$0xff]
    %v521 = vld [vmem:[#allocation2 + $0xd50] sm:$0xff]
    %v522 = vld [vmem:[#allocation2 + $0xd58] sm:$0xff]
    %v523 = vld [vmem:[#allocation2 + $0xd60] sm:$0xff]
    %v524 = vld [vmem:[#allocation2 + $0xd68] sm:$0xff]
    %v525 = vld [vmem:[#allocation2 + $0xd70] sm:$0xff]
    %v526 = vld [vmem:[#allocation2 + $0xd78] sm:$0xff]
    %v527 = vld [vmem:[#allocation2 + $0xd80] sm:$0xff]
    %v528 = vld [vmem:[#allocation2 + $0xd88] sm:$0xff]
    %v529 = vld [vmem:[#allocation2 + $0xd90] sm:$0xff]
    %v530 = vld [vmem:[#allocation2 + $0xd98] sm:$0xff]
    %v531 = vld [vmem:[#allocation2 + $0xda0] sm:$0xff]
    %v532 = vld [vmem:[#allocation2 + $0xda8] sm:$0xff]
    %v533 = vld [vmem:[#allocation2 + $0xdb0] sm:$0xff]
    %v534 = vld [vmem:[#allocation2 + $0xdb8] sm:$0xff]
    %v535 = vld [vmem:[#allocation2 + $0xdc0] sm:$0xff]
    %v536 = vld [vmem:[#allocation2 + $0xdc8] sm:$0xff]
    %v537 = vld [vmem:[#allocation2 + $0xdd0] sm:$0xff]
    %v538 = vld [vmem:[#allocation2 + $0xdd8] sm:$0xff]
    %v539 = vld [vmem:[#allocation2 + $0xde0] sm:$0xff]
    %v540 = vld [vmem:[#allocation2 + $0xde8] sm:$0xff]
    %v541 = vld [vmem:[#allocation2 + $0xdf0] sm:$0xff]
    %v542 = vld [vmem:[#allocation2 + $0xdf8] sm:$0xff]
    %v543 = vld [vmem:[#allocation2 + $0xe00] sm:$0xff]
    %v544 = vld [vmem:[#allocation2 + $0xe08] sm:$0xff]
    %v545 = vld [vmem:[#allocation2 + $0xe10] sm:$0xff]
    %v546 = vld [vmem:[#allocation2 + $0xe18] sm:$0xff]
    %v547 = vld [vmem:[#allocation2 + $0xe20] sm:$0xff]
    %v548 = vld [vmem:[#allocation2 + $0xe28] sm:$0xff]
    %v549 = vld [vmem:[#allocation2 + $0xe30] sm:$0xff]
    %v550 = vld [vmem:[#allocation2 + $0xe38] sm:$0xff]
    %v551 = vld [vmem:[#allocation2 + $0xe40] sm:$0xff]
    %v552 = vld [vmem:[#allocation2 + $0xe48] sm:$0xff]
    %v553 = vld [vmem:[#allocation2 + $0xe50] sm:$0xff]
    %v554 = vld [vmem:[#allocation2 + $0xe58] sm:$0xff]
    %v555 = vld [vmem:[#allocation2 + $0xe60] sm:$0xff]
    %v556 = vld [vmem:[#allocation2 + $0xe68] sm:$0xff]
    %v557 = vld [vmem:[#allocation2 + $0xe70] sm:$0xff]
    %v558 = vld [vmem:[#allocation2 + $0xe78] sm:$0xff]
    %v559 = vld [vmem:[#allocation2 + $0xe80] sm:$0xff]
    %v560 = vld [vmem:[#allocation2 + $0xe88] sm:$0xff]
    %v561 = vld [vmem:[#allocation2 + $0xe90] sm:$0xff]
    %v562 = vld [vmem:[#allocation2 + $0xe98] sm:$0xff]
    %v563 = vld [vmem:[#allocation2 + $0xea0] sm:$0xff]
    %v564 = vld [vmem:[#allocation2 + $0xea8] sm:$0xff]
    %v565 = vld [vmem:[#allocation2 + $0xeb0] sm:$0xff]
    %v566 = vld [vmem:[#allocation2 + $0xeb8] sm:$0xff]
    %v567 = vld [vmem:[#allocation2 + $0xec0] sm:$0xff]
    %v568 = vld [vmem:[#allocation2 + $0xec8] sm:$0xff]
    %v569 = vld [vmem:[#allocation2 + $0xed0] sm:$0xff]
    %v570 = vld [vmem:[#allocation2 + $0xed8] sm:$0xff]
    %v571 = vld [vmem:[#allocation2 + $0xee0] sm:$0xff]
    %v572 = vld [vmem:[#allocation2 + $0xee8] sm:$0xff]
    %v573 = vld [vmem:[#allocation2 + $0xef0] sm:$0xff]
    %v574 = vld [vmem:[#allocation2 + $0xef8] sm:$0xff]
    %v575 = vld [vmem:[#allocation2 + $0xf00] sm:$0xff]
    %v576 = vld [vmem:[#allocation2 + $0xf08] sm:$0xff]
    %v577 = vld [vmem:[#allocation2 + $0xf10] sm:$0xff]
    %v578 = vld [vmem:[#allocation2 + $0xf18] sm:$0xff]
    %v579 = vld [vmem:[#allocation2 + $0xf20] sm:$0xff]
    %v580 = vld [vmem:[#allocation2 + $0xf28] sm:$0xff]
    %v581 = vld [vmem:[#allocation2 + $0xf30] sm:$0xff]
    %v582 = vld [vmem:[#allocation2 + $0xf38] sm:$0xff]
    %v583 = vld [vmem:[#allocation2 + $0xf40] sm:$0xff]
    %v584 = vld [vmem:[#allocation2 + $0xf48] sm:$0xff]
    %v585 = vld [vmem:[#allocation2 + $0xf50] sm:$0xff]
    %v586 = vld [vmem:[#allocation2 + $0xf58] sm:$0xff]
    %v587 = vld [vmem:[#allocation2 + $0xf60] sm:$0xff]
    %v588 = vld [vmem:[#allocation2 + $0xf68] sm:$0xff]
    %v589 = vld [vmem:[#allocation2 + $0xf70] sm:$0xff]
    %v590 = vld [vmem:[#allocation2 + $0xf78] sm:$0xff]
    %v591 = vld [vmem:[#allocation2 + $0xf80] sm:$0xff]
    %v592 = vld [vmem:[#allocation2 + $0xf88] sm:$0xff]
    %v593 = vld [vmem:[#allocation2 + $0xf90] sm:$0xff]
    %v594 = vld [vmem:[#allocation2 + $0xf98] sm:$0xff]
    %v595 = vld [vmem:[#allocation2 + $0xfa0] sm:$0xff]
    %v596 = vld [vmem:[#allocation2 + $0xfa8] sm:$0xff]
    %v597 = vld [vmem:[#allocation2 + $0xfb0] sm:$0xff]
    %v598 = vld [vmem:[#allocation2 + $0xfb8] sm:$0xff]
    %v599 = vld [vmem:[#allocation2 + $0xfc0] sm:$0xff]
    %v600 = vld [vmem:[#allocation2 + $0xfc8] sm:$0xff]
    %v601 = vld [vmem:[#allocation2 + $0xfd0] sm:$0xff]
    %v602 = vld [vmem:[#allocation2 + $0xfd8] sm:$0xff]
    %v603 = vld [vmem:[#allocation2 + $0xfe0] sm:$0xff]
    %v604 = vld [vmem:[#allocation2 + $0xfe8] sm:$0xff]
    %v605 = vld [vmem:[#allocation2 + $0xff0] sm:$0xff]
    %v606 = vld [vmem:[#allocation2 + $0xff8] sm:$0xff]
    %v607 = vld [vmem:[#allocation4] sm:$0xff]
    %v609 = vperm.slane %v607, 0
    %v610 = vperm.slane %v607, 1
    %v611 = vperm.slane %v607, 2
    %v612 = vperm.slane %v607, 3
    %v613 = vperm.slane %v607, 4
    %v614 = vperm.slane %v607, 5
    %v615 = vperm.slane %v607, 6
    %v616 = vperm.slane %v607, 7
    %v1137 = vunpack.c.l.b16 %v95
    %v1138 = vunpack.c.h.b16 %v95
    %v1139 = vunpack.c.l.b16 %v96
    %v1140 = vunpack.c.h.b16 %v96
    %v1141 = vunpack.c.l.b16 %v97
    %v1142 = vunpack.c.h.b16 %v97
    %v1143 = vunpack.c.l.b16 %v98
    %v1144 = vunpack.c.h.b16 %v98
    %v1145 = vunpack.c.l.b16 %v99
    %v1146 = vunpack.c.h.b16 %v99
    %v1147 = vunpack.c.l.b16 %v100
    %v1148 = vunpack.c.h.b16 %v100
    %v1149 = vunpack.c.l.b16 %v101
    %v1150 = vunpack.c.h.b16 %v101
    %v1151 = vunpack.c.l.b16 %v102
    %v1152 = vunpack.c.h.b16 %v102
    %v1153 = vunpack.c.l.b16 %v103
    %v1154 = vunpack.c.h.b16 %v103
    %v1155 = vunpack.c.l.b16 %v104
    %v1156 = vunpack.c.h.b16 %v104
    %v1157 = vunpack.c.l.b16 %v105
    %v1158 = vunpack.c.h.b16 %v105
    %v1159 = vunpack.c.l.b16 %v106
    %v1160 = vunpack.c.h.b16 %v106
    %v1161 = vunpack.c.l.b16 %v107
    %v1162 = vunpack.c.h.b16 %v107
    %v1163 = vunpack.c.l.b16 %v108
    %v1164 = vunpack.c.h.b16 %v108
    %v1165 = vunpack.c.l.b16 %v109
    %v1166 = vunpack.c.h.b16 %v109
    %v1167 = vunpack.c.l.b16 %v110
    %v1168 = vunpack.c.h.b16 %v110
    %v1169 = vunpack.c.l.b16 %v111
    %v1170 = vunpack.c.h.b16 %v111
    %v1171 = vunpack.c.l.b16 %v112
    %v1172 = vunpack.c.h.b16 %v112
    %v1173 = vunpack.c.l.b16 %v113
    %v1174 = vunpack.c.h.b16 %v113
    %v1175 = vunpack.c.l.b16 %v114
    %v1176 = vunpack.c.h.b16 %v114
    %v1177 = vunpack.c.l.b16 %v115
    %v1178 = vunpack.c.h.b16 %v115
    %v1179 = vunpack.c.l.b16 %v116
    %v1180 = vunpack.c.h.b16 %v116
    %v1181 = vunpack.c.l.b16 %v117
    %v1182 = vunpack.c.h.b16 %v117
    %v1183 = vunpack.c.l.b16 %v118
    %v1184 = vunpack.c.h.b16 %v118
    %v1185 = vunpack.c.l.b16 %v119
    %v1186 = vunpack.c.h.b16 %v119
    %v1187 = vunpack.c.l.b16 %v120
    %v1188 = vunpack.c.h.b16 %v120
    %v1189 = vunpack.c.l.b16 %v121
    %v1190 = vunpack.c.h.b16 %v121
    %v1191 = vunpack.c.l.b16 %v122
    %v1192 = vunpack.c.h.b16 %v122
    %v1193 = vunpack.c.l.b16 %v123
    %v1194 = vunpack.c.h.b16 %v123
    %v1195 = vunpack.c.l.b16 %v124
    %v1196 = vunpack.c.h.b16 %v124
    %v1197 = vunpack.c.l.b16 %v125
    %v1198 = vunpack.c.h.b16 %v125
    %v1199 = vunpack.c.l.b16 %v126
    %v1200 = vunpack.c.h.b16 %v126
    %v1201 = vunpack.c.l.b16 %v127
    %v1202 = vunpack.c.h.b16 %v127
    %v1203 = vunpack.c.l.b16 %v128
    %v1204 = vunpack.c.h.b16 %v128
    %v1205 = vunpack.c.l.b16 %v129
    %v1206 = vunpack.c.h.b16 %v129
    %v1207 = vunpack.c.l.b16 %v130
    %v1208 = vunpack.c.h.b16 %v130
    %v1209 = vunpack.c.l.b16 %v131
    %v1210 = vunpack.c.h.b16 %v131
    %v1211 = vunpack.c.l.b16 %v132
    %v1212 = vunpack.c.h.b16 %v132
    %v1213 = vunpack.c.l.b16 %v133
    %v1214 = vunpack.c.h.b16 %v133
    %v1215 = vunpack.c.l.b16 %v134
    %v1216 = vunpack.c.h.b16 %v134
    %v1217 = vunpack.c.l.b16 %v135
    %v1218 = vunpack.c.h.b16 %v135
    %v1219 = vunpack.c.l.b16 %v136
    %v1220 = vunpack.c.h.b16 %v136
    %v1221 = vunpack.c.l.b16 %v137
    %v1222 = vunpack.c.h.b16 %v137
    %v1223 = vunpack.c.l.b16 %v138
    %v1224 = vunpack.c.h.b16 %v138
    %v1225 = vunpack.c.l.b16 %v139
    %v1226 = vunpack.c.h.b16 %v139
    %v1227 = vunpack.c.l.b16 %v140
    %v1228 = vunpack.c.h.b16 %v140
    %v1229 = vunpack.c.l.b16 %v141
    %v1230 = vunpack.c.h.b16 %v141
    %v1231 = vunpack.c.l.b16 %v142
    %v1232 = vunpack.c.h.b16 %v142
    %v1233 = vunpack.c.l.b16 %v143
    %v1234 = vunpack.c.h.b16 %v143
    %v1235 = vunpack.c.l.b16 %v144
    %v1236 = vunpack.c.h.b16 %v144
    %v1237 = vunpack.c.l.b16 %v145
    %v1238 = vunpack.c.h.b16 %v145
    %v1239 = vunpack.c.l.b16 %v146
    %v1240 = vunpack.c.h.b16 %v146
    %v1241 = vunpack.c.l.b16 %v147
    %v1242 = vunpack.c.h.b16 %v147
    %v1243 = vunpack.c.l.b16 %v148
    %v1244 = vunpack.c.h.b16 %v148
    %v1245 = vunpack.c.l.b16 %v149
    %v1246 = vunpack.c.h.b16 %v149
    %v1247 = vunpack.c.l.b16 %v150
    %v1248 = vunpack.c.h.b16 %v150
    %v1249 = vunpack.c.l.b16 %v151
    %v1250 = vunpack.c.h.b16 %v151
    %v1251 = vunpack.c.l.b16 %v152
    %v1252 = vunpack.c.h.b16 %v152
    %v1253 = vunpack.c.l.b16 %v153
    %v1254 = vunpack.c.h.b16 %v153
    %v1255 = vunpack.c.l.b16 %v154
    %v1256 = vunpack.c.h.b16 %v154
    %v1257 = vunpack.c.l.b16 %v155
    %v1258 = vunpack.c.h.b16 %v155
    %v1259 = vunpack.c.l.b16 %v156
    %v1260 = vunpack.c.h.b16 %v156
    %v1261 = vunpack.c.l.b16 %v157
    %v1262 = vunpack.c.h.b16 %v157
    %v1263 = vunpack.c.l.b16 %v158
    %v1264 = vunpack.c.h.b16 %v158
    %v1265 = vunpack.c.l.b16 %v159
    %v1266 = vunpack.c.h.b16 %v159
    %v1267 = vunpack.c.l.b16 %v160
    %v1268 = vunpack.c.h.b16 %v160
    %v1269 = vunpack.c.l.b16 %v161
    %v1270 = vunpack.c.h.b16 %v161
    %v1271 = vunpack.c.l.b16 %v162
    %v1272 = vunpack.c.h.b16 %v162
    %v1273 = vunpack.c.l.b16 %v163
    %v1274 = vunpack.c.h.b16 %v163
    %v1275 = vunpack.c.l.b16 %v164
    %v1276 = vunpack.c.h.b16 %v164
    %v1277 = vunpack.c.l.b16 %v165
    %v1278 = vunpack.c.h.b16 %v165
    %v1279 = vunpack.c.l.b16 %v166
    %v1280 = vunpack.c.h.b16 %v166
    %v1281 = vunpack.c.l.b16 %v167
    %v1282 = vunpack.c.h.b16 %v167
    %v1283 = vunpack.c.l.b16 %v168
    %v1284 = vunpack.c.h.b16 %v168
    %v1285 = vunpack.c.l.b16 %v169
    %v1286 = vunpack.c.h.b16 %v169
    %v1287 = vunpack.c.l.b16 %v170
    %v1288 = vunpack.c.h.b16 %v170
    %v1289 = vunpack.c.l.b16 %v171
    %v1290 = vunpack.c.h.b16 %v171
    %v1291 = vunpack.c.l.b16 %v172
    %v1292 = vunpack.c.h.b16 %v172
    %v1293 = vunpack.c.l.b16 %v173
    %v1294 = vunpack.c.h.b16 %v173
    %v1295 = vunpack.c.l.b16 %v174
    %v1296 = vunpack.c.h.b16 %v174
    %v1297 = vunpack.c.l.b16 %v175
    %v1298 = vunpack.c.h.b16 %v175
    %v1299 = vunpack.c.l.b16 %v176
    %v1300 = vunpack.c.h.b16 %v176
    %v1301 = vunpack.c.l.b16 %v177
    %v1302 = vunpack.c.h.b16 %v177
    %v1303 = vunpack.c.l.b16 %v178
    %v1304 = vunpack.c.h.b16 %v178
    %v1305 = vunpack.c.l.b16 %v179
    %v1306 = vunpack.c.h.b16 %v179
    %v1307 = vunpack.c.l.b16 %v180
    %v1308 = vunpack.c.h.b16 %v180
    %v1309 = vunpack.c.l.b16 %v181
    %v1310 = vunpack.c.h.b16 %v181
    %v1311 = vunpack.c.l.b16 %v182
    %v1312 = vunpack.c.h.b16 %v182
    %v1313 = vunpack.c.l.b16 %v183
    %v1314 = vunpack.c.h.b16 %v183
    %v1315 = vunpack.c.l.b16 %v184
    %v1316 = vunpack.c.h.b16 %v184
    %v1317 = vunpack.c.l.b16 %v185
    %v1318 = vunpack.c.h.b16 %v185
    %v1319 = vunpack.c.l.b16 %v186
    %v1320 = vunpack.c.h.b16 %v186
    %v1321 = vunpack.c.l.b16 %v187
    %v1322 = vunpack.c.h.b16 %v187
    %v1323 = vunpack.c.l.b16 %v188
    %v1324 = vunpack.c.h.b16 %v188
    %v1325 = vunpack.c.l.b16 %v189
    %v1326 = vunpack.c.h.b16 %v189
    %v1327 = vunpack.c.l.b16 %v190
    %v1328 = vunpack.c.h.b16 %v190
    %v1329 = vunpack.c.l.b16 %v191
    %v1330 = vunpack.c.h.b16 %v191
    %v1331 = vunpack.c.l.b16 %v192
    %v1332 = vunpack.c.h.b16 %v192
    %v1333 = vunpack.c.l.b16 %v193
    %v1334 = vunpack.c.h.b16 %v193
    %v1335 = vunpack.c.l.b16 %v194
    %v1336 = vunpack.c.h.b16 %v194
    %v1337 = vunpack.c.l.b16 %v195
    %v1338 = vunpack.c.h.b16 %v195
    %v1339 = vunpack.c.l.b16 %v196
    %v1340 = vunpack.c.h.b16 %v196
    %v1341 = vunpack.c.l.b16 %v197
    %v1342 = vunpack.c.h.b16 %v197
    %v1343 = vunpack.c.l.b16 %v198
    %v1344 = vunpack.c.h.b16 %v198
    %v1345 = vunpack.c.l.b16 %v199
    %v1346 = vunpack.c.h.b16 %v199
    %v1347 = vunpack.c.l.b16 %v200
    %v1348 = vunpack.c.h.b16 %v200
    %v1349 = vunpack.c.l.b16 %v201
    %v1350 = vunpack.c.h.b16 %v201
    %v1351 = vunpack.c.l.b16 %v202
    %v1352 = vunpack.c.h.b16 %v202
    %v1353 = vunpack.c.l.b16 %v203
    %v1354 = vunpack.c.h.b16 %v203
    %v1355 = vunpack.c.l.b16 %v204
    %v1356 = vunpack.c.h.b16 %v204
    %v1357 = vunpack.c.l.b16 %v205
    %v1358 = vunpack.c.h.b16 %v205
    %v1359 = vunpack.c.l.b16 %v206
    %v1360 = vunpack.c.h.b16 %v206
    %v1361 = vunpack.c.l.b16 %v207
    %v1362 = vunpack.c.h.b16 %v207
    %v1363 = vunpack.c.l.b16 %v208
    %v1364 = vunpack.c.h.b16 %v208
    %v1365 = vunpack.c.l.b16 %v209
    %v1366 = vunpack.c.h.b16 %v209
    %v1367 = vunpack.c.l.b16 %v210
    %v1368 = vunpack.c.h.b16 %v210
    %v1369 = vunpack.c.l.b16 %v211
    %v1370 = vunpack.c.h.b16 %v211
    %v1371 = vunpack.c.l.b16 %v212
    %v1372 = vunpack.c.h.b16 %v212
    %v1373 = vunpack.c.l.b16 %v213
    %v1374 = vunpack.c.h.b16 %v213
    %v1375 = vunpack.c.l.b16 %v214
    %v1376 = vunpack.c.h.b16 %v214
    %v1377 = vunpack.c.l.b16 %v215
    %v1378 = vunpack.c.h.b16 %v215
    %v1379 = vunpack.c.l.b16 %v216
    %v1380 = vunpack.c.h.b16 %v216
    %v1381 = vunpack.c.l.b16 %v217
    %v1382 = vunpack.c.h.b16 %v217
    %v1383 = vunpack.c.l.b16 %v218
    %v1384 = vunpack.c.h.b16 %v218
    %v1385 = vunpack.c.l.b16 %v219
    %v1386 = vunpack.c.h.b16 %v219
    %v1387 = vunpack.c.l.b16 %v220
    %v1388 = vunpack.c.h.b16 %v220
    %v1389 = vunpack.c.l.b16 %v221
    %v1390 = vunpack.c.h.b16 %v221
    %v1391 = vunpack.c.l.b16 %v222
    %v1392 = vunpack.c.h.b16 %v222
    %v1393 = vunpack.c.l.b16 %v223
    %v1394 = vunpack.c.h.b16 %v223
    %v1395 = vunpack.c.l.b16 %v224
    %v1396 = vunpack.c.h.b16 %v224
    %v1397 = vunpack.c.l.b16 %v225
    %v1398 = vunpack.c.h.b16 %v225
    %v1399 = vunpack.c.l.b16 %v226
    %v1400 = vunpack.c.h.b16 %v226
    %v1401 = vunpack.c.l.b16 %v227
    %v1402 = vunpack.c.h.b16 %v227
    %v1403 = vunpack.c.l.b16 %v228
    %v1404 = vunpack.c.h.b16 %v228
    %v1405 = vunpack.c.l.b16 %v229
    %v1406 = vunpack.c.h.b16 %v229
    %v1407 = vunpack.c.l.b16 %v230
    %v1408 = vunpack.c.h.b16 %v230
    %v1409 = vunpack.c.l.b16 %v231
    %v1410 = vunpack.c.h.b16 %v231
    %v1411 = vunpack.c.l.b16 %v232
    %v1412 = vunpack.c.h.b16 %v232
    %v1413 = vunpack.c.l.b16 %v233
    %v1414 = vunpack.c.h.b16 %v233
    %v1415 = vunpack.c.l.b16 %v234
    %v1416 = vunpack.c.h.b16 %v234
    %v1417 = vunpack.c.l.b16 %v235
    %v1418 = vunpack.c.h.b16 %v235
    %v1419 = vunpack.c.l.b16 %v236
    %v1420 = vunpack.c.h.b16 %v236
    %v1421 = vunpack.c.l.b16 %v237
    %v1422 = vunpack.c.h.b16 %v237
    %v1423 = vunpack.c.l.b16 %v238
    %v1424 = vunpack.c.h.b16 %v238
    %v1425 = vunpack.c.l.b16 %v239
    %v1426 = vunpack.c.h.b16 %v239
    %v1427 = vunpack.c.l.b16 %v240
    %v1428 = vunpack.c.h.b16 %v240
    %v1429 = vunpack.c.l.b16 %v241
    %v1430 = vunpack.c.h.b16 %v241
    %v1431 = vunpack.c.l.b16 %v242
    %v1432 = vunpack.c.h.b16 %v242
    %v1433 = vunpack.c.l.b16 %v243
    %v1434 = vunpack.c.h.b16 %v243
    %v1435 = vunpack.c.l.b16 %v244
    %v1436 = vunpack.c.h.b16 %v244
    %v1437 = vunpack.c.l.b16 %v245
    %v1438 = vunpack.c.h.b16 %v245
    %v1439 = vunpack.c.l.b16 %v246
    %v1440 = vunpack.c.h.b16 %v246
    %v1441 = vunpack.c.l.b16 %v247
    %v1442 = vunpack.c.h.b16 %v247
    %v1443 = vunpack.c.l.b16 %v248
    %v1444 = vunpack.c.h.b16 %v248
    %v1445 = vunpack.c.l.b16 %v249
    %v1446 = vunpack.c.h.b16 %v249
    %v1447 = vunpack.c.l.b16 %v250
    %v1448 = vunpack.c.h.b16 %v250
    %v1449 = vunpack.c.l.b16 %v251
    %v1450 = vunpack.c.h.b16 %v251
    %v1451 = vunpack.c.l.b16 %v252
    %v1452 = vunpack.c.h.b16 %v252
    %v1453 = vunpack.c.l.b16 %v253
    %v1454 = vunpack.c.h.b16 %v253
    %v1455 = vunpack.c.l.b16 %v254
    %v1456 = vunpack.c.h.b16 %v254
    %v1457 = vunpack.c.l.b16 %v255
    %v1458 = vunpack.c.h.b16 %v255
    %v1459 = vunpack.c.l.b16 %v256
    %v1460 = vunpack.c.h.b16 %v256
    %v1461 = vunpack.c.l.b16 %v257
    %v1462 = vunpack.c.h.b16 %v257
    %v1463 = vunpack.c.l.b16 %v258
    %v1464 = vunpack.c.h.b16 %v258
    %v1465 = vunpack.c.l.b16 %v259
    %v1466 = vunpack.c.h.b16 %v259
    %v1467 = vunpack.c.l.b16 %v260
    %v1468 = vunpack.c.h.b16 %v260
    %v1469 = vunpack.c.l.b16 %v261
    %v1470 = vunpack.c.h.b16 %v261
    %v1471 = vunpack.c.l.b16 %v262
    %v1472 = vunpack.c.h.b16 %v262
    %v1473 = vunpack.c.l.b16 %v263
    %v1474 = vunpack.c.h.b16 %v263
    %v1475 = vunpack.c.l.b16 %v264
    %v1476 = vunpack.c.h.b16 %v264
    %v1477 = vunpack.c.l.b16 %v265
    %v1478 = vunpack.c.h.b16 %v265
    %v1479 = vunpack.c.l.b16 %v266
    %v1480 = vunpack.c.h.b16 %v266
    %v1481 = vunpack.c.l.b16 %v267
    %v1482 = vunpack.c.h.b16 %v267
    %v1483 = vunpack.c.l.b16 %v268
    %v1484 = vunpack.c.h.b16 %v268
    %v1485 = vunpack.c.l.b16 %v269
    %v1486 = vunpack.c.h.b16 %v269
    %v1487 = vunpack.c.l.b16 %v270
    %v1488 = vunpack.c.h.b16 %v270
    %v1489 = vunpack.c.l.b16 %v271
    %v1490 = vunpack.c.h.b16 %v271
    %v1491 = vunpack.c.l.b16 %v272
    %v1492 = vunpack.c.h.b16 %v272
    %v1493 = vunpack.c.l.b16 %v273
    %v1494 = vunpack.c.h.b16 %v273
    %v1495 = vunpack.c.l.b16 %v274
    %v1496 = vunpack.c.h.b16 %v274
    %v1497 = vunpack.c.l.b16 %v275
    %v1498 = vunpack.c.h.b16 %v275
    %v1499 = vunpack.c.l.b16 %v276
    %v1500 = vunpack.c.h.b16 %v276
    %v1501 = vunpack.c.l.b16 %v277
    %v1502 = vunpack.c.h.b16 %v277
    %v1503 = vunpack.c.l.b16 %v278
    %v1504 = vunpack.c.h.b16 %v278
    %v1505 = vunpack.c.l.b16 %v279
    %v1506 = vunpack.c.h.b16 %v279
    %v1507 = vunpack.c.l.b16 %v280
    %v1508 = vunpack.c.h.b16 %v280
    %v1509 = vunpack.c.l.b16 %v281
    %v1510 = vunpack.c.h.b16 %v281
    %v1511 = vunpack.c.l.b16 %v282
    %v1512 = vunpack.c.h.b16 %v282
    %v1513 = vunpack.c.l.b16 %v283
    %v1514 = vunpack.c.h.b16 %v283
    %v1515 = vunpack.c.l.b16 %v284
    %v1516 = vunpack.c.h.b16 %v284
    %v1517 = vunpack.c.l.b16 %v285
    %v1518 = vunpack.c.h.b16 %v285
    %v1519 = vunpack.c.l.b16 %v286
    %v1520 = vunpack.c.h.b16 %v286
    %v1521 = vunpack.c.l.b16 %v287
    %v1522 = vunpack.c.h.b16 %v287
    %v1523 = vunpack.c.l.b16 %v288
    %v1524 = vunpack.c.h.b16 %v288
    %v1525 = vunpack.c.l.b16 %v289
    %v1526 = vunpack.c.h.b16 %v289
    %v1527 = vunpack.c.l.b16 %v290
    %v1528 = vunpack.c.h.b16 %v290
    %v1529 = vunpack.c.l.b16 %v291
    %v1530 = vunpack.c.h.b16 %v291
    %v1531 = vunpack.c.l.b16 %v292
    %v1532 = vunpack.c.h.b16 %v292
    %v1533 = vunpack.c.l.b16 %v293
    %v1534 = vunpack.c.h.b16 %v293
    %v1535 = vunpack.c.l.b16 %v294
    %v1536 = vunpack.c.h.b16 %v294
    %v1537 = vunpack.c.l.b16 %v295
    %v1538 = vunpack.c.h.b16 %v295
    %v1539 = vunpack.c.l.b16 %v296
    %v1540 = vunpack.c.h.b16 %v296
    %v1541 = vunpack.c.l.b16 %v297
    %v1542 = vunpack.c.h.b16 %v297
    %v1543 = vunpack.c.l.b16 %v298
    %v1544 = vunpack.c.h.b16 %v298
    %v1545 = vunpack.c.l.b16 %v299
    %v1546 = vunpack.c.h.b16 %v299
    %v1547 = vunpack.c.l.b16 %v300
    %v1548 = vunpack.c.h.b16 %v300
    %v1549 = vunpack.c.l.b16 %v301
    %v1550 = vunpack.c.h.b16 %v301
    %v1551 = vunpack.c.l.b16 %v302
    %v1552 = vunpack.c.h.b16 %v302
    %v1553 = vunpack.c.l.b16 %v303
    %v1554 = vunpack.c.h.b16 %v303
    %v1555 = vunpack.c.l.b16 %v304
    %v1556 = vunpack.c.h.b16 %v304
    %v1557 = vunpack.c.l.b16 %v305
    %v1558 = vunpack.c.h.b16 %v305
    %v1559 = vunpack.c.l.b16 %v306
    %v1560 = vunpack.c.h.b16 %v306
    %v1561 = vunpack.c.l.b16 %v307
    %v1562 = vunpack.c.h.b16 %v307
    %v1563 = vunpack.c.l.b16 %v308
    %v1564 = vunpack.c.h.b16 %v308
    %v1565 = vunpack.c.l.b16 %v309
    %v1566 = vunpack.c.h.b16 %v309
    %v1567 = vunpack.c.l.b16 %v310
    %v1568 = vunpack.c.h.b16 %v310
    %v1569 = vunpack.c.l.b16 %v311
    %v1570 = vunpack.c.h.b16 %v311
    %v1571 = vunpack.c.l.b16 %v312
    %v1572 = vunpack.c.h.b16 %v312
    %v1573 = vunpack.c.l.b16 %v313
    %v1574 = vunpack.c.h.b16 %v313
    %v1575 = vunpack.c.l.b16 %v314
    %v1576 = vunpack.c.h.b16 %v314
    %v1577 = vunpack.c.l.b16 %v315
    %v1578 = vunpack.c.h.b16 %v315
    %v1579 = vunpack.c.l.b16 %v316
    %v1580 = vunpack.c.h.b16 %v316
    %v1581 = vunpack.c.l.b16 %v317
    %v1582 = vunpack.c.h.b16 %v317
    %v1583 = vunpack.c.l.b16 %v318
    %v1584 = vunpack.c.h.b16 %v318
    %v1585 = vunpack.c.l.b16 %v319
    %v1586 = vunpack.c.h.b16 %v319
    %v1587 = vunpack.c.l.b16 %v320
    %v1588 = vunpack.c.h.b16 %v320
    %v1589 = vunpack.c.l.b16 %v321
    %v1590 = vunpack.c.h.b16 %v321
    %v1591 = vunpack.c.l.b16 %v322
    %v1592 = vunpack.c.h.b16 %v322
    %v1593 = vunpack.c.l.b16 %v323
    %v1594 = vunpack.c.h.b16 %v323
    %v1595 = vunpack.c.l.b16 %v324
    %v1596 = vunpack.c.h.b16 %v324
    %v1597 = vunpack.c.l.b16 %v325
    %v1598 = vunpack.c.h.b16 %v325
    %v1599 = vunpack.c.l.b16 %v326
    %v1600 = vunpack.c.h.b16 %v326
    %v1601 = vunpack.c.l.b16 %v327
    %v1602 = vunpack.c.h.b16 %v327
    %v1603 = vunpack.c.l.b16 %v328
    %v1604 = vunpack.c.h.b16 %v328
    %v1605 = vunpack.c.l.b16 %v329
    %v1606 = vunpack.c.h.b16 %v329
    %v1607 = vunpack.c.l.b16 %v330
    %v1608 = vunpack.c.h.b16 %v330
    %v1609 = vunpack.c.l.b16 %v331
    %v1610 = vunpack.c.h.b16 %v331
    %v1611 = vunpack.c.l.b16 %v332
    %v1612 = vunpack.c.h.b16 %v332
    %v1613 = vunpack.c.l.b16 %v333
    %v1614 = vunpack.c.h.b16 %v333
    %v1615 = vunpack.c.l.b16 %v334
    %v1616 = vunpack.c.h.b16 %v334
    %v1617 = vunpack.c.l.b16 %v335
    %v1618 = vunpack.c.h.b16 %v335
    %v1619 = vunpack.c.l.b16 %v336
    %v1620 = vunpack.c.h.b16 %v336
    %v1621 = vunpack.c.l.b16 %v337
    %v1622 = vunpack.c.h.b16 %v337
    %v1623 = vunpack.c.l.b16 %v338
    %v1624 = vunpack.c.h.b16 %v338
    %v1625 = vunpack.c.l.b16 %v339
    %v1626 = vunpack.c.h.b16 %v339
    %v1627 = vunpack.c.l.b16 %v340
    %v1628 = vunpack.c.h.b16 %v340
    %v1629 = vunpack.c.l.b16 %v341
    %v1630 = vunpack.c.h.b16 %v341
    %v1631 = vunpack.c.l.b16 %v342
    %v1632 = vunpack.c.h.b16 %v342
    %v1633 = vunpack.c.l.b16 %v343
    %v1634 = vunpack.c.h.b16 %v343
    %v1635 = vunpack.c.l.b16 %v344
    %v1636 = vunpack.c.h.b16 %v344
    %v1637 = vunpack.c.l.b16 %v345
    %v1638 = vunpack.c.h.b16 %v345
    %v1639 = vunpack.c.l.b16 %v346
    %v1640 = vunpack.c.h.b16 %v346
    %v1641 = vunpack.c.l.b16 %v347
    %v1642 = vunpack.c.h.b16 %v347
    %v1643 = vunpack.c.l.b16 %v348
    %v1644 = vunpack.c.h.b16 %v348
    %v1645 = vunpack.c.l.b16 %v349
    %v1646 = vunpack.c.h.b16 %v349
    %v1647 = vunpack.c.l.b16 %v350
    %v1648 = vunpack.c.h.b16 %v350
    %v1649 = vunpack.c.l.b16 %v351
    %v1650 = vunpack.c.h.b16 %v351
    %v1651 = vunpack.c.l.b16 %v352
    %v1652 = vunpack.c.h.b16 %v352
    %v1653 = vunpack.c.l.b16 %v353
    %v1654 = vunpack.c.h.b16 %v353
    %v1655 = vunpack.c.l.b16 %v354
    %v1656 = vunpack.c.h.b16 %v354
    %v1657 = vunpack.c.l.b16 %v355
    %v1658 = vunpack.c.h.b16 %v355
    %v1659 = vunpack.c.l.b16 %v356
    %v1660 = vunpack.c.h.b16 %v356
    %v1661 = vunpack.c.l.b16 %v357
    %v1662 = vunpack.c.h.b16 %v357
    %v1663 = vunpack.c.l.b16 %v358
    %v1664 = vunpack.c.h.b16 %v358
    %v1665 = vunpack.c.l.b16 %v359
    %v1666 = vunpack.c.h.b16 %v359
    %v1667 = vunpack.c.l.b16 %v360
    %v1668 = vunpack.c.h.b16 %v360
    %v1669 = vunpack.c.l.b16 %v361
    %v1670 = vunpack.c.h.b16 %v361
    %v1671 = vunpack.c.l.b16 %v362
    %v1672 = vunpack.c.h.b16 %v362
    %v1673 = vunpack.c.l.b16 %v363
    %v1674 = vunpack.c.h.b16 %v363
    %v1675 = vunpack.c.l.b16 %v364
    %v1676 = vunpack.c.h.b16 %v364
    %v1677 = vunpack.c.l.b16 %v365
    %v1678 = vunpack.c.h.b16 %v365
    %v1679 = vunpack.c.l.b16 %v366
    %v1680 = vunpack.c.h.b16 %v366
    %v1681 = vunpack.c.l.b16 %v367
    %v1682 = vunpack.c.h.b16 %v367
    %v1683 = vunpack.c.l.b16 %v368
    %v1684 = vunpack.c.h.b16 %v368
    %v1685 = vunpack.c.l.b16 %v369
    %v1686 = vunpack.c.h.b16 %v369
    %v1687 = vunpack.c.l.b16 %v370
    %v1688 = vunpack.c.h.b16 %v370
    %v1689 = vunpack.c.l.b16 %v371
    %v1690 = vunpack.c.h.b16 %v371
    %v1691 = vunpack.c.l.b16 %v372
    %v1692 = vunpack.c.h.b16 %v372
    %v1693 = vunpack.c.l.b16 %v373
    %v1694 = vunpack.c.h.b16 %v373
    %v1695 = vunpack.c.l.b16 %v374
    %v1696 = vunpack.c.h.b16 %v374
    %v1697 = vunpack.c.l.b16 %v375
    %v1698 = vunpack.c.h.b16 %v375
    %v1699 = vunpack.c.l.b16 %v376
    %v1700 = vunpack.c.h.b16 %v376
    %v1701 = vunpack.c.l.b16 %v377
    %v1702 = vunpack.c.h.b16 %v377
    %v1703 = vunpack.c.l.b16 %v378
    %v1704 = vunpack.c.h.b16 %v378
    %v1705 = vunpack.c.l.b16 %v379
    %v1706 = vunpack.c.h.b16 %v379
    %v1707 = vunpack.c.l.b16 %v380
    %v1708 = vunpack.c.h.b16 %v380
    %v1709 = vunpack.c.l.b16 %v381
    %v1710 = vunpack.c.h.b16 %v381
    %v1711 = vunpack.c.l.b16 %v382
    %v1712 = vunpack.c.h.b16 %v382
    %v1713 = vunpack.c.l.b16 %v383
    %v1714 = vunpack.c.h.b16 %v383
    %v1715 = vunpack.c.l.b16 %v384
    %v1716 = vunpack.c.h.b16 %v384
    %v1717 = vunpack.c.l.b16 %v385
    %v1718 = vunpack.c.h.b16 %v385
    %v1719 = vunpack.c.l.b16 %v386
    %v1720 = vunpack.c.h.b16 %v386
    %v1721 = vunpack.c.l.b16 %v387
    %v1722 = vunpack.c.h.b16 %v387
    %v1723 = vunpack.c.l.b16 %v388
    %v1724 = vunpack.c.h.b16 %v388
    %v1725 = vunpack.c.l.b16 %v389
    %v1726 = vunpack.c.h.b16 %v389
    %v1727 = vunpack.c.l.b16 %v390
    %v1728 = vunpack.c.h.b16 %v390
    %v1729 = vunpack.c.l.b16 %v391
    %v1730 = vunpack.c.h.b16 %v391
    %v1731 = vunpack.c.l.b16 %v392
    %v1732 = vunpack.c.h.b16 %v392
    %v1733 = vunpack.c.l.b16 %v393
    %v1734 = vunpack.c.h.b16 %v393
    %v1735 = vunpack.c.l.b16 %v394
    %v1736 = vunpack.c.h.b16 %v394
    %v1737 = vunpack.c.l.b16 %v395
    %v1738 = vunpack.c.h.b16 %v395
    %v1739 = vunpack.c.l.b16 %v396
    %v1740 = vunpack.c.h.b16 %v396
    %v1741 = vunpack.c.l.b16 %v397
    %v1742 = vunpack.c.h.b16 %v397
    %v1743 = vunpack.c.l.b16 %v398
    %v1744 = vunpack.c.h.b16 %v398
    %v1745 = vunpack.c.l.b16 %v399
    %v1746 = vunpack.c.h.b16 %v399
    %v1747 = vunpack.c.l.b16 %v400
    %v1748 = vunpack.c.h.b16 %v400
    %v1749 = vunpack.c.l.b16 %v401
    %v1750 = vunpack.c.h.b16 %v401
    %v1751 = vunpack.c.l.b16 %v402
    %v1752 = vunpack.c.h.b16 %v402
    %v1753 = vunpack.c.l.b16 %v403
    %v1754 = vunpack.c.h.b16 %v403
    %v1755 = vunpack.c.l.b16 %v404
    %v1756 = vunpack.c.h.b16 %v404
    %v1757 = vunpack.c.l.b16 %v405
    %v1758 = vunpack.c.h.b16 %v405
    %v1759 = vunpack.c.l.b16 %v406
    %v1760 = vunpack.c.h.b16 %v406
    %v1761 = vunpack.c.l.b16 %v407
    %v1762 = vunpack.c.h.b16 %v407
    %v1763 = vunpack.c.l.b16 %v408
    %v1764 = vunpack.c.h.b16 %v408
    %v1765 = vunpack.c.l.b16 %v409
    %v1766 = vunpack.c.h.b16 %v409
    %v1767 = vunpack.c.l.b16 %v410
    %v1768 = vunpack.c.h.b16 %v410
    %v1769 = vunpack.c.l.b16 %v411
    %v1770 = vunpack.c.h.b16 %v411
    %v1771 = vunpack.c.l.b16 %v412
    %v1772 = vunpack.c.h.b16 %v412
    %v1773 = vunpack.c.l.b16 %v413
    %v1774 = vunpack.c.h.b16 %v413
    %v1775 = vunpack.c.l.b16 %v414
    %v1776 = vunpack.c.h.b16 %v414
    %v1777 = vunpack.c.l.b16 %v415
    %v1778 = vunpack.c.h.b16 %v415
    %v1779 = vunpack.c.l.b16 %v416
    %v1780 = vunpack.c.h.b16 %v416
    %v1781 = vunpack.c.l.b16 %v417
    %v1782 = vunpack.c.h.b16 %v417
    %v1783 = vunpack.c.l.b16 %v418
    %v1784 = vunpack.c.h.b16 %v418
    %v1785 = vunpack.c.l.b16 %v419
    %v1786 = vunpack.c.h.b16 %v419
    %v1787 = vunpack.c.l.b16 %v420
    %v1788 = vunpack.c.h.b16 %v420
    %v1789 = vunpack.c.l.b16 %v421
    %v1790 = vunpack.c.h.b16 %v421
    %v1791 = vunpack.c.l.b16 %v422
    %v1792 = vunpack.c.h.b16 %v422
    %v1793 = vunpack.c.l.b16 %v423
    %v1794 = vunpack.c.h.b16 %v423
    %v1795 = vunpack.c.l.b16 %v424
    %v1796 = vunpack.c.h.b16 %v424
    %v1797 = vunpack.c.l.b16 %v425
    %v1798 = vunpack.c.h.b16 %v425
    %v1799 = vunpack.c.l.b16 %v426
    %v1800 = vunpack.c.h.b16 %v426
    %v1801 = vunpack.c.l.b16 %v427
    %v1802 = vunpack.c.h.b16 %v427
    %v1803 = vunpack.c.l.b16 %v428
    %v1804 = vunpack.c.h.b16 %v428
    %v1805 = vunpack.c.l.b16 %v429
    %v1806 = vunpack.c.h.b16 %v429
    %v1807 = vunpack.c.l.b16 %v430
    %v1808 = vunpack.c.h.b16 %v430
    %v1809 = vunpack.c.l.b16 %v431
    %v1810 = vunpack.c.h.b16 %v431
    %v1811 = vunpack.c.l.b16 %v432
    %v1812 = vunpack.c.h.b16 %v432
    %v1813 = vunpack.c.l.b16 %v433
    %v1814 = vunpack.c.h.b16 %v433
    %v1815 = vunpack.c.l.b16 %v434
    %v1816 = vunpack.c.h.b16 %v434
    %v1817 = vunpack.c.l.b16 %v435
    %v1818 = vunpack.c.h.b16 %v435
    %v1819 = vunpack.c.l.b16 %v436
    %v1820 = vunpack.c.h.b16 %v436
    %v1821 = vunpack.c.l.b16 %v437
    %v1822 = vunpack.c.h.b16 %v437
    %v1823 = vunpack.c.l.b16 %v438
    %v1824 = vunpack.c.h.b16 %v438
    %v1825 = vunpack.c.l.b16 %v439
    %v1826 = vunpack.c.h.b16 %v439
    %v1827 = vunpack.c.l.b16 %v440
    %v1828 = vunpack.c.h.b16 %v440
    %v1829 = vunpack.c.l.b16 %v441
    %v1830 = vunpack.c.h.b16 %v441
    %v1831 = vunpack.c.l.b16 %v442
    %v1832 = vunpack.c.h.b16 %v442
    %v1833 = vunpack.c.l.b16 %v443
    %v1834 = vunpack.c.h.b16 %v443
    %v1835 = vunpack.c.l.b16 %v444
    %v1836 = vunpack.c.h.b16 %v444
    %v1837 = vunpack.c.l.b16 %v445
    %v1838 = vunpack.c.h.b16 %v445
    %v1839 = vunpack.c.l.b16 %v446
    %v1840 = vunpack.c.h.b16 %v446
    %v1841 = vunpack.c.l.b16 %v447
    %v1842 = vunpack.c.h.b16 %v447
    %v1843 = vunpack.c.l.b16 %v448
    %v1844 = vunpack.c.h.b16 %v448
    %v1845 = vunpack.c.l.b16 %v449
    %v1846 = vunpack.c.h.b16 %v449
    %v1847 = vunpack.c.l.b16 %v450
    %v1848 = vunpack.c.h.b16 %v450
    %v1849 = vunpack.c.l.b16 %v451
    %v1850 = vunpack.c.h.b16 %v451
    %v1851 = vunpack.c.l.b16 %v452
    %v1852 = vunpack.c.h.b16 %v452
    %v1853 = vunpack.c.l.b16 %v453
    %v1854 = vunpack.c.h.b16 %v453
    %v1855 = vunpack.c.l.b16 %v454
    %v1856 = vunpack.c.h.b16 %v454
    %v1857 = vunpack.c.l.b16 %v455
    %v1858 = vunpack.c.h.b16 %v455
    %v1859 = vunpack.c.l.b16 %v456
    %v1860 = vunpack.c.h.b16 %v456
    %v1861 = vunpack.c.l.b16 %v457
    %v1862 = vunpack.c.h.b16 %v457
    %v1863 = vunpack.c.l.b16 %v458
    %v1864 = vunpack.c.h.b16 %v458
    %v1865 = vunpack.c.l.b16 %v459
    %v1866 = vunpack.c.h.b16 %v459
    %v1867 = vunpack.c.l.b16 %v460
    %v1868 = vunpack.c.h.b16 %v460
    %v1869 = vunpack.c.l.b16 %v461
    %v1870 = vunpack.c.h.b16 %v461
    %v1871 = vunpack.c.l.b16 %v462
    %v1872 = vunpack.c.h.b16 %v462
    %v1873 = vunpack.c.l.b16 %v463
    %v1874 = vunpack.c.h.b16 %v463
    %v1875 = vunpack.c.l.b16 %v464
    %v1876 = vunpack.c.h.b16 %v464
    %v1877 = vunpack.c.l.b16 %v465
    %v1878 = vunpack.c.h.b16 %v465
    %v1879 = vunpack.c.l.b16 %v466
    %v1880 = vunpack.c.h.b16 %v466
    %v1881 = vunpack.c.l.b16 %v467
    %v1882 = vunpack.c.h.b16 %v467
    %v1883 = vunpack.c.l.b16 %v468
    %v1884 = vunpack.c.h.b16 %v468
    %v1885 = vunpack.c.l.b16 %v469
    %v1886 = vunpack.c.h.b16 %v469
    %v1887 = vunpack.c.l.b16 %v470
    %v1888 = vunpack.c.h.b16 %v470
    %v1889 = vunpack.c.l.b16 %v471
    %v1890 = vunpack.c.h.b16 %v471
    %v1891 = vunpack.c.l.b16 %v472
    %v1892 = vunpack.c.h.b16 %v472
    %v1893 = vunpack.c.l.b16 %v473
    %v1894 = vunpack.c.h.b16 %v473
    %v1895 = vunpack.c.l.b16 %v474
    %v1896 = vunpack.c.h.b16 %v474
    %v1897 = vunpack.c.l.b16 %v475
    %v1898 = vunpack.c.h.b16 %v475
    %v1899 = vunpack.c.l.b16 %v476
    %v1900 = vunpack.c.h.b16 %v476
    %v1901 = vunpack.c.l.b16 %v477
    %v1902 = vunpack.c.h.b16 %v477
    %v1903 = vunpack.c.l.b16 %v478
    %v1904 = vunpack.c.h.b16 %v478
    %v1905 = vunpack.c.l.b16 %v479
    %v1906 = vunpack.c.h.b16 %v479
    %v1907 = vunpack.c.l.b16 %v480
    %v1908 = vunpack.c.h.b16 %v480
    %v1909 = vunpack.c.l.b16 %v481
    %v1910 = vunpack.c.h.b16 %v481
    %v1911 = vunpack.c.l.b16 %v482
    %v1912 = vunpack.c.h.b16 %v482
    %v1913 = vunpack.c.l.b16 %v483
    %v1914 = vunpack.c.h.b16 %v483
    %v1915 = vunpack.c.l.b16 %v484
    %v1916 = vunpack.c.h.b16 %v484
    %v1917 = vunpack.c.l.b16 %v485
    %v1918 = vunpack.c.h.b16 %v485
    %v1919 = vunpack.c.l.b16 %v486
    %v1920 = vunpack.c.h.b16 %v486
    %v1921 = vunpack.c.l.b16 %v487
    %v1922 = vunpack.c.h.b16 %v487
    %v1923 = vunpack.c.l.b16 %v488
    %v1924 = vunpack.c.h.b16 %v488
    %v1925 = vunpack.c.l.b16 %v489
    %v1926 = vunpack.c.h.b16 %v489
    %v1927 = vunpack.c.l.b16 %v490
    %v1928 = vunpack.c.h.b16 %v490
    %v1929 = vunpack.c.l.b16 %v491
    %v1930 = vunpack.c.h.b16 %v491
    %v1931 = vunpack.c.l.b16 %v492
    %v1932 = vunpack.c.h.b16 %v492
    %v1933 = vunpack.c.l.b16 %v493
    %v1934 = vunpack.c.h.b16 %v493
    %v1935 = vunpack.c.l.b16 %v494
    %v1936 = vunpack.c.h.b16 %v494
    %v1937 = vunpack.c.l.b16 %v495
    %v1938 = vunpack.c.h.b16 %v495
    %v1939 = vunpack.c.l.b16 %v496
    %v1940 = vunpack.c.h.b16 %v496
    %v1941 = vunpack.c.l.b16 %v497
    %v1942 = vunpack.c.h.b16 %v497
    %v1943 = vunpack.c.l.b16 %v498
    %v1944 = vunpack.c.h.b16 %v498
    %v1945 = vunpack.c.l.b16 %v499
    %v1946 = vunpack.c.h.b16 %v499
    %v1947 = vunpack.c.l.b16 %v500
    %v1948 = vunpack.c.h.b16 %v500
    %v1949 = vunpack.c.l.b16 %v501
    %v1950 = vunpack.c.h.b16 %v501
    %v1951 = vunpack.c.l.b16 %v502
    %v1952 = vunpack.c.h.b16 %v502
    %v1953 = vunpack.c.l.b16 %v503
    %v1954 = vunpack.c.h.b16 %v503
    %v1955 = vunpack.c.l.b16 %v504
    %v1956 = vunpack.c.h.b16 %v504
    %v1957 = vunpack.c.l.b16 %v505
    %v1958 = vunpack.c.h.b16 %v505
    %v1959 = vunpack.c.l.b16 %v506
    %v1960 = vunpack.c.h.b16 %v506
    %v1961 = vunpack.c.l.b16 %v507
    %v1962 = vunpack.c.h.b16 %v507
    %v1963 = vunpack.c.l.b16 %v508
    %v1964 = vunpack.c.h.b16 %v508
    %v1965 = vunpack.c.l.b16 %v509
    %v1966 = vunpack.c.h.b16 %v509
    %v1967 = vunpack.c.l.b16 %v510
    %v1968 = vunpack.c.h.b16 %v510
    %v1969 = vunpack.c.l.b16 %v511
    %v1970 = vunpack.c.h.b16 %v511
    %v1971 = vunpack.c.l.b16 %v512
    %v1972 = vunpack.c.h.b16 %v512
    %v1973 = vunpack.c.l.b16 %v513
    %v1974 = vunpack.c.h.b16 %v513
    %v1975 = vunpack.c.l.b16 %v514
    %v1976 = vunpack.c.h.b16 %v514
    %v1977 = vunpack.c.l.b16 %v515
    %v1978 = vunpack.c.h.b16 %v515
    %v1979 = vunpack.c.l.b16 %v516
    %v1980 = vunpack.c.h.b16 %v516
    %v1981 = vunpack.c.l.b16 %v517
    %v1982 = vunpack.c.h.b16 %v517
    %v1983 = vunpack.c.l.b16 %v518
    %v1984 = vunpack.c.h.b16 %v518
    %v1985 = vunpack.c.l.b16 %v519
    %v1986 = vunpack.c.h.b16 %v519
    %v1987 = vunpack.c.l.b16 %v520
    %v1988 = vunpack.c.h.b16 %v520
    %v1989 = vunpack.c.l.b16 %v521
    %v1990 = vunpack.c.h.b16 %v521
    %v1991 = vunpack.c.l.b16 %v522
    %v1992 = vunpack.c.h.b16 %v522
    %v1993 = vunpack.c.l.b16 %v523
    %v1994 = vunpack.c.h.b16 %v523
    %v1995 = vunpack.c.l.b16 %v524
    %v1996 = vunpack.c.h.b16 %v524
    %v1997 = vunpack.c.l.b16 %v525
    %v1998 = vunpack.c.h.b16 %v525
    %v1999 = vunpack.c.l.b16 %v526
    %v2000 = vunpack.c.h.b16 %v526
    %v2001 = vunpack.c.l.b16 %v527
    %v2002 = vunpack.c.h.b16 %v527
    %v2003 = vunpack.c.l.b16 %v528
    %v2004 = vunpack.c.h.b16 %v528
    %v2005 = vunpack.c.l.b16 %v529
    %v2006 = vunpack.c.h.b16 %v529
    %v2007 = vunpack.c.l.b16 %v530
    %v2008 = vunpack.c.h.b16 %v530
    %v2009 = vunpack.c.l.b16 %v531
    %v2010 = vunpack.c.h.b16 %v531
    %v2011 = vunpack.c.l.b16 %v532
    %v2012 = vunpack.c.h.b16 %v532
    %v2013 = vunpack.c.l.b16 %v533
    %v2014 = vunpack.c.h.b16 %v533
    %v2015 = vunpack.c.l.b16 %v534
    %v2016 = vunpack.c.h.b16 %v534
    %v2017 = vunpack.c.l.b16 %v535
    %v2018 = vunpack.c.h.b16 %v535
    %v2019 = vunpack.c.l.b16 %v536
    %v2020 = vunpack.c.h.b16 %v536
    %v2021 = vunpack.c.l.b16 %v537
    %v2022 = vunpack.c.h.b16 %v537
    %v2023 = vunpack.c.l.b16 %v538
    %v2024 = vunpack.c.h.b16 %v538
    %v2025 = vunpack.c.l.b16 %v539
    %v2026 = vunpack.c.h.b16 %v539
    %v2027 = vunpack.c.l.b16 %v540
    %v2028 = vunpack.c.h.b16 %v540
    %v2029 = vunpack.c.l.b16 %v541
    %v2030 = vunpack.c.h.b16 %v541
    %v2031 = vunpack.c.l.b16 %v542
    %v2032 = vunpack.c.h.b16 %v542
    %v2033 = vunpack.c.l.b16 %v543
    %v2034 = vunpack.c.h.b16 %v543
    %v2035 = vunpack.c.l.b16 %v544
    %v2036 = vunpack.c.h.b16 %v544
    %v2037 = vunpack.c.l.b16 %v545
    %v2038 = vunpack.c.h.b16 %v545
    %v2039 = vunpack.c.l.b16 %v546
    %v2040 = vunpack.c.h.b16 %v546
    %v2041 = vunpack.c.l.b16 %v547
    %v2042 = vunpack.c.h.b16 %v547
    %v2043 = vunpack.c.l.b16 %v548
    %v2044 = vunpack.c.h.b16 %v548
    %v2045 = vunpack.c.l.b16 %v549
    %v2046 = vunpack.c.h.b16 %v549
    %v2047 = vunpack.c.l.b16 %v550
    %v2048 = vunpack.c.h.b16 %v550
    %v2049 = vunpack.c.l.b16 %v551
    %v2050 = vunpack.c.h.b16 %v551
    %v2051 = vunpack.c.l.b16 %v552
    %v2052 = vunpack.c.h.b16 %v552
    %v2053 = vunpack.c.l.b16 %v553
    %v2054 = vunpack.c.h.b16 %v553
    %v2055 = vunpack.c.l.b16 %v554
    %v2056 = vunpack.c.h.b16 %v554
    %v2057 = vunpack.c.l.b16 %v555
    %v2058 = vunpack.c.h.b16 %v555
    %v2059 = vunpack.c.l.b16 %v556
    %v2060 = vunpack.c.h.b16 %v556
    %v2061 = vunpack.c.l.b16 %v557
    %v2062 = vunpack.c.h.b16 %v557
    %v2063 = vunpack.c.l.b16 %v558
    %v2064 = vunpack.c.h.b16 %v558
    %v2065 = vunpack.c.l.b16 %v559
    %v2066 = vunpack.c.h.b16 %v559
    %v2067 = vunpack.c.l.b16 %v560
    %v2068 = vunpack.c.h.b16 %v560
    %v2069 = vunpack.c.l.b16 %v561
    %v2070 = vunpack.c.h.b16 %v561
    %v2071 = vunpack.c.l.b16 %v562
    %v2072 = vunpack.c.h.b16 %v562
    %v2073 = vunpack.c.l.b16 %v563
    %v2074 = vunpack.c.h.b16 %v563
    %v2075 = vunpack.c.l.b16 %v564
    %v2076 = vunpack.c.h.b16 %v564
    %v2077 = vunpack.c.l.b16 %v565
    %v2078 = vunpack.c.h.b16 %v565
    %v2079 = vunpack.c.l.b16 %v566
    %v2080 = vunpack.c.h.b16 %v566
    %v2081 = vunpack.c.l.b16 %v567
    %v2082 = vunpack.c.h.b16 %v567
    %v2083 = vunpack.c.l.b16 %v568
    %v2084 = vunpack.c.h.b16 %v568
    %v2085 = vunpack.c.l.b16 %v569
    %v2086 = vunpack.c.h.b16 %v569
    %v2087 = vunpack.c.l.b16 %v570
    %v2088 = vunpack.c.h.b16 %v570
    %v2089 = vunpack.c.l.b16 %v571
    %v2090 = vunpack.c.h.b16 %v571
    %v2091 = vunpack.c.l.b16 %v572
    %v2092 = vunpack.c.h.b16 %v572
    %v2093 = vunpack.c.l.b16 %v573
    %v2094 = vunpack.c.h.b16 %v573
    %v2095 = vunpack.c.l.b16 %v574
    %v2096 = vunpack.c.h.b16 %v574
    %v2097 = vunpack.c.l.b16 %v575
    %v2098 = vunpack.c.h.b16 %v575
    %v2099 = vunpack.c.l.b16 %v576
    %v2100 = vunpack.c.h.b16 %v576
    %v2101 = vunpack.c.l.b16 %v577
    %v2102 = vunpack.c.h.b16 %v577
    %v2103 = vunpack.c.l.b16 %v578
    %v2104 = vunpack.c.h.b16 %v578
    %v2105 = vunpack.c.l.b16 %v579
    %v2106 = vunpack.c.h.b16 %v579
    %v2107 = vunpack.c.l.b16 %v580
    %v2108 = vunpack.c.h.b16 %v580
    %v2109 = vunpack.c.l.b16 %v581
    %v2110 = vunpack.c.h.b16 %v581
    %v2111 = vunpack.c.l.b16 %v582
    %v2112 = vunpack.c.h.b16 %v582
    %v2113 = vunpack.c.l.b16 %v583
    %v2114 = vunpack.c.h.b16 %v583
    %v2115 = vunpack.c.l.b16 %v584
    %v2116 = vunpack.c.h.b16 %v584
    %v2117 = vunpack.c.l.b16 %v585
    %v2118 = vunpack.c.h.b16 %v585
    %v2119 = vunpack.c.l.b16 %v586
    %v2120 = vunpack.c.h.b16 %v586
    %v2121 = vunpack.c.l.b16 %v587
    %v2122 = vunpack.c.h.b16 %v587
    %v2123 = vunpack.c.l.b16 %v588
    %v2124 = vunpack.c.h.b16 %v588
    %v2125 = vunpack.c.l.b16 %v589
    %v2126 = vunpack.c.h.b16 %v589
    %v2127 = vunpack.c.l.b16 %v590
    %v2128 = vunpack.c.h.b16 %v590
    %v2129 = vunpack.c.l.b16 %v591
    %v2130 = vunpack.c.h.b16 %v591
    %v2131 = vunpack.c.l.b16 %v592
    %v2132 = vunpack.c.h.b16 %v592
    %v2133 = vunpack.c.l.b16 %v593
    %v2134 = vunpack.c.h.b16 %v593
    %v2135 = vunpack.c.l.b16 %v594
    %v2136 = vunpack.c.h.b16 %v594
    %v2137 = vunpack.c.l.b16 %v595
    %v2138 = vunpack.c.h.b16 %v595
    %v2139 = vunpack.c.l.b16 %v596
    %v2140 = vunpack.c.h.b16 %v596
    %v2141 = vunpack.c.l.b16 %v597
    %v2142 = vunpack.c.h.b16 %v597
    %v2143 = vunpack.c.l.b16 %v598
    %v2144 = vunpack.c.h.b16 %v598
    %v2145 = vunpack.c.l.b16 %v599
    %v2146 = vunpack.c.h.b16 %v599
    %v2147 = vunpack.c.l.b16 %v600
    %v2148 = vunpack.c.h.b16 %v600
    %v2149 = vunpack.c.l.b16 %v601
    %v2150 = vunpack.c.h.b16 %v601
    %v2151 = vunpack.c.l.b16 %v602
    %v2152 = vunpack.c.h.b16 %v602
    %v2153 = vunpack.c.l.b16 %v603
    %v2154 = vunpack.c.h.b16 %v603
    %v2155 = vunpack.c.l.b16 %v604
    %v2156 = vunpack.c.h.b16 %v604
    %v2157 = vunpack.c.l.b16 %v605
    %v2158 = vunpack.c.h.b16 %v605
    %v2159 = vunpack.c.l.b16 %v606
    %v2160 = vunpack.c.h.b16 %v606
    %v2161 = vpack.c.b16 %v1145, %v1137
    %v2162 = vpack.c.b16 %v1146, %v1138
    %v2163 = vpack.c.b16 %v1147, %v1139
    %v2164 = vpack.c.b16 %v1148, %v1140
    %v2165 = vpack.c.b16 %v1149, %v1141
    %v2166 = vpack.c.b16 %v1150, %v1142
    %v2167 = vpack.c.b16 %v1151, %v1143
    %v2168 = vpack.c.b16 %v1152, %v1144
    %v2169 = vpack.c.b16 %v1161, %v1153
    %v2170 = vpack.c.b16 %v1162, %v1154
    %v2171 = vpack.c.b16 %v1163, %v1155
    %v2172 = vpack.c.b16 %v1164, %v1156
    %v2173 = vpack.c.b16 %v1165, %v1157
    %v2174 = vpack.c.b16 %v1166, %v1158
    %v2175 = vpack.c.b16 %v1167, %v1159
    %v2176 = vpack.c.b16 %v1168, %v1160
    %v2177 = vpack.c.b16 %v1177, %v1169
    %v2178 = vpack.c.b16 %v1178, %v1170
    %v2179 = vpack.c.b16 %v1179, %v1171
    %v2180 = vpack.c.b16 %v1180, %v1172
    %v2181 = vpack.c.b16 %v1181, %v1173
    %v2182 = vpack.c.b16 %v1182, %v1174
    %v2183 = vpack.c.b16 %v1183, %v1175
    %v2184 = vpack.c.b16 %v1184, %v1176
    %v2185 = vpack.c.b16 %v1193, %v1185
    %v2186 = vpack.c.b16 %v1194, %v1186
    %v2187 = vpack.c.b16 %v1195, %v1187
    %v2188 = vpack.c.b16 %v1196, %v1188
    %v2189 = vpack.c.b16 %v1197, %v1189
    %v2190 = vpack.c.b16 %v1198, %v1190
    %v2191 = vpack.c.b16 %v1199, %v1191
    %v2192 = vpack.c.b16 %v1200, %v1192
    %v2193 = vpack.c.b16 %v1209, %v1201
    %v2194 = vpack.c.b16 %v1210, %v1202
    %v2195 = vpack.c.b16 %v1211, %v1203
    %v2196 = vpack.c.b16 %v1212, %v1204
    %v2197 = vpack.c.b16 %v1213, %v1205
    %v2198 = vpack.c.b16 %v1214, %v1206
    %v2199 = vpack.c.b16 %v1215, %v1207
    %v2200 = vpack.c.b16 %v1216, %v1208
    %v2201 = vpack.c.b16 %v1225, %v1217
    %v2202 = vpack.c.b16 %v1226, %v1218
    %v2203 = vpack.c.b16 %v1227, %v1219
    %v2204 = vpack.c.b16 %v1228, %v1220
    %v2205 = vpack.c.b16 %v1229, %v1221
    %v2206 = vpack.c.b16 %v1230, %v1222
    %v2207 = vpack.c.b16 %v1231, %v1223
    %v2208 = vpack.c.b16 %v1232, %v1224
    %v2209 = vpack.c.b16 %v1241, %v1233
    %v2210 = vpack.c.b16 %v1242, %v1234
    %v2211 = vpack.c.b16 %v1243, %v1235
    %v2212 = vpack.c.b16 %v1244, %v1236
    %v2213 = vpack.c.b16 %v1245, %v1237
    %v2214 = vpack.c.b16 %v1246, %v1238
    %v2215 = vpack.c.b16 %v1247, %v1239
    %v2216 = vpack.c.b16 %v1248, %v1240
    %v2217 = vpack.c.b16 %v1257, %v1249
    %v2218 = vpack.c.b16 %v1258, %v1250
    %v2219 = vpack.c.b16 %v1259, %v1251
    %v2220 = vpack.c.b16 %v1260, %v1252
    %v2221 = vpack.c.b16 %v1261, %v1253
    %v2222 = vpack.c.b16 %v1262, %v1254
    %v2223 = vpack.c.b16 %v1263, %v1255
    %v2224 = vpack.c.b16 %v1264, %v1256
    %v2225 = vpack.c.b16 %v1273, %v1265
    %v2226 = vpack.c.b16 %v1274, %v1266
    %v2227 = vpack.c.b16 %v1275, %v1267
    %v2228 = vpack.c.b16 %v1276, %v1268
    %v2229 = vpack.c.b16 %v1277, %v1269
    %v2230 = vpack.c.b16 %v1278, %v1270
    %v2231 = vpack.c.b16 %v1279, %v1271
    %v2232 = vpack.c.b16 %v1280, %v1272
    %v2233 = vpack.c.b16 %v1289, %v1281
    %v2234 = vpack.c.b16 %v1290, %v1282
    %v2235 = vpack.c.b16 %v1291, %v1283
    %v2236 = vpack.c.b16 %v1292, %v1284
    %v2237 = vpack.c.b16 %v1293, %v1285
    %v2238 = vpack.c.b16 %v1294, %v1286
    %v2239 = vpack.c.b16 %v1295, %v1287
    %v2240 = vpack.c.b16 %v1296, %v1288
    %v2241 = vpack.c.b16 %v1305, %v1297
    %v2242 = vpack.c.b16 %v1306, %v1298
    %v2243 = vpack.c.b16 %v1307, %v1299
    %v2244 = vpack.c.b16 %v1308, %v1300
    %v2245 = vpack.c.b16 %v1309, %v1301
    %v2246 = vpack.c.b16 %v1310, %v1302
    %v2247 = vpack.c.b16 %v1311, %v1303
    %v2248 = vpack.c.b16 %v1312, %v1304
    %v2249 = vpack.c.b16 %v1321, %v1313
    %v2250 = vpack.c.b16 %v1322, %v1314
    %v2251 = vpack.c.b16 %v1323, %v1315
    %v2252 = vpack.c.b16 %v1324, %v1316
    %v2253 = vpack.c.b16 %v1325, %v1317
    %v2254 = vpack.c.b16 %v1326, %v1318
    %v2255 = vpack.c.b16 %v1327, %v1319
    %v2256 = vpack.c.b16 %v1328, %v1320
    %v2257 = vpack.c.b16 %v1337, %v1329
    %v2258 = vpack.c.b16 %v1338, %v1330
    %v2259 = vpack.c.b16 %v1339, %v1331
    %v2260 = vpack.c.b16 %v1340, %v1332
    %v2261 = vpack.c.b16 %v1341, %v1333
    %v2262 = vpack.c.b16 %v1342, %v1334
    %v2263 = vpack.c.b16 %v1343, %v1335
    %v2264 = vpack.c.b16 %v1344, %v1336
    %v2265 = vpack.c.b16 %v1353, %v1345
    %v2266 = vpack.c.b16 %v1354, %v1346
    %v2267 = vpack.c.b16 %v1355, %v1347
    %v2268 = vpack.c.b16 %v1356, %v1348
    %v2269 = vpack.c.b16 %v1357, %v1349
    %v2270 = vpack.c.b16 %v1358, %v1350
    %v2271 = vpack.c.b16 %v1359, %v1351
    %v2272 = vpack.c.b16 %v1360, %v1352
    %v2273 = vpack.c.b16 %v1369, %v1361
    %v2274 = vpack.c.b16 %v1370, %v1362
    %v2275 = vpack.c.b16 %v1371, %v1363
    %v2276 = vpack.c.b16 %v1372, %v1364
    %v2277 = vpack.c.b16 %v1373, %v1365
    %v2278 = vpack.c.b16 %v1374, %v1366
    %v2279 = vpack.c.b16 %v1375, %v1367
    %v2280 = vpack.c.b16 %v1376, %v1368
    %v2281 = vpack.c.b16 %v1385, %v1377
    %v2282 = vpack.c.b16 %v1386, %v1378
    %v2283 = vpack.c.b16 %v1387, %v1379
    %v2284 = vpack.c.b16 %v1388, %v1380
    %v2285 = vpack.c.b16 %v1389, %v1381
    %v2286 = vpack.c.b16 %v1390, %v1382
    %v2287 = vpack.c.b16 %v1391, %v1383
    %v2288 = vpack.c.b16 %v1392, %v1384
    %v2289 = vpack.c.b16 %v1401, %v1393
    %v2290 = vpack.c.b16 %v1402, %v1394
    %v2291 = vpack.c.b16 %v1403, %v1395
    %v2292 = vpack.c.b16 %v1404, %v1396
    %v2293 = vpack.c.b16 %v1405, %v1397
    %v2294 = vpack.c.b16 %v1406, %v1398
    %v2295 = vpack.c.b16 %v1407, %v1399
    %v2296 = vpack.c.b16 %v1408, %v1400
    %v2297 = vpack.c.b16 %v1417, %v1409
    %v2298 = vpack.c.b16 %v1418, %v1410
    %v2299 = vpack.c.b16 %v1419, %v1411
    %v2300 = vpack.c.b16 %v1420, %v1412
    %v2301 = vpack.c.b16 %v1421, %v1413
    %v2302 = vpack.c.b16 %v1422, %v1414
    %v2303 = vpack.c.b16 %v1423, %v1415
    %v2304 = vpack.c.b16 %v1424, %v1416
    %v2305 = vpack.c.b16 %v1433, %v1425
    %v2306 = vpack.c.b16 %v1434, %v1426
    %v2307 = vpack.c.b16 %v1435, %v1427
    %v2308 = vpack.c.b16 %v1436, %v1428
    %v2309 = vpack.c.b16 %v1437, %v1429
    %v2310 = vpack.c.b16 %v1438, %v1430
    %v2311 = vpack.c.b16 %v1439, %v1431
    %v2312 = vpack.c.b16 %v1440, %v1432
    %v2313 = vpack.c.b16 %v1449, %v1441
    %v2314 = vpack.c.b16 %v1450, %v1442
    %v2315 = vpack.c.b16 %v1451, %v1443
    %v2316 = vpack.c.b16 %v1452, %v1444
    %v2317 = vpack.c.b16 %v1453, %v1445
    %v2318 = vpack.c.b16 %v1454, %v1446
    %v2319 = vpack.c.b16 %v1455, %v1447
    %v2320 = vpack.c.b16 %v1456, %v1448
    %v2321 = vpack.c.b16 %v1465, %v1457
    %v2322 = vpack.c.b16 %v1466, %v1458
    %v2323 = vpack.c.b16 %v1467, %v1459
    %v2324 = vpack.c.b16 %v1468, %v1460
    %v2325 = vpack.c.b16 %v1469, %v1461
    %v2326 = vpack.c.b16 %v1470, %v1462
    %v2327 = vpack.c.b16 %v1471, %v1463
    %v2328 = vpack.c.b16 %v1472, %v1464
    %v2329 = vpack.c.b16 %v1481, %v1473
    %v2330 = vpack.c.b16 %v1482, %v1474
    %v2331 = vpack.c.b16 %v1483, %v1475
    %v2332 = vpack.c.b16 %v1484, %v1476
    %v2333 = vpack.c.b16 %v1485, %v1477
    %v2334 = vpack.c.b16 %v1486, %v1478
    %v2335 = vpack.c.b16 %v1487, %v1479
    %v2336 = vpack.c.b16 %v1488, %v1480
    %v2337 = vpack.c.b16 %v1497, %v1489
    %v2338 = vpack.c.b16 %v1498, %v1490
    %v2339 = vpack.c.b16 %v1499, %v1491
    %v2340 = vpack.c.b16 %v1500, %v1492
    %v2341 = vpack.c.b16 %v1501, %v1493
    %v2342 = vpack.c.b16 %v1502, %v1494
    %v2343 = vpack.c.b16 %v1503, %v1495
    %v2344 = vpack.c.b16 %v1504, %v1496
    %v2345 = vpack.c.b16 %v1513, %v1505
    %v2346 = vpack.c.b16 %v1514, %v1506
    %v2347 = vpack.c.b16 %v1515, %v1507
    %v2348 = vpack.c.b16 %v1516, %v1508
    %v2349 = vpack.c.b16 %v1517, %v1509
    %v2350 = vpack.c.b16 %v1518, %v1510
    %v2351 = vpack.c.b16 %v1519, %v1511
    %v2352 = vpack.c.b16 %v1520, %v1512
    %v2353 = vpack.c.b16 %v1529, %v1521
    %v2354 = vpack.c.b16 %v1530, %v1522
    %v2355 = vpack.c.b16 %v1531, %v1523
    %v2356 = vpack.c.b16 %v1532, %v1524
    %v2357 = vpack.c.b16 %v1533, %v1525
    %v2358 = vpack.c.b16 %v1534, %v1526
    %v2359 = vpack.c.b16 %v1535, %v1527
    %v2360 = vpack.c.b16 %v1536, %v1528
    %v2361 = vpack.c.b16 %v1545, %v1537
    %v2362 = vpack.c.b16 %v1546, %v1538
    %v2363 = vpack.c.b16 %v1547, %v1539
    %v2364 = vpack.c.b16 %v1548, %v1540
    %v2365 = vpack.c.b16 %v1549, %v1541
    %v2366 = vpack.c.b16 %v1550, %v1542
    %v2367 = vpack.c.b16 %v1551, %v1543
    %v2368 = vpack.c.b16 %v1552, %v1544
    %v2369 = vpack.c.b16 %v1561, %v1553
    %v2370 = vpack.c.b16 %v1562, %v1554
    %v2371 = vpack.c.b16 %v1563, %v1555
    %v2372 = vpack.c.b16 %v1564, %v1556
    %v2373 = vpack.c.b16 %v1565, %v1557
    %v2374 = vpack.c.b16 %v1566, %v1558
    %v2375 = vpack.c.b16 %v1567, %v1559
    %v2376 = vpack.c.b16 %v1568, %v1560
    %v2377 = vpack.c.b16 %v1577, %v1569
    %v2378 = vpack.c.b16 %v1578, %v1570
    %v2379 = vpack.c.b16 %v1579, %v1571
    %v2380 = vpack.c.b16 %v1580, %v1572
    %v2381 = vpack.c.b16 %v1581, %v1573
    %v2382 = vpack.c.b16 %v1582, %v1574
    %v2383 = vpack.c.b16 %v1583, %v1575
    %v2384 = vpack.c.b16 %v1584, %v1576
    %v2385 = vpack.c.b16 %v1593, %v1585
    %v2386 = vpack.c.b16 %v1594, %v1586
    %v2387 = vpack.c.b16 %v1595, %v1587
    %v2388 = vpack.c.b16 %v1596, %v1588
    %v2389 = vpack.c.b16 %v1597, %v1589
    %v2390 = vpack.c.b16 %v1598, %v1590
    %v2391 = vpack.c.b16 %v1599, %v1591
    %v2392 = vpack.c.b16 %v1600, %v1592
    %v2393 = vpack.c.b16 %v1609, %v1601
    %v2394 = vpack.c.b16 %v1610, %v1602
    %v2395 = vpack.c.b16 %v1611, %v1603
    %v2396 = vpack.c.b16 %v1612, %v1604
    %v2397 = vpack.c.b16 %v1613, %v1605
    %v2398 = vpack.c.b16 %v1614, %v1606
    %v2399 = vpack.c.b16 %v1615, %v1607
    %v2400 = vpack.c.b16 %v1616, %v1608
    %v2401 = vpack.c.b16 %v1625, %v1617
    %v2402 = vpack.c.b16 %v1626, %v1618
    %v2403 = vpack.c.b16 %v1627, %v1619
    %v2404 = vpack.c.b16 %v1628, %v1620
    %v2405 = vpack.c.b16 %v1629, %v1621
    %v2406 = vpack.c.b16 %v1630, %v1622
    %v2407 = vpack.c.b16 %v1631, %v1623
    %v2408 = vpack.c.b16 %v1632, %v1624
    %v2409 = vpack.c.b16 %v1641, %v1633
    %v2410 = vpack.c.b16 %v1642, %v1634
    %v2411 = vpack.c.b16 %v1643, %v1635
    %v2412 = vpack.c.b16 %v1644, %v1636
    %v2413 = vpack.c.b16 %v1645, %v1637
    %v2414 = vpack.c.b16 %v1646, %v1638
    %v2415 = vpack.c.b16 %v1647, %v1639
    %v2416 = vpack.c.b16 %v1648, %v1640
    %v2417 = vpack.c.b16 %v1657, %v1649
    %v2418 = vpack.c.b16 %v1658, %v1650
    %v2419 = vpack.c.b16 %v1659, %v1651
    %v2420 = vpack.c.b16 %v1660, %v1652
    %v2421 = vpack.c.b16 %v1661, %v1653
    %v2422 = vpack.c.b16 %v1662, %v1654
    %v2423 = vpack.c.b16 %v1663, %v1655
    %v2424 = vpack.c.b16 %v1664, %v1656
    %v2425 = vpack.c.b16 %v1673, %v1665
    %v2426 = vpack.c.b16 %v1674, %v1666
    %v2427 = vpack.c.b16 %v1675, %v1667
    %v2428 = vpack.c.b16 %v1676, %v1668
    %v2429 = vpack.c.b16 %v1677, %v1669
    %v2430 = vpack.c.b16 %v1678, %v1670
    %v2431 = vpack.c.b16 %v1679, %v1671
    %v2432 = vpack.c.b16 %v1680, %v1672
    %v2433 = vpack.c.b16 %v1689, %v1681
    %v2434 = vpack.c.b16 %v1690, %v1682
    %v2435 = vpack.c.b16 %v1691, %v1683
    %v2436 = vpack.c.b16 %v1692, %v1684
    %v2437 = vpack.c.b16 %v1693, %v1685
    %v2438 = vpack.c.b16 %v1694, %v1686
    %v2439 = vpack.c.b16 %v1695, %v1687
    %v2440 = vpack.c.b16 %v1696, %v1688
    %v2441 = vpack.c.b16 %v1705, %v1697
    %v2442 = vpack.c.b16 %v1706, %v1698
    %v2443 = vpack.c.b16 %v1707, %v1699
    %v2444 = vpack.c.b16 %v1708, %v1700
    %v2445 = vpack.c.b16 %v1709, %v1701
    %v2446 = vpack.c.b16 %v1710, %v1702
    %v2447 = vpack.c.b16 %v1711, %v1703
    %v2448 = vpack.c.b16 %v1712, %v1704
    %v2449 = vpack.c.b16 %v1721, %v1713
    %v2450 = vpack.c.b16 %v1722, %v1714
    %v2451 = vpack.c.b16 %v1723, %v1715
    %v2452 = vpack.c.b16 %v1724, %v1716
    %v2453 = vpack.c.b16 %v1725, %v1717
    %v2454 = vpack.c.b16 %v1726, %v1718
    %v2455 = vpack.c.b16 %v1727, %v1719
    %v2456 = vpack.c.b16 %v1728, %v1720
    %v2457 = vpack.c.b16 %v1737, %v1729
    %v2458 = vpack.c.b16 %v1738, %v1730
    %v2459 = vpack.c.b16 %v1739, %v1731
    %v2460 = vpack.c.b16 %v1740, %v1732
    %v2461 = vpack.c.b16 %v1741, %v1733
    %v2462 = vpack.c.b16 %v1742, %v1734
    %v2463 = vpack.c.b16 %v1743, %v1735
    %v2464 = vpack.c.b16 %v1744, %v1736
    %v2465 = vpack.c.b16 %v1753, %v1745
    %v2466 = vpack.c.b16 %v1754, %v1746
    %v2467 = vpack.c.b16 %v1755, %v1747
    %v2468 = vpack.c.b16 %v1756, %v1748
    %v2469 = vpack.c.b16 %v1757, %v1749
    %v2470 = vpack.c.b16 %v1758, %v1750
    %v2471 = vpack.c.b16 %v1759, %v1751
    %v2472 = vpack.c.b16 %v1760, %v1752
    %v2473 = vpack.c.b16 %v1769, %v1761
    %v2474 = vpack.c.b16 %v1770, %v1762
    %v2475 = vpack.c.b16 %v1771, %v1763
    %v2476 = vpack.c.b16 %v1772, %v1764
    %v2477 = vpack.c.b16 %v1773, %v1765
    %v2478 = vpack.c.b16 %v1774, %v1766
    %v2479 = vpack.c.b16 %v1775, %v1767
    %v2480 = vpack.c.b16 %v1776, %v1768
    %v2481 = vpack.c.b16 %v1785, %v1777
    %v2482 = vpack.c.b16 %v1786, %v1778
    %v2483 = vpack.c.b16 %v1787, %v1779
    %v2484 = vpack.c.b16 %v1788, %v1780
    %v2485 = vpack.c.b16 %v1789, %v1781
    %v2486 = vpack.c.b16 %v1790, %v1782
    %v2487 = vpack.c.b16 %v1791, %v1783
    %v2488 = vpack.c.b16 %v1792, %v1784
    %v2489 = vpack.c.b16 %v1801, %v1793
    %v2490 = vpack.c.b16 %v1802, %v1794
    %v2491 = vpack.c.b16 %v1803, %v1795
    %v2492 = vpack.c.b16 %v1804, %v1796
    %v2493 = vpack.c.b16 %v1805, %v1797
    %v2494 = vpack.c.b16 %v1806, %v1798
    %v2495 = vpack.c.b16 %v1807, %v1799
    %v2496 = vpack.c.b16 %v1808, %v1800
    %v2497 = vpack.c.b16 %v1817, %v1809
    %v2498 = vpack.c.b16 %v1818, %v1810
    %v2499 = vpack.c.b16 %v1819, %v1811
    %v2500 = vpack.c.b16 %v1820, %v1812
    %v2501 = vpack.c.b16 %v1821, %v1813
    %v2502 = vpack.c.b16 %v1822, %v1814
    %v2503 = vpack.c.b16 %v1823, %v1815
    %v2504 = vpack.c.b16 %v1824, %v1816
    %v2505 = vpack.c.b16 %v1833, %v1825
    %v2506 = vpack.c.b16 %v1834, %v1826
    %v2507 = vpack.c.b16 %v1835, %v1827
    %v2508 = vpack.c.b16 %v1836, %v1828
    %v2509 = vpack.c.b16 %v1837, %v1829
    %v2510 = vpack.c.b16 %v1838, %v1830
    %v2511 = vpack.c.b16 %v1839, %v1831
    %v2512 = vpack.c.b16 %v1840, %v1832
    %v2513 = vpack.c.b16 %v1849, %v1841
    %v2514 = vpack.c.b16 %v1850, %v1842
    %v2515 = vpack.c.b16 %v1851, %v1843
    %v2516 = vpack.c.b16 %v1852, %v1844
    %v2517 = vpack.c.b16 %v1853, %v1845
    %v2518 = vpack.c.b16 %v1854, %v1846
    %v2519 = vpack.c.b16 %v1855, %v1847
    %v2520 = vpack.c.b16 %v1856, %v1848
    %v2521 = vpack.c.b16 %v1865, %v1857
    %v2522 = vpack.c.b16 %v1866, %v1858
    %v2523 = vpack.c.b16 %v1867, %v1859
    %v2524 = vpack.c.b16 %v1868, %v1860
    %v2525 = vpack.c.b16 %v1869, %v1861
    %v2526 = vpack.c.b16 %v1870, %v1862
    %v2527 = vpack.c.b16 %v1871, %v1863
    %v2528 = vpack.c.b16 %v1872, %v1864
    %v2529 = vpack.c.b16 %v1881, %v1873
    %v2530 = vpack.c.b16 %v1882, %v1874
    %v2531 = vpack.c.b16 %v1883, %v1875
    %v2532 = vpack.c.b16 %v1884, %v1876
    %v2533 = vpack.c.b16 %v1885, %v1877
    %v2534 = vpack.c.b16 %v1886, %v1878
    %v2535 = vpack.c.b16 %v1887, %v1879
    %v2536 = vpack.c.b16 %v1888, %v1880
    %v2537 = vpack.c.b16 %v1897, %v1889
    %v2538 = vpack.c.b16 %v1898, %v1890
    %v2539 = vpack.c.b16 %v1899, %v1891
    %v2540 = vpack.c.b16 %v1900, %v1892
    %v2541 = vpack.c.b16 %v1901, %v1893
    %v2542 = vpack.c.b16 %v1902, %v1894
    %v2543 = vpack.c.b16 %v1903, %v1895
    %v2544 = vpack.c.b16 %v1904, %v1896
    %v2545 = vpack.c.b16 %v1913, %v1905
    %v2546 = vpack.c.b16 %v1914, %v1906
    %v2547 = vpack.c.b16 %v1915, %v1907
    %v2548 = vpack.c.b16 %v1916, %v1908
    %v2549 = vpack.c.b16 %v1917, %v1909
    %v2550 = vpack.c.b16 %v1918, %v1910
    %v2551 = vpack.c.b16 %v1919, %v1911
    %v2552 = vpack.c.b16 %v1920, %v1912
    %v2553 = vpack.c.b16 %v1929, %v1921
    %v2554 = vpack.c.b16 %v1930, %v1922
    %v2555 = vpack.c.b16 %v1931, %v1923
    %v2556 = vpack.c.b16 %v1932, %v1924
    %v2557 = vpack.c.b16 %v1933, %v1925
    %v2558 = vpack.c.b16 %v1934, %v1926
    %v2559 = vpack.c.b16 %v1935, %v1927
    %v2560 = vpack.c.b16 %v1936, %v1928
    %v2561 = vpack.c.b16 %v1945, %v1937
    %v2562 = vpack.c.b16 %v1946, %v1938
    %v2563 = vpack.c.b16 %v1947, %v1939
    %v2564 = vpack.c.b16 %v1948, %v1940
    %v2565 = vpack.c.b16 %v1949, %v1941
    %v2566 = vpack.c.b16 %v1950, %v1942
    %v2567 = vpack.c.b16 %v1951, %v1943
    %v2568 = vpack.c.b16 %v1952, %v1944
    %v2569 = vpack.c.b16 %v1961, %v1953
    %v2570 = vpack.c.b16 %v1962, %v1954
    %v2571 = vpack.c.b16 %v1963, %v1955
    %v2572 = vpack.c.b16 %v1964, %v1956
    %v2573 = vpack.c.b16 %v1965, %v1957
    %v2574 = vpack.c.b16 %v1966, %v1958
    %v2575 = vpack.c.b16 %v1967, %v1959
    %v2576 = vpack.c.b16 %v1968, %v1960
    %v2577 = vpack.c.b16 %v1977, %v1969
    %v2578 = vpack.c.b16 %v1978, %v1970
    %v2579 = vpack.c.b16 %v1979, %v1971
    %v2580 = vpack.c.b16 %v1980, %v1972
    %v2581 = vpack.c.b16 %v1981, %v1973
    %v2582 = vpack.c.b16 %v1982, %v1974
    %v2583 = vpack.c.b16 %v1983, %v1975
    %v2584 = vpack.c.b16 %v1984, %v1976
    %v2585 = vpack.c.b16 %v1993, %v1985
    %v2586 = vpack.c.b16 %v1994, %v1986
    %v2587 = vpack.c.b16 %v1995, %v1987
    %v2588 = vpack.c.b16 %v1996, %v1988
    %v2589 = vpack.c.b16 %v1997, %v1989
    %v2590 = vpack.c.b16 %v1998, %v1990
    %v2591 = vpack.c.b16 %v1999, %v1991
    %v2592 = vpack.c.b16 %v2000, %v1992
    %v2593 = vpack.c.b16 %v2009, %v2001
    %v2594 = vpack.c.b16 %v2010, %v2002
    %v2595 = vpack.c.b16 %v2011, %v2003
    %v2596 = vpack.c.b16 %v2012, %v2004
    %v2597 = vpack.c.b16 %v2013, %v2005
    %v2598 = vpack.c.b16 %v2014, %v2006
    %v2599 = vpack.c.b16 %v2015, %v2007
    %v2600 = vpack.c.b16 %v2016, %v2008
    %v2601 = vpack.c.b16 %v2025, %v2017
    %v2602 = vpack.c.b16 %v2026, %v2018
    %v2603 = vpack.c.b16 %v2027, %v2019
    %v2604 = vpack.c.b16 %v2028, %v2020
    %v2605 = vpack.c.b16 %v2029, %v2021
    %v2606 = vpack.c.b16 %v2030, %v2022
    %v2607 = vpack.c.b16 %v2031, %v2023
    %v2608 = vpack.c.b16 %v2032, %v2024
    %v2609 = vpack.c.b16 %v2041, %v2033
    %v2610 = vpack.c.b16 %v2042, %v2034
    %v2611 = vpack.c.b16 %v2043, %v2035
    %v2612 = vpack.c.b16 %v2044, %v2036
    %v2613 = vpack.c.b16 %v2045, %v2037
    %v2614 = vpack.c.b16 %v2046, %v2038
    %v2615 = vpack.c.b16 %v2047, %v2039
    %v2616 = vpack.c.b16 %v2048, %v2040
    %v2617 = vpack.c.b16 %v2057, %v2049
    %v2618 = vpack.c.b16 %v2058, %v2050
    %v2619 = vpack.c.b16 %v2059, %v2051
    %v2620 = vpack.c.b16 %v2060, %v2052
    %v2621 = vpack.c.b16 %v2061, %v2053
    %v2622 = vpack.c.b16 %v2062, %v2054
    %v2623 = vpack.c.b16 %v2063, %v2055
    %v2624 = vpack.c.b16 %v2064, %v2056
    %v2625 = vpack.c.b16 %v2073, %v2065
    %v2626 = vpack.c.b16 %v2074, %v2066
    %v2627 = vpack.c.b16 %v2075, %v2067
    %v2628 = vpack.c.b16 %v2076, %v2068
    %v2629 = vpack.c.b16 %v2077, %v2069
    %v2630 = vpack.c.b16 %v2078, %v2070
    %v2631 = vpack.c.b16 %v2079, %v2071
    %v2632 = vpack.c.b16 %v2080, %v2072
    %v2633 = vpack.c.b16 %v2089, %v2081
    %v2634 = vpack.c.b16 %v2090, %v2082
    %v2635 = vpack.c.b16 %v2091, %v2083
    %v2636 = vpack.c.b16 %v2092, %v2084
    %v2637 = vpack.c.b16 %v2093, %v2085
    %v2638 = vpack.c.b16 %v2094, %v2086
    %v2639 = vpack.c.b16 %v2095, %v2087
    %v2640 = vpack.c.b16 %v2096, %v2088
    %v2641 = vpack.c.b16 %v2105, %v2097
    %v2642 = vpack.c.b16 %v2106, %v2098
    %v2643 = vpack.c.b16 %v2107, %v2099
    %v2644 = vpack.c.b16 %v2108, %v2100
    %v2645 = vpack.c.b16 %v2109, %v2101
    %v2646 = vpack.c.b16 %v2110, %v2102
    %v2647 = vpack.c.b16 %v2111, %v2103
    %v2648 = vpack.c.b16 %v2112, %v2104
    %v2649 = vpack.c.b16 %v2121, %v2113
    %v2650 = vpack.c.b16 %v2122, %v2114
    %v2651 = vpack.c.b16 %v2123, %v2115
    %v2652 = vpack.c.b16 %v2124, %v2116
    %v2653 = vpack.c.b16 %v2125, %v2117
    %v2654 = vpack.c.b16 %v2126, %v2118
    %v2655 = vpack.c.b16 %v2127, %v2119
    %v2656 = vpack.c.b16 %v2128, %v2120
    %v2657 = vpack.c.b16 %v2137, %v2129
    %v2658 = vpack.c.b16 %v2138, %v2130
    %v2659 = vpack.c.b16 %v2139, %v2131
    %v2660 = vpack.c.b16 %v2140, %v2132
    %v2661 = vpack.c.b16 %v2141, %v2133
    %v2662 = vpack.c.b16 %v2142, %v2134
    %v2663 = vpack.c.b16 %v2143, %v2135
    %v2664 = vpack.c.b16 %v2144, %v2136
    %v2665 = vpack.c.b16 %v2153, %v2145
    %v2666 = vpack.c.b16 %v2154, %v2146
    %v2667 = vpack.c.b16 %v2155, %v2147
    %v2668 = vpack.c.b16 %v2156, %v2148
    %v2669 = vpack.c.b16 %v2157, %v2149
    %v2670 = vpack.c.b16 %v2158, %v2150
    %v2671 = vpack.c.b16 %v2159, %v2151
    %v2672 = vpack.c.b16 %v2160, %v2152
    %3185 = vmatpush.bf16.msra.mxu0 %v2217
    %3186 = vmatpush.bf16.msra.mxu0 %v2209
    %3187 = vmatpush.bf16.msra.mxu0 %v2201
    %3188 = vmatpush.bf16.msra.mxu0 %v2193
    %3189 = vmatpush.bf16.msra.mxu0 %v2185
    %3190 = vmatpush.bf16.msra.mxu0 %v2177
    %3191 = vmatpush.bf16.msra.mxu0 %v2169
    %3192 = vmatpush.bf16.msra.mxu0 %v2161
    %3193 = vmatmul.bf16.gmra.mxu0 %v87
    %v3194 = vpop.f32.mrf.mxu0
    %v3195 = vadd.f32 %v609, %v3194
    %v3196 = vpop.f32.mrf.mxu0
    %3197 = vdwg.mxu0
    %3198 = vmatpush.bf16.msra.mxu0 %v2281
    %3199 = vmatpush.bf16.msra.mxu0 %v2273
    %3200 = vmatpush.bf16.msra.mxu0 %v2265
    %3201 = vmatpush.bf16.msra.mxu0 %v2257
    %3202 = vmatpush.bf16.msra.mxu0 %v2249
    %3203 = vmatpush.bf16.msra.mxu0 %v2241
    %3204 = vmatpush.bf16.msra.mxu0 %v2233
    %3205 = vmatpush.bf16.msra.mxu0 %v2225
    %3206 = vmatmul.bf16.gmra.mxu0 %v88
    %v3207 = vpop.f32.mrf.mxu0
    %v3208 = vadd.f32 %v3195, %v3207
    %v3209 = vpop.f32.mrf.mxu0
    %3210 = vdwg.mxu0
    %3211 = vmatpush.bf16.msra.mxu0 %v2345
    %3212 = vmatpush.bf16.msra.mxu0 %v2337
    %3213 = vmatpush.bf16.msra.mxu0 %v2329
    %3214 = vmatpush.bf16.msra.mxu0 %v2321
    %3215 = vmatpush.bf16.msra.mxu0 %v2313
    %3216 = vmatpush.bf16.msra.mxu0 %v2305
    %3217 = vmatpush.bf16.msra.mxu0 %v2297
    %3218 = vmatpush.bf16.msra.mxu0 %v2289
    %3219 = vmatmul.bf16.gmra.mxu0 %v89
    %v3220 = vpop.f32.mrf.mxu0
    %v3221 = vadd.f32 %v3208, %v3220
    %v3222 = vpop.f32.mrf.mxu0
    %3223 = vdwg.mxu0
    %3224 = vmatpush.bf16.msra.mxu0 %v2409
    %3225 = vmatpush.bf16.msra.mxu0 %v2401
    %3226 = vmatpush.bf16.msra.mxu0 %v2393
    %3227 = vmatpush.bf16.msra.mxu0 %v2385
    %3228 = vmatpush.bf16.msra.mxu0 %v2377
    %3229 = vmatpush.bf16.msra.mxu0 %v2369
    %3230 = vmatpush.bf16.msra.mxu0 %v2361
    %3231 = vmatpush.bf16.msra.mxu0 %v2353
    %3232 = vmatmul.bf16.gmra.mxu0 %v90
    %v3233 = vpop.f32.mrf.mxu0
    %v3234 = vadd.f32 %v3221, %v3233
    %v3235 = vpop.f32.mrf.mxu0
    %3236 = vdwg.mxu0
    %3237 = vmatpush.bf16.msra.mxu0 %v2473
    %3238 = vmatpush.bf16.msra.mxu0 %v2465
    %3239 = vmatpush.bf16.msra.mxu0 %v2457
    %3240 = vmatpush.bf16.msra.mxu0 %v2449
    %3241 = vmatpush.bf16.msra.mxu0 %v2441
    %3242 = vmatpush.bf16.msra.mxu0 %v2433
    %3243 = vmatpush.bf16.msra.mxu0 %v2425
    %3244 = vmatpush.bf16.msra.mxu0 %v2417
    %3245 = vmatmul.bf16.gmra.mxu0 %v91
    %v3246 = vpop.f32.mrf.mxu0
    %v3247 = vadd.f32 %v3234, %v3246
    %v3248 = vpop.f32.mrf.mxu0
    %3249 = vdwg.mxu0
    %3250 = vmatpush.bf16.msra.mxu0 %v2537
    %3251 = vmatpush.bf16.msra.mxu0 %v2529
    %3252 = vmatpush.bf16.msra.mxu0 %v2521
    %3253 = vmatpush.bf16.msra.mxu0 %v2513
    %3254 = vmatpush.bf16.msra.mxu0 %v2505
    %3255 = vmatpush.bf16.msra.mxu0 %v2497
    %3256 = vmatpush.bf16.msra.mxu0 %v2489
    %3257 = vmatpush.bf16.msra.mxu0 %v2481
    %3258 = vmatmul.bf16.gmra.mxu0 %v92
    %v3259 = vpop.f32.mrf.mxu0
    %v3260 = vadd.f32 %v3247, %v3259
    %v3261 = vpop.f32.mrf.mxu0
    %3262 = vdwg.mxu0
    %3263 = vmatpush.bf16.msra.mxu0 %v2601
    %3264 = vmatpush.bf16.msra.mxu0 %v2593
    %3265 = vmatpush.bf16.msra.mxu0 %v2585
    %3266 = vmatpush.bf16.msra.mxu0 %v2577
    %3267 = vmatpush.bf16.msra.mxu0 %v2569
    %3268 = vmatpush.bf16.msra.mxu0 %v2561
    %3269 = vmatpush.bf16.msra.mxu0 %v2553
    %3270 = vmatpush.bf16.msra.mxu0 %v2545
    %3271 = vmatmul.bf16.gmra.mxu0 %v93
    %v3272 = vpop.f32.mrf.mxu0
    %v3273 = vadd.f32 %v3260, %v3272
    %v3274 = vpop.f32.mrf.mxu0
    %3275 = vdwg.mxu0
    %3276 = vmatpush.bf16.msra.mxu0 %v2665
    %3277 = vmatpush.bf16.msra.mxu0 %v2657
    %3278 = vmatpush.bf16.msra.mxu0 %v2649
    %3279 = vmatpush.bf16.msra.mxu0 %v2641
    %3280 = vmatpush.bf16.msra.mxu0 %v2633
    %3281 = vmatpush.bf16.msra.mxu0 %v2625
    %3282 = vmatpush.bf16.msra.mxu0 %v2617
    %3283 = vmatpush.bf16.msra.mxu0 %v2609
    %3284 = vmatmul.bf16.gmra.mxu0 %v94
    %v3285 = vpop.f32.mrf.mxu0
    %v3286 = vadd.f32 %v3273, %v3285
    %v3287 = vpop.f32.mrf.mxu0
    %3288 = vdwg.mxu0
    %3289 = vmatpush.bf16.msra.mxu0 %v2218
    %3290 = vmatpush.bf16.msra.mxu0 %v2210
    %3291 = vmatpush.bf16.msra.mxu0 %v2202
    %3292 = vmatpush.bf16.msra.mxu0 %v2194
    %3293 = vmatpush.bf16.msra.mxu0 %v2186
    %3294 = vmatpush.bf16.msra.mxu0 %v2178
    %3295 = vmatpush.bf16.msra.mxu0 %v2170
    %3296 = vmatpush.bf16.msra.mxu0 %v2162
    %3297 = vmatmul.bf16.gmra.mxu0 %v87
    %v3298 = vpop.f32.mrf.mxu0
    %v3299 = vadd.f32 %v610, %v3298
    %v3300 = vpop.f32.mrf.mxu0
    %3301 = vdwg.mxu0
    %3302 = vmatpush.bf16.msra.mxu0 %v2282
    %3303 = vmatpush.bf16.msra.mxu0 %v2274
    %3304 = vmatpush.bf16.msra.mxu0 %v2266
    %3305 = vmatpush.bf16.msra.mxu0 %v2258
    %3306 = vmatpush.bf16.msra.mxu0 %v2250
    %3307 = vmatpush.bf16.msra.mxu0 %v2242
    %3308 = vmatpush.bf16.msra.mxu0 %v2234
    %3309 = vmatpush.bf16.msra.mxu0 %v2226
    %3310 = vmatmul.bf16.gmra.mxu0 %v88
    %v3311 = vpop.f32.mrf.mxu0
    %v3312 = vadd.f32 %v3299, %v3311
    %v3313 = vpop.f32.mrf.mxu0
    %3314 = vdwg.mxu0
    %3315 = vmatpush.bf16.msra.mxu0 %v2346
    %3316 = vmatpush.bf16.msra.mxu0 %v2338
    %3317 = vmatpush.bf16.msra.mxu0 %v2330
    %3318 = vmatpush.bf16.msra.mxu0 %v2322
    %3319 = vmatpush.bf16.msra.mxu0 %v2314
    %3320 = vmatpush.bf16.msra.mxu0 %v2306
    %3321 = vmatpush.bf16.msra.mxu0 %v2298
    %3322 = vmatpush.bf16.msra.mxu0 %v2290
    %3323 = vmatmul.bf16.gmra.mxu0 %v89
    %v3324 = vpop.f32.mrf.mxu0
    %v3325 = vadd.f32 %v3312, %v3324
    %v3326 = vpop.f32.mrf.mxu0
    %3327 = vdwg.mxu0
    %3328 = vmatpush.bf16.msra.mxu0 %v2410
    %3329 = vmatpush.bf16.msra.mxu0 %v2402
    %3330 = vmatpush.bf16.msra.mxu0 %v2394
    %3331 = vmatpush.bf16.msra.mxu0 %v2386
    %3332 = vmatpush.bf16.msra.mxu0 %v2378
    %3333 = vmatpush.bf16.msra.mxu0 %v2370
    %3334 = vmatpush.bf16.msra.mxu0 %v2362
    %3335 = vmatpush.bf16.msra.mxu0 %v2354
    %3336 = vmatmul.bf16.gmra.mxu0 %v90
    %v3337 = vpop.f32.mrf.mxu0
    %v3338 = vadd.f32 %v3325, %v3337
    %v3339 = vpop.f32.mrf.mxu0
    %3340 = vdwg.mxu0
    %3341 = vmatpush.bf16.msra.mxu0 %v2474
    %3342 = vmatpush.bf16.msra.mxu0 %v2466
    %3343 = vmatpush.bf16.msra.mxu0 %v2458
    %3344 = vmatpush.bf16.msra.mxu0 %v2450
    %3345 = vmatpush.bf16.msra.mxu0 %v2442
    %3346 = vmatpush.bf16.msra.mxu0 %v2434
    %3347 = vmatpush.bf16.msra.mxu0 %v2426
    %3348 = vmatpush.bf16.msra.mxu0 %v2418
    %3349 = vmatmul.bf16.gmra.mxu0 %v91
    %v3350 = vpop.f32.mrf.mxu0
    %v3351 = vadd.f32 %v3338, %v3350
    %v3352 = vpop.f32.mrf.mxu0
    %3353 = vdwg.mxu0
    %3354 = vmatpush.bf16.msra.mxu0 %v2538
    %3355 = vmatpush.bf16.msra.mxu0 %v2530
    %3356 = vmatpush.bf16.msra.mxu0 %v2522
    %3357 = vmatpush.bf16.msra.mxu0 %v2514
    %3358 = vmatpush.bf16.msra.mxu0 %v2506
    %3359 = vmatpush.bf16.msra.mxu0 %v2498
    %3360 = vmatpush.bf16.msra.mxu0 %v2490
    %3361 = vmatpush.bf16.msra.mxu0 %v2482
    %3362 = vmatmul.bf16.gmra.mxu0 %v92
    %v3363 = vpop.f32.mrf.mxu0
    %v3364 = vadd.f32 %v3351, %v3363
    %v3365 = vpop.f32.mrf.mxu0
    %3366 = vdwg.mxu0
    %3367 = vmatpush.bf16.msra.mxu0 %v2602
    %3368 = vmatpush.bf16.msra.mxu0 %v2594
    %3369 = vmatpush.bf16.msra.mxu0 %v2586
    %3370 = vmatpush.bf16.msra.mxu0 %v2578
    %3371 = vmatpush.bf16.msra.mxu0 %v2570
    %3372 = vmatpush.bf16.msra.mxu0 %v2562
    %3373 = vmatpush.bf16.msra.mxu0 %v2554
    %3374 = vmatpush.bf16.msra.mxu0 %v2546
    %3375 = vmatmul.bf16.gmra.mxu0 %v93
    %v3376 = vpop.f32.mrf.mxu0
    %v3377 = vadd.f32 %v3364, %v3376
    %v3378 = vpop.f32.mrf.mxu0
    %3379 = vdwg.mxu0
    %3380 = vmatpush.bf16.msra.mxu0 %v2666
    %3381 = vmatpush.bf16.msra.mxu0 %v2658
    %3382 = vmatpush.bf16.msra.mxu0 %v2650
    %3383 = vmatpush.bf16.msra.mxu0 %v2642
    %3384 = vmatpush.bf16.msra.mxu0 %v2634
    %3385 = vmatpush.bf16.msra.mxu0 %v2626
    %3386 = vmatpush.bf16.msra.mxu0 %v2618
    %3387 = vmatpush.bf16.msra.mxu0 %v2610
    %3388 = vmatmul.bf16.gmra.mxu0 %v94
    %v3389 = vpop.f32.mrf.mxu0
    %v3390 = vadd.f32 %v3377, %v3389
    %v3391 = vpop.f32.mrf.mxu0
    %3392 = vdwg.mxu0
    %3393 = vmatpush.bf16.msra.mxu0 %v2219
    %3394 = vmatpush.bf16.msra.mxu0 %v2211
    %3395 = vmatpush.bf16.msra.mxu0 %v2203
    %3396 = vmatpush.bf16.msra.mxu0 %v2195
    %3397 = vmatpush.bf16.msra.mxu0 %v2187
    %3398 = vmatpush.bf16.msra.mxu0 %v2179
    %3399 = vmatpush.bf16.msra.mxu0 %v2171
    %3400 = vmatpush.bf16.msra.mxu0 %v2163
    %3401 = vmatmul.bf16.gmra.mxu0 %v87
    %v3402 = vpop.f32.mrf.mxu0
    %v3403 = vadd.f32 %v611, %v3402
    %v3404 = vpop.f32.mrf.mxu0
    %3405 = vdwg.mxu0
    %3406 = vmatpush.bf16.msra.mxu0 %v2283
    %3407 = vmatpush.bf16.msra.mxu0 %v2275
    %3408 = vmatpush.bf16.msra.mxu0 %v2267
    %3409 = vmatpush.bf16.msra.mxu0 %v2259
    %3410 = vmatpush.bf16.msra.mxu0 %v2251
    %3411 = vmatpush.bf16.msra.mxu0 %v2243
    %3412 = vmatpush.bf16.msra.mxu0 %v2235
    %3413 = vmatpush.bf16.msra.mxu0 %v2227
    %3414 = vmatmul.bf16.gmra.mxu0 %v88
    %v3415 = vpop.f32.mrf.mxu0
    %v3416 = vadd.f32 %v3403, %v3415
    %v3417 = vpop.f32.mrf.mxu0
    %3418 = vdwg.mxu0
    %3419 = vmatpush.bf16.msra.mxu0 %v2347
    %3420 = vmatpush.bf16.msra.mxu0 %v2339
    %3421 = vmatpush.bf16.msra.mxu0 %v2331
    %3422 = vmatpush.bf16.msra.mxu0 %v2323
    %3423 = vmatpush.bf16.msra.mxu0 %v2315
    %3424 = vmatpush.bf16.msra.mxu0 %v2307
    %3425 = vmatpush.bf16.msra.mxu0 %v2299
    %3426 = vmatpush.bf16.msra.mxu0 %v2291
    %3427 = vmatmul.bf16.gmra.mxu0 %v89
    %v3428 = vpop.f32.mrf.mxu0
    %v3429 = vadd.f32 %v3416, %v3428
    %v3430 = vpop.f32.mrf.mxu0
    %3431 = vdwg.mxu0
    %3432 = vmatpush.bf16.msra.mxu0 %v2411
    %3433 = vmatpush.bf16.msra.mxu0 %v2403
    %3434 = vmatpush.bf16.msra.mxu0 %v2395
    %3435 = vmatpush.bf16.msra.mxu0 %v2387
    %3436 = vmatpush.bf16.msra.mxu0 %v2379
    %3437 = vmatpush.bf16.msra.mxu0 %v2371
    %3438 = vmatpush.bf16.msra.mxu0 %v2363
    %3439 = vmatpush.bf16.msra.mxu0 %v2355
    %3440 = vmatmul.bf16.gmra.mxu0 %v90
    %v3441 = vpop.f32.mrf.mxu0
    %v3442 = vadd.f32 %v3429, %v3441
    %v3443 = vpop.f32.mrf.mxu0
    %3444 = vdwg.mxu0
    %3445 = vmatpush.bf16.msra.mxu0 %v2475
    %3446 = vmatpush.bf16.msra.mxu0 %v2467
    %3447 = vmatpush.bf16.msra.mxu0 %v2459
    %3448 = vmatpush.bf16.msra.mxu0 %v2451
    %3449 = vmatpush.bf16.msra.mxu0 %v2443
    %3450 = vmatpush.bf16.msra.mxu0 %v2435
    %3451 = vmatpush.bf16.msra.mxu0 %v2427
    %3452 = vmatpush.bf16.msra.mxu0 %v2419
    %3453 = vmatmul.bf16.gmra.mxu0 %v91
    %v3454 = vpop.f32.mrf.mxu0
    %v3455 = vadd.f32 %v3442, %v3454
    %v3456 = vpop.f32.mrf.mxu0
    %3457 = vdwg.mxu0
    %3458 = vmatpush.bf16.msra.mxu0 %v2539
    %3459 = vmatpush.bf16.msra.mxu0 %v2531
    %3460 = vmatpush.bf16.msra.mxu0 %v2523
    %3461 = vmatpush.bf16.msra.mxu0 %v2515
    %3462 = vmatpush.bf16.msra.mxu0 %v2507
    %3463 = vmatpush.bf16.msra.mxu0 %v2499
    %3464 = vmatpush.bf16.msra.mxu0 %v2491
    %3465 = vmatpush.bf16.msra.mxu0 %v2483
    %3466 = vmatmul.bf16.gmra.mxu0 %v92
    %v3467 = vpop.f32.mrf.mxu0
    %v3468 = vadd.f32 %v3455, %v3467
    %v3469 = vpop.f32.mrf.mxu0
    %3470 = vdwg.mxu0
    %3471 = vmatpush.bf16.msra.mxu0 %v2603
    %3472 = vmatpush.bf16.msra.mxu0 %v2595
    %3473 = vmatpush.bf16.msra.mxu0 %v2587
    %3474 = vmatpush.bf16.msra.mxu0 %v2579
    %3475 = vmatpush.bf16.msra.mxu0 %v2571
    %3476 = vmatpush.bf16.msra.mxu0 %v2563
    %3477 = vmatpush.bf16.msra.mxu0 %v2555
    %3478 = vmatpush.bf16.msra.mxu0 %v2547
    %3479 = vmatmul.bf16.gmra.mxu0 %v93
    %v3480 = vpop.f32.mrf.mxu0
    %v3481 = vadd.f32 %v3468, %v3480
    %v3482 = vpop.f32.mrf.mxu0
    %3483 = vdwg.mxu0
    %3484 = vmatpush.bf16.msra.mxu0 %v2667
    %3485 = vmatpush.bf16.msra.mxu0 %v2659
    %3486 = vmatpush.bf16.msra.mxu0 %v2651
    %3487 = vmatpush.bf16.msra.mxu0 %v2643
    %3488 = vmatpush.bf16.msra.mxu0 %v2635
    %3489 = vmatpush.bf16.msra.mxu0 %v2627
    %3490 = vmatpush.bf16.msra.mxu0 %v2619
    %3491 = vmatpush.bf16.msra.mxu0 %v2611
    %3492 = vmatmul.bf16.gmra.mxu0 %v94
    %v3493 = vpop.f32.mrf.mxu0
    %v3494 = vadd.f32 %v3481, %v3493
    %v3495 = vpop.f32.mrf.mxu0
    %3496 = vdwg.mxu0
    %3497 = vmatpush.bf16.msra.mxu0 %v2220
    %3498 = vmatpush.bf16.msra.mxu0 %v2212
    %3499 = vmatpush.bf16.msra.mxu0 %v2204
    %3500 = vmatpush.bf16.msra.mxu0 %v2196
    %3501 = vmatpush.bf16.msra.mxu0 %v2188
    %3502 = vmatpush.bf16.msra.mxu0 %v2180
    %3503 = vmatpush.bf16.msra.mxu0 %v2172
    %3504 = vmatpush.bf16.msra.mxu0 %v2164
    %3505 = vmatmul.bf16.gmra.mxu0 %v87
    %v3506 = vpop.f32.mrf.mxu0
    %v3507 = vadd.f32 %v612, %v3506
    %v3508 = vpop.f32.mrf.mxu0
    %3509 = vdwg.mxu0
    %3510 = vmatpush.bf16.msra.mxu0 %v2284
    %3511 = vmatpush.bf16.msra.mxu0 %v2276
    %3512 = vmatpush.bf16.msra.mxu0 %v2268
    %3513 = vmatpush.bf16.msra.mxu0 %v2260
    %3514 = vmatpush.bf16.msra.mxu0 %v2252
    %3515 = vmatpush.bf16.msra.mxu0 %v2244
    %3516 = vmatpush.bf16.msra.mxu0 %v2236
    %3517 = vmatpush.bf16.msra.mxu0 %v2228
    %3518 = vmatmul.bf16.gmra.mxu0 %v88
    %v3519 = vpop.f32.mrf.mxu0
    %v3520 = vadd.f32 %v3507, %v3519
    %v3521 = vpop.f32.mrf.mxu0
    %3522 = vdwg.mxu0
    %3523 = vmatpush.bf16.msra.mxu0 %v2348
    %3524 = vmatpush.bf16.msra.mxu0 %v2340
    %3525 = vmatpush.bf16.msra.mxu0 %v2332
    %3526 = vmatpush.bf16.msra.mxu0 %v2324
    %3527 = vmatpush.bf16.msra.mxu0 %v2316
    %3528 = vmatpush.bf16.msra.mxu0 %v2308
    %3529 = vmatpush.bf16.msra.mxu0 %v2300
    %3530 = vmatpush.bf16.msra.mxu0 %v2292
    %3531 = vmatmul.bf16.gmra.mxu0 %v89
    %v3532 = vpop.f32.mrf.mxu0
    %v3533 = vadd.f32 %v3520, %v3532
    %v3534 = vpop.f32.mrf.mxu0
    %3535 = vdwg.mxu0
    %3536 = vmatpush.bf16.msra.mxu0 %v2412
    %3537 = vmatpush.bf16.msra.mxu0 %v2404
    %3538 = vmatpush.bf16.msra.mxu0 %v2396
    %3539 = vmatpush.bf16.msra.mxu0 %v2388
    %3540 = vmatpush.bf16.msra.mxu0 %v2380
    %3541 = vmatpush.bf16.msra.mxu0 %v2372
    %3542 = vmatpush.bf16.msra.mxu0 %v2364
    %3543 = vmatpush.bf16.msra.mxu0 %v2356
    %3544 = vmatmul.bf16.gmra.mxu0 %v90
    %v3545 = vpop.f32.mrf.mxu0
    %v3546 = vadd.f32 %v3533, %v3545
    %v3547 = vpop.f32.mrf.mxu0
    %3548 = vdwg.mxu0
    %3549 = vmatpush.bf16.msra.mxu0 %v2476
    %3550 = vmatpush.bf16.msra.mxu0 %v2468
    %3551 = vmatpush.bf16.msra.mxu0 %v2460
    %3552 = vmatpush.bf16.msra.mxu0 %v2452
    %3553 = vmatpush.bf16.msra.mxu0 %v2444
    %3554 = vmatpush.bf16.msra.mxu0 %v2436
    %3555 = vmatpush.bf16.msra.mxu0 %v2428
    %3556 = vmatpush.bf16.msra.mxu0 %v2420
    %3557 = vmatmul.bf16.gmra.mxu0 %v91
    %v3558 = vpop.f32.mrf.mxu0
    %v3559 = vadd.f32 %v3546, %v3558
    %v3560 = vpop.f32.mrf.mxu0
    %3561 = vdwg.mxu0
    %3562 = vmatpush.bf16.msra.mxu0 %v2540
    %3563 = vmatpush.bf16.msra.mxu0 %v2532
    %3564 = vmatpush.bf16.msra.mxu0 %v2524
    %3565 = vmatpush.bf16.msra.mxu0 %v2516
    %3566 = vmatpush.bf16.msra.mxu0 %v2508
    %3567 = vmatpush.bf16.msra.mxu0 %v2500
    %3568 = vmatpush.bf16.msra.mxu0 %v2492
    %3569 = vmatpush.bf16.msra.mxu0 %v2484
    %3570 = vmatmul.bf16.gmra.mxu0 %v92
    %v3571 = vpop.f32.mrf.mxu0
    %v3572 = vadd.f32 %v3559, %v3571
    %v3573 = vpop.f32.mrf.mxu0
    %3574 = vdwg.mxu0
    %3575 = vmatpush.bf16.msra.mxu0 %v2604
    %3576 = vmatpush.bf16.msra.mxu0 %v2596
    %3577 = vmatpush.bf16.msra.mxu0 %v2588
    %3578 = vmatpush.bf16.msra.mxu0 %v2580
    %3579 = vmatpush.bf16.msra.mxu0 %v2572
    %3580 = vmatpush.bf16.msra.mxu0 %v2564
    %3581 = vmatpush.bf16.msra.mxu0 %v2556
    %3582 = vmatpush.bf16.msra.mxu0 %v2548
    %3583 = vmatmul.bf16.gmra.mxu0 %v93
    %v3584 = vpop.f32.mrf.mxu0
    %v3585 = vadd.f32 %v3572, %v3584
    %v3586 = vpop.f32.mrf.mxu0
    %3587 = vdwg.mxu0
    %3588 = vmatpush.bf16.msra.mxu0 %v2668
    %3589 = vmatpush.bf16.msra.mxu0 %v2660
    %3590 = vmatpush.bf16.msra.mxu0 %v2652
    %3591 = vmatpush.bf16.msra.mxu0 %v2644
    %3592 = vmatpush.bf16.msra.mxu0 %v2636
    %3593 = vmatpush.bf16.msra.mxu0 %v2628
    %3594 = vmatpush.bf16.msra.mxu0 %v2620
    %3595 = vmatpush.bf16.msra.mxu0 %v2612
    %3596 = vmatmul.bf16.gmra.mxu0 %v94
    %v3597 = vpop.f32.mrf.mxu0
    %v3598 = vadd.f32 %v3585, %v3597
    %v3599 = vpop.f32.mrf.mxu0
    %3600 = vdwg.mxu0
    %3601 = vmatpush.bf16.msra.mxu0 %v2221
    %3602 = vmatpush.bf16.msra.mxu0 %v2213
    %3603 = vmatpush.bf16.msra.mxu0 %v2205
    %3604 = vmatpush.bf16.msra.mxu0 %v2197
    %3605 = vmatpush.bf16.msra.mxu0 %v2189
    %3606 = vmatpush.bf16.msra.mxu0 %v2181
    %3607 = vmatpush.bf16.msra.mxu0 %v2173
    %3608 = vmatpush.bf16.msra.mxu0 %v2165
    %3609 = vmatmul.bf16.gmra.mxu0 %v87
    %v3610 = vpop.f32.mrf.mxu0
    %v3611 = vadd.f32 %v613, %v3610
    %v3612 = vpop.f32.mrf.mxu0
    %3613 = vdwg.mxu0
    %3614 = vmatpush.bf16.msra.mxu0 %v2285
    %3615 = vmatpush.bf16.msra.mxu0 %v2277
    %3616 = vmatpush.bf16.msra.mxu0 %v2269
    %3617 = vmatpush.bf16.msra.mxu0 %v2261
    %3618 = vmatpush.bf16.msra.mxu0 %v2253
    %3619 = vmatpush.bf16.msra.mxu0 %v2245
    %3620 = vmatpush.bf16.msra.mxu0 %v2237
    %3621 = vmatpush.bf16.msra.mxu0 %v2229
    %3622 = vmatmul.bf16.gmra.mxu0 %v88
    %v3623 = vpop.f32.mrf.mxu0
    %v3624 = vadd.f32 %v3611, %v3623
    %v3625 = vpop.f32.mrf.mxu0
    %3626 = vdwg.mxu0
    %3627 = vmatpush.bf16.msra.mxu0 %v2349
    %3628 = vmatpush.bf16.msra.mxu0 %v2341
    %3629 = vmatpush.bf16.msra.mxu0 %v2333
    %3630 = vmatpush.bf16.msra.mxu0 %v2325
    %3631 = vmatpush.bf16.msra.mxu0 %v2317
    %3632 = vmatpush.bf16.msra.mxu0 %v2309
    %3633 = vmatpush.bf16.msra.mxu0 %v2301
    %3634 = vmatpush.bf16.msra.mxu0 %v2293
    %3635 = vmatmul.bf16.gmra.mxu0 %v89
    %v3636 = vpop.f32.mrf.mxu0
    %v3637 = vadd.f32 %v3624, %v3636
    %v3638 = vpop.f32.mrf.mxu0
    %3639 = vdwg.mxu0
    %3640 = vmatpush.bf16.msra.mxu0 %v2413
    %3641 = vmatpush.bf16.msra.mxu0 %v2405
    %3642 = vmatpush.bf16.msra.mxu0 %v2397
    %3643 = vmatpush.bf16.msra.mxu0 %v2389
    %3644 = vmatpush.bf16.msra.mxu0 %v2381
    %3645 = vmatpush.bf16.msra.mxu0 %v2373
    %3646 = vmatpush.bf16.msra.mxu0 %v2365
    %3647 = vmatpush.bf16.msra.mxu0 %v2357
    %3648 = vmatmul.bf16.gmra.mxu0 %v90
    %v3649 = vpop.f32.mrf.mxu0
    %v3650 = vadd.f32 %v3637, %v3649
    %v3651 = vpop.f32.mrf.mxu0
    %3652 = vdwg.mxu0
    %3653 = vmatpush.bf16.msra.mxu0 %v2477
    %3654 = vmatpush.bf16.msra.mxu0 %v2469
    %3655 = vmatpush.bf16.msra.mxu0 %v2461
    %3656 = vmatpush.bf16.msra.mxu0 %v2453
    %3657 = vmatpush.bf16.msra.mxu0 %v2445
    %3658 = vmatpush.bf16.msra.mxu0 %v2437
    %3659 = vmatpush.bf16.msra.mxu0 %v2429
    %3660 = vmatpush.bf16.msra.mxu0 %v2421
    %3661 = vmatmul.bf16.gmra.mxu0 %v91
    %v3662 = vpop.f32.mrf.mxu0
    %v3663 = vadd.f32 %v3650, %v3662
    %v3664 = vpop.f32.mrf.mxu0
    %3665 = vdwg.mxu0
    %3666 = vmatpush.bf16.msra.mxu0 %v2541
    %3667 = vmatpush.bf16.msra.mxu0 %v2533
    %3668 = vmatpush.bf16.msra.mxu0 %v2525
    %3669 = vmatpush.bf16.msra.mxu0 %v2517
    %3670 = vmatpush.bf16.msra.mxu0 %v2509
    %3671 = vmatpush.bf16.msra.mxu0 %v2501
    %3672 = vmatpush.bf16.msra.mxu0 %v2493
    %3673 = vmatpush.bf16.msra.mxu0 %v2485
    %3674 = vmatmul.bf16.gmra.mxu0 %v92
    %v3675 = vpop.f32.mrf.mxu0
    %v3676 = vadd.f32 %v3663, %v3675
    %v3677 = vpop.f32.mrf.mxu0
    %3678 = vdwg.mxu0
    %3679 = vmatpush.bf16.msra.mxu0 %v2605
    %3680 = vmatpush.bf16.msra.mxu0 %v2597
    %3681 = vmatpush.bf16.msra.mxu0 %v2589
    %3682 = vmatpush.bf16.msra.mxu0 %v2581
    %3683 = vmatpush.bf16.msra.mxu0 %v2573
    %3684 = vmatpush.bf16.msra.mxu0 %v2565
    %3685 = vmatpush.bf16.msra.mxu0 %v2557
    %3686 = vmatpush.bf16.msra.mxu0 %v2549
    %3687 = vmatmul.bf16.gmra.mxu0 %v93
    %v3688 = vpop.f32.mrf.mxu0
    %v3689 = vadd.f32 %v3676, %v3688
    %v3690 = vpop.f32.mrf.mxu0
    %3691 = vdwg.mxu0
    %3692 = vmatpush.bf16.msra.mxu0 %v2669
    %3693 = vmatpush.bf16.msra.mxu0 %v2661
    %3694 = vmatpush.bf16.msra.mxu0 %v2653
    %3695 = vmatpush.bf16.msra.mxu0 %v2645
    %3696 = vmatpush.bf16.msra.mxu0 %v2637
    %3697 = vmatpush.bf16.msra.mxu0 %v2629
    %3698 = vmatpush.bf16.msra.mxu0 %v2621
    %3699 = vmatpush.bf16.msra.mxu0 %v2613
    %3700 = vmatmul.bf16.gmra.mxu0 %v94
    %v3701 = vpop.f32.mrf.mxu0
    %v3702 = vadd.f32 %v3689, %v3701
    %v3703 = vpop.f32.mrf.mxu0
    %3704 = vdwg.mxu0
    %3705 = vmatpush.bf16.msra.mxu0 %v2222
    %3706 = vmatpush.bf16.msra.mxu0 %v2214
    %3707 = vmatpush.bf16.msra.mxu0 %v2206
    %3708 = vmatpush.bf16.msra.mxu0 %v2198
    %3709 = vmatpush.bf16.msra.mxu0 %v2190
    %3710 = vmatpush.bf16.msra.mxu0 %v2182
    %3711 = vmatpush.bf16.msra.mxu0 %v2174
    %3712 = vmatpush.bf16.msra.mxu0 %v2166
    %3713 = vmatmul.bf16.gmra.mxu0 %v87
    %v3714 = vpop.f32.mrf.mxu0
    %v3715 = vadd.f32 %v614, %v3714
    %v3716 = vpop.f32.mrf.mxu0
    %3717 = vdwg.mxu0
    %3718 = vmatpush.bf16.msra.mxu0 %v2286
    %3719 = vmatpush.bf16.msra.mxu0 %v2278
    %3720 = vmatpush.bf16.msra.mxu0 %v2270
    %3721 = vmatpush.bf16.msra.mxu0 %v2262
    %3722 = vmatpush.bf16.msra.mxu0 %v2254
    %3723 = vmatpush.bf16.msra.mxu0 %v2246
    %3724 = vmatpush.bf16.msra.mxu0 %v2238
    %3725 = vmatpush.bf16.msra.mxu0 %v2230
    %3726 = vmatmul.bf16.gmra.mxu0 %v88
    %v3727 = vpop.f32.mrf.mxu0
    %v3728 = vadd.f32 %v3715, %v3727
    %v3729 = vpop.f32.mrf.mxu0
    %3730 = vdwg.mxu0
    %3731 = vmatpush.bf16.msra.mxu0 %v2350
    %3732 = vmatpush.bf16.msra.mxu0 %v2342
    %3733 = vmatpush.bf16.msra.mxu0 %v2334
    %3734 = vmatpush.bf16.msra.mxu0 %v2326
    %3735 = vmatpush.bf16.msra.mxu0 %v2318
    %3736 = vmatpush.bf16.msra.mxu0 %v2310
    %3737 = vmatpush.bf16.msra.mxu0 %v2302
    %3738 = vmatpush.bf16.msra.mxu0 %v2294
    %3739 = vmatmul.bf16.gmra.mxu0 %v89
    %v3740 = vpop.f32.mrf.mxu0
    %v3741 = vadd.f32 %v3728, %v3740
    %v3742 = vpop.f32.mrf.mxu0
    %3743 = vdwg.mxu0
    %3744 = vmatpush.bf16.msra.mxu0 %v2414
    %3745 = vmatpush.bf16.msra.mxu0 %v2406
    %3746 = vmatpush.bf16.msra.mxu0 %v2398
    %3747 = vmatpush.bf16.msra.mxu0 %v2390
    %3748 = vmatpush.bf16.msra.mxu0 %v2382
    %3749 = vmatpush.bf16.msra.mxu0 %v2374
    %3750 = vmatpush.bf16.msra.mxu0 %v2366
    %3751 = vmatpush.bf16.msra.mxu0 %v2358
    %3752 = vmatmul.bf16.gmra.mxu0 %v90
    %v3753 = vpop.f32.mrf.mxu0
    %v3754 = vadd.f32 %v3741, %v3753
    %v3755 = vpop.f32.mrf.mxu0
    %3756 = vdwg.mxu0
    %3757 = vmatpush.bf16.msra.mxu0 %v2478
    %3758 = vmatpush.bf16.msra.mxu0 %v2470
    %3759 = vmatpush.bf16.msra.mxu0 %v2462
    %3760 = vmatpush.bf16.msra.mxu0 %v2454
    %3761 = vmatpush.bf16.msra.mxu0 %v2446
    %3762 = vmatpush.bf16.msra.mxu0 %v2438
    %3763 = vmatpush.bf16.msra.mxu0 %v2430
    %3764 = vmatpush.bf16.msra.mxu0 %v2422
    %3765 = vmatmul.bf16.gmra.mxu0 %v91
    %v3766 = vpop.f32.mrf.mxu0
    %v3767 = vadd.f32 %v3754, %v3766
    %v3768 = vpop.f32.mrf.mxu0
    %3769 = vdwg.mxu0
    %3770 = vmatpush.bf16.msra.mxu0 %v2542
    %3771 = vmatpush.bf16.msra.mxu0 %v2534
    %3772 = vmatpush.bf16.msra.mxu0 %v2526
    %3773 = vmatpush.bf16.msra.mxu0 %v2518
    %3774 = vmatpush.bf16.msra.mxu0 %v2510
    %3775 = vmatpush.bf16.msra.mxu0 %v2502
    %3776 = vmatpush.bf16.msra.mxu0 %v2494
    %3777 = vmatpush.bf16.msra.mxu0 %v2486
    %3778 = vmatmul.bf16.gmra.mxu0 %v92
    %v3779 = vpop.f32.mrf.mxu0
    %v3780 = vadd.f32 %v3767, %v3779
    %v3781 = vpop.f32.mrf.mxu0
    %3782 = vdwg.mxu0
    %3783 = vmatpush.bf16.msra.mxu0 %v2606
    %3784 = vmatpush.bf16.msra.mxu0 %v2598
    %3785 = vmatpush.bf16.msra.mxu0 %v2590
    %3786 = vmatpush.bf16.msra.mxu0 %v2582
    %3787 = vmatpush.bf16.msra.mxu0 %v2574
    %3788 = vmatpush.bf16.msra.mxu0 %v2566
    %3789 = vmatpush.bf16.msra.mxu0 %v2558
    %3790 = vmatpush.bf16.msra.mxu0 %v2550
    %3791 = vmatmul.bf16.gmra.mxu0 %v93
    %v3792 = vpop.f32.mrf.mxu0
    %v3793 = vadd.f32 %v3780, %v3792
    %v3794 = vpop.f32.mrf.mxu0
    %3795 = vdwg.mxu0
    %3796 = vmatpush.bf16.msra.mxu0 %v2670
    %3797 = vmatpush.bf16.msra.mxu0 %v2662
    %3798 = vmatpush.bf16.msra.mxu0 %v2654
    %3799 = vmatpush.bf16.msra.mxu0 %v2646
    %3800 = vmatpush.bf16.msra.mxu0 %v2638
    %3801 = vmatpush.bf16.msra.mxu0 %v2630
    %3802 = vmatpush.bf16.msra.mxu0 %v2622
    %3803 = vmatpush.bf16.msra.mxu0 %v2614
    %3804 = vmatmul.bf16.gmra.mxu0 %v94
    %v3805 = vpop.f32.mrf.mxu0
    %v3806 = vadd.f32 %v3793, %v3805
    %v3807 = vpop.f32.mrf.mxu0
    %3808 = vdwg.mxu0
    %3809 = vmatpush.bf16.msra.mxu0 %v2223
    %3810 = vmatpush.bf16.msra.mxu0 %v2215
    %3811 = vmatpush.bf16.msra.mxu0 %v2207
    %3812 = vmatpush.bf16.msra.mxu0 %v2199
    %3813 = vmatpush.bf16.msra.mxu0 %v2191
    %3814 = vmatpush.bf16.msra.mxu0 %v2183
    %3815 = vmatpush.bf16.msra.mxu0 %v2175
    %3816 = vmatpush.bf16.msra.mxu0 %v2167
    %3817 = vmatmul.bf16.gmra.mxu0 %v87
    %v3818 = vpop.f32.mrf.mxu0
    %v3819 = vadd.f32 %v615, %v3818
    %v3820 = vpop.f32.mrf.mxu0
    %3821 = vdwg.mxu0
    %3822 = vmatpush.bf16.msra.mxu0 %v2287
    %3823 = vmatpush.bf16.msra.mxu0 %v2279
    %3824 = vmatpush.bf16.msra.mxu0 %v2271
    %3825 = vmatpush.bf16.msra.mxu0 %v2263
    %3826 = vmatpush.bf16.msra.mxu0 %v2255
    %3827 = vmatpush.bf16.msra.mxu0 %v2247
    %3828 = vmatpush.bf16.msra.mxu0 %v2239
    %3829 = vmatpush.bf16.msra.mxu0 %v2231
    %3830 = vmatmul.bf16.gmra.mxu0 %v88
    %v3831 = vpop.f32.mrf.mxu0
    %v3832 = vadd.f32 %v3819, %v3831
    %v3833 = vpop.f32.mrf.mxu0
    %3834 = vdwg.mxu0
    %3835 = vmatpush.bf16.msra.mxu0 %v2351
    %3836 = vmatpush.bf16.msra.mxu0 %v2343
    %3837 = vmatpush.bf16.msra.mxu0 %v2335
    %3838 = vmatpush.bf16.msra.mxu0 %v2327
    %3839 = vmatpush.bf16.msra.mxu0 %v2319
    %3840 = vmatpush.bf16.msra.mxu0 %v2311
    %3841 = vmatpush.bf16.msra.mxu0 %v2303
    %3842 = vmatpush.bf16.msra.mxu0 %v2295
    %3843 = vmatmul.bf16.gmra.mxu0 %v89
    %v3844 = vpop.f32.mrf.mxu0
    %v3845 = vadd.f32 %v3832, %v3844
    %v3846 = vpop.f32.mrf.mxu0
    %3847 = vdwg.mxu0
    %3848 = vmatpush.bf16.msra.mxu0 %v2415
    %3849 = vmatpush.bf16.msra.mxu0 %v2407
    %3850 = vmatpush.bf16.msra.mxu0 %v2399
    %3851 = vmatpush.bf16.msra.mxu0 %v2391
    %3852 = vmatpush.bf16.msra.mxu0 %v2383
    %3853 = vmatpush.bf16.msra.mxu0 %v2375
    %3854 = vmatpush.bf16.msra.mxu0 %v2367
    %3855 = vmatpush.bf16.msra.mxu0 %v2359
    %3856 = vmatmul.bf16.gmra.mxu0 %v90
    %v3857 = vpop.f32.mrf.mxu0
    %v3858 = vadd.f32 %v3845, %v3857
    %v3859 = vpop.f32.mrf.mxu0
    %3860 = vdwg.mxu0
    %3861 = vmatpush.bf16.msra.mxu0 %v2479
    %3862 = vmatpush.bf16.msra.mxu0 %v2471
    %3863 = vmatpush.bf16.msra.mxu0 %v2463
    %3864 = vmatpush.bf16.msra.mxu0 %v2455
    %3865 = vmatpush.bf16.msra.mxu0 %v2447
    %3866 = vmatpush.bf16.msra.mxu0 %v2439
    %3867 = vmatpush.bf16.msra.mxu0 %v2431
    %3868 = vmatpush.bf16.msra.mxu0 %v2423
    %3869 = vmatmul.bf16.gmra.mxu0 %v91
    %v3870 = vpop.f32.mrf.mxu0
    %v3871 = vadd.f32 %v3858, %v3870
    %v3872 = vpop.f32.mrf.mxu0
    %3873 = vdwg.mxu0
    %3874 = vmatpush.bf16.msra.mxu0 %v2543
    %3875 = vmatpush.bf16.msra.mxu0 %v2535
    %3876 = vmatpush.bf16.msra.mxu0 %v2527
    %3877 = vmatpush.bf16.msra.mxu0 %v2519
    %3878 = vmatpush.bf16.msra.mxu0 %v2511
    %3879 = vmatpush.bf16.msra.mxu0 %v2503
    %3880 = vmatpush.bf16.msra.mxu0 %v2495
    %3881 = vmatpush.bf16.msra.mxu0 %v2487
    %3882 = vmatmul.bf16.gmra.mxu0 %v92
    %v3883 = vpop.f32.mrf.mxu0
    %v3884 = vadd.f32 %v3871, %v3883
    %v3885 = vpop.f32.mrf.mxu0
    %3886 = vdwg.mxu0
    %3887 = vmatpush.bf16.msra.mxu0 %v2607
    %3888 = vmatpush.bf16.msra.mxu0 %v2599
    %3889 = vmatpush.bf16.msra.mxu0 %v2591
    %3890 = vmatpush.bf16.msra.mxu0 %v2583
    %3891 = vmatpush.bf16.msra.mxu0 %v2575
    %3892 = vmatpush.bf16.msra.mxu0 %v2567
    %3893 = vmatpush.bf16.msra.mxu0 %v2559
    %3894 = vmatpush.bf16.msra.mxu0 %v2551
    %3895 = vmatmul.bf16.gmra.mxu0 %v93
    %v3896 = vpop.f32.mrf.mxu0
    %v3897 = vadd.f32 %v3884, %v3896
    %v3898 = vpop.f32.mrf.mxu0
    %3899 = vdwg.mxu0
    %3900 = vmatpush.bf16.msra.mxu0 %v2671
    %3901 = vmatpush.bf16.msra.mxu0 %v2663
    %3902 = vmatpush.bf16.msra.mxu0 %v2655
    %3903 = vmatpush.bf16.msra.mxu0 %v2647
    %3904 = vmatpush.bf16.msra.mxu0 %v2639
    %3905 = vmatpush.bf16.msra.mxu0 %v2631
    %3906 = vmatpush.bf16.msra.mxu0 %v2623
    %3907 = vmatpush.bf16.msra.mxu0 %v2615
    %3908 = vmatmul.bf16.gmra.mxu0 %v94
    %v3909 = vpop.f32.mrf.mxu0
    %v3910 = vadd.f32 %v3897, %v3909
    %v3911 = vpop.f32.mrf.mxu0
    %3912 = vdwg.mxu0
    %3913 = vmatpush.bf16.msra.mxu0 %v2224
    %3914 = vmatpush.bf16.msra.mxu0 %v2216
    %3915 = vmatpush.bf16.msra.mxu0 %v2208
    %3916 = vmatpush.bf16.msra.mxu0 %v2200
    %3917 = vmatpush.bf16.msra.mxu0 %v2192
    %3918 = vmatpush.bf16.msra.mxu0 %v2184
    %3919 = vmatpush.bf16.msra.mxu0 %v2176
    %3920 = vmatpush.bf16.msra.mxu0 %v2168
    %3921 = vmatmul.bf16.gmra.mxu0 %v87
    %v3922 = vpop.f32.mrf.mxu0
    %v3923 = vadd.f32 %v616, %v3922
    %v3924 = vpop.f32.mrf.mxu0
    %3925 = vdwg.mxu0
    %3926 = vmatpush.bf16.msra.mxu0 %v2288
    %3927 = vmatpush.bf16.msra.mxu0 %v2280
    %3928 = vmatpush.bf16.msra.mxu0 %v2272
    %3929 = vmatpush.bf16.msra.mxu0 %v2264
    %3930 = vmatpush.bf16.msra.mxu0 %v2256
    %3931 = vmatpush.bf16.msra.mxu0 %v2248
    %3932 = vmatpush.bf16.msra.mxu0 %v2240
    %3933 = vmatpush.bf16.msra.mxu0 %v2232
    %3934 = vmatmul.bf16.gmra.mxu0 %v88
    %v3935 = vpop.f32.mrf.mxu0
    %v3936 = vadd.f32 %v3923, %v3935
    %v3937 = vpop.f32.mrf.mxu0
    %3938 = vdwg.mxu0
    %3939 = vmatpush.bf16.msra.mxu0 %v2352
    %3940 = vmatpush.bf16.msra.mxu0 %v2344
    %3941 = vmatpush.bf16.msra.mxu0 %v2336
    %3942 = vmatpush.bf16.msra.mxu0 %v2328
    %3943 = vmatpush.bf16.msra.mxu0 %v2320
    %3944 = vmatpush.bf16.msra.mxu0 %v2312
    %3945 = vmatpush.bf16.msra.mxu0 %v2304
    %3946 = vmatpush.bf16.msra.mxu0 %v2296
    %3947 = vmatmul.bf16.gmra.mxu0 %v89
    %v3948 = vpop.f32.mrf.mxu0
    %v3949 = vadd.f32 %v3936, %v3948
    %v3950 = vpop.f32.mrf.mxu0
    %3951 = vdwg.mxu0
    %3952 = vmatpush.bf16.msra.mxu0 %v2416
    %3953 = vmatpush.bf16.msra.mxu0 %v2408
    %3954 = vmatpush.bf16.msra.mxu0 %v2400
    %3955 = vmatpush.bf16.msra.mxu0 %v2392
    %3956 = vmatpush.bf16.msra.mxu0 %v2384
    %3957 = vmatpush.bf16.msra.mxu0 %v2376
    %3958 = vmatpush.bf16.msra.mxu0 %v2368
    %3959 = vmatpush.bf16.msra.mxu0 %v2360
    %3960 = vmatmul.bf16.gmra.mxu0 %v90
    %v3961 = vpop.f32.mrf.mxu0
    %v3962 = vadd.f32 %v3949, %v3961
    %v3963 = vpop.f32.mrf.mxu0
    %3964 = vdwg.mxu0
    %3965 = vmatpush.bf16.msra.mxu0 %v2480
    %3966 = vmatpush.bf16.msra.mxu0 %v2472
    %3967 = vmatpush.bf16.msra.mxu0 %v2464
    %3968 = vmatpush.bf16.msra.mxu0 %v2456
    %3969 = vmatpush.bf16.msra.mxu0 %v2448
    %3970 = vmatpush.bf16.msra.mxu0 %v2440
    %3971 = vmatpush.bf16.msra.mxu0 %v2432
    %3972 = vmatpush.bf16.msra.mxu0 %v2424
    %3973 = vmatmul.bf16.gmra.mxu0 %v91
    %v3974 = vpop.f32.mrf.mxu0
    %v3975 = vadd.f32 %v3962, %v3974
    %v3976 = vpop.f32.mrf.mxu0
    %3977 = vdwg.mxu0
    %3978 = vmatpush.bf16.msra.mxu0 %v2544
    %3979 = vmatpush.bf16.msra.mxu0 %v2536
    %3980 = vmatpush.bf16.msra.mxu0 %v2528
    %3981 = vmatpush.bf16.msra.mxu0 %v2520
    %3982 = vmatpush.bf16.msra.mxu0 %v2512
    %3983 = vmatpush.bf16.msra.mxu0 %v2504
    %3984 = vmatpush.bf16.msra.mxu0 %v2496
    %3985 = vmatpush.bf16.msra.mxu0 %v2488
    %3986 = vmatmul.bf16.gmra.mxu0 %v92
    %v3987 = vpop.f32.mrf.mxu0
    %v3988 = vadd.f32 %v3975, %v3987
    %v3989 = vpop.f32.mrf.mxu0
    %3990 = vdwg.mxu0
    %3991 = vmatpush.bf16.msra.mxu0 %v2608
    %3992 = vmatpush.bf16.msra.mxu0 %v2600
    %3993 = vmatpush.bf16.msra.mxu0 %v2592
    %3994 = vmatpush.bf16.msra.mxu0 %v2584
    %3995 = vmatpush.bf16.msra.mxu0 %v2576
    %3996 = vmatpush.bf16.msra.mxu0 %v2568
    %3997 = vmatpush.bf16.msra.mxu0 %v2560
    %3998 = vmatpush.bf16.msra.mxu0 %v2552
    %3999 = vmatmul.bf16.gmra.mxu0 %v93
    %v4000 = vpop.f32.mrf.mxu0
    %v4001 = vadd.f32 %v3988, %v4000
    %v4002 = vpop.f32.mrf.mxu0
    %4003 = vdwg.mxu0
    %4004 = vmatpush.bf16.msra.mxu0 %v2672
    %4005 = vmatpush.bf16.msra.mxu0 %v2664
    %4006 = vmatpush.bf16.msra.mxu0 %v2656
    %4007 = vmatpush.bf16.msra.mxu0 %v2648
    %4008 = vmatpush.bf16.msra.mxu0 %v2640
    %4009 = vmatpush.bf16.msra.mxu0 %v2632
    %4010 = vmatpush.bf16.msra.mxu0 %v2624
    %4011 = vmatpush.bf16.msra.mxu0 %v2616
    %4012 = vmatmul.bf16.gmra.mxu0 %v94
    %v4013 = vpop.f32.mrf.mxu0
    %v4014 = vadd.f32 %v4001, %v4013
    %v4015 = vpop.f32.mrf.mxu0
    %4016 = vdwg.mxu0
    %v4017 = vmax.f32 %v3286, 0.0
    %v4018 = vmax.f32 %v3390, 0.0
    %v4019 = vmax.f32 %v3494, 0.0
    %v4020 = vmax.f32 %v3598, 0.0
    %v4021 = vmax.f32 %v3702, 0.0
    %v4022 = vmax.f32 %v3806, 0.0
    %v4023 = vmax.f32 %v3910, 0.0
    %v4024 = vmax.f32 %v4014, 0.0
    %v4025 = vpack.c.bf16 %v4017, %v4017
    %v4026 = vpack.c.bf16 %v4018, %v4018
    %v4027 = vpack.c.bf16 %v4019, %v4019
    %v4028 = vpack.c.bf16 %v4020, %v4020
    %v4029 = vpack.c.bf16 %v4021, %v4021
    %v4030 = vpack.c.bf16 %v4022, %v4022
    %v4031 = vpack.c.bf16 %v4023, %v4023
    %v4032 = vpack.c.bf16 %v4024, %v4024
    %v4033 = vld [vmem:[#allocation6] sm:$0xf]
    %v4034 = vld [vmem:[#allocation6 + $0x4] sm:$0xf]
    %v4035 = vld [vmem:[#allocation6 + $0x8] sm:$0xf]
    %v4036 = vld [vmem:[#allocation6 + $0xc] sm:$0xf]
    %v4037 = vld [vmem:[#allocation6 + $0x10] sm:$0xf]
    %v4038 = vld [vmem:[#allocation6 + $0x14] sm:$0xf]
    %v4039 = vld [vmem:[#allocation6 + $0x18] sm:$0xf]
    %v4040 = vld [vmem:[#allocation6 + $0x1c] sm:$0xf]
    %v4041 = vld [vmem:[#allocation6 + $0x20] sm:$0xf]
    %v4042 = vld [vmem:[#allocation6 + $0x24] sm:$0xf]
    %v4043 = vld [vmem:[#allocation6 + $0x28] sm:$0xf]
    %v4044 = vld [vmem:[#allocation6 + $0x2c] sm:$0xf]
    %v4045 = vld [vmem:[#allocation6 + $0x30] sm:$0xf]
    %v4046 = vld [vmem:[#allocation6 + $0x34] sm:$0xf]
    %v4047 = vld [vmem:[#allocation6 + $0x38] sm:$0xf]
    %v4048 = vld [vmem:[#allocation6 + $0x3c] sm:$0xf]
    %v4049 = vld [vmem:[#allocation6 + $0x40] sm:$0xf]
    %v4050 = vld [vmem:[#allocation6 + $0x44] sm:$0xf]
    %v4051 = vld [vmem:[#allocation6 + $0x48] sm:$0xf]
    %v4052 = vld [vmem:[#allocation6 + $0x4c] sm:$0xf]
    %v4053 = vld [vmem:[#allocation6 + $0x50] sm:$0xf]
    %v4054 = vld [vmem:[#allocation6 + $0x54] sm:$0xf]
    %v4055 = vld [vmem:[#allocation6 + $0x58] sm:$0xf]
    %v4056 = vld [vmem:[#allocation6 + $0x5c] sm:$0xf]
    %v4057 = vld [vmem:[#allocation6 + $0x60] sm:$0xf]
    %v4058 = vld [vmem:[#allocation6 + $0x64] sm:$0xf]
    %v4059 = vld [vmem:[#allocation6 + $0x68] sm:$0xf]
    %v4060 = vld [vmem:[#allocation6 + $0x6c] sm:$0xf]
    %v4061 = vld [vmem:[#allocation6 + $0x70] sm:$0xf]
    %v4062 = vld [vmem:[#allocation6 + $0x74] sm:$0xf]
    %v4063 = vld [vmem:[#allocation6 + $0x78] sm:$0xf]
    %v4064 = vld [vmem:[#allocation6 + $0x7c] sm:$0xf]
    %v4065 = vld [vmem:[#allocation6 + $0x80] sm:$0xf]
    %v4066 = vld [vmem:[#allocation6 + $0x84] sm:$0xf]
    %v4067 = vld [vmem:[#allocation6 + $0x88] sm:$0xf]
    %v4068 = vld [vmem:[#allocation6 + $0x8c] sm:$0xf]
    %v4069 = vld [vmem:[#allocation6 + $0x90] sm:$0xf]
    %v4070 = vld [vmem:[#allocation6 + $0x94] sm:$0xf]
    %v4071 = vld [vmem:[#allocation6 + $0x98] sm:$0xf]
    %v4072 = vld [vmem:[#allocation6 + $0x9c] sm:$0xf]
    %v4073 = vld [vmem:[#allocation6 + $0xa0] sm:$0xf]
    %v4074 = vld [vmem:[#allocation6 + $0xa4] sm:$0xf]
    %v4075 = vld [vmem:[#allocation6 + $0xa8] sm:$0xf]
    %v4076 = vld [vmem:[#allocation6 + $0xac] sm:$0xf]
    %v4077 = vld [vmem:[#allocation6 + $0xb0] sm:$0xf]
    %v4078 = vld [vmem:[#allocation6 + $0xb4] sm:$0xf]
    %v4079 = vld [vmem:[#allocation6 + $0xb8] sm:$0xf]
    %v4080 = vld [vmem:[#allocation6 + $0xbc] sm:$0xf]
    %v4081 = vld [vmem:[#allocation6 + $0xc0] sm:$0xf]
    %v4082 = vld [vmem:[#allocation6 + $0xc4] sm:$0xf]
    %v4083 = vld [vmem:[#allocation6 + $0xc8] sm:$0xf]
    %v4084 = vld [vmem:[#allocation6 + $0xcc] sm:$0xf]
    %v4085 = vld [vmem:[#allocation6 + $0xd0] sm:$0xf]
    %v4086 = vld [vmem:[#allocation6 + $0xd4] sm:$0xf]
    %v4087 = vld [vmem:[#allocation6 + $0xd8] sm:$0xf]
    %v4088 = vld [vmem:[#allocation6 + $0xdc] sm:$0xf]
    %v4089 = vld [vmem:[#allocation6 + $0xe0] sm:$0xf]
    %v4090 = vld [vmem:[#allocation6 + $0xe4] sm:$0xf]
    %v4091 = vld [vmem:[#allocation6 + $0xe8] sm:$0xf]
    %v4092 = vld [vmem:[#allocation6 + $0xec] sm:$0xf]
    %v4093 = vld [vmem:[#allocation6 + $0xf0] sm:$0xf]
    %v4094 = vld [vmem:[#allocation6 + $0xf4] sm:$0xf]
    %v4095 = vld [vmem:[#allocation6 + $0xf8] sm:$0xf]
    %v4096 = vld [vmem:[#allocation6 + $0xfc] sm:$0xf]
    %v4097 = vld [vmem:[#allocation6 + $0x100] sm:$0xf]
    %v4098 = vld [vmem:[#allocation6 + $0x104] sm:$0xf]
    %v4099 = vld [vmem:[#allocation6 + $0x108] sm:$0xf]
    %v4100 = vld [vmem:[#allocation6 + $0x10c] sm:$0xf]
    %v4101 = vld [vmem:[#allocation6 + $0x110] sm:$0xf]
    %v4102 = vld [vmem:[#allocation6 + $0x114] sm:$0xf]
    %v4103 = vld [vmem:[#allocation6 + $0x118] sm:$0xf]
    %v4104 = vld [vmem:[#allocation6 + $0x11c] sm:$0xf]
    %v4105 = vld [vmem:[#allocation6 + $0x120] sm:$0xf]
    %v4106 = vld [vmem:[#allocation6 + $0x124] sm:$0xf]
    %v4107 = vld [vmem:[#allocation6 + $0x128] sm:$0xf]
    %v4108 = vld [vmem:[#allocation6 + $0x12c] sm:$0xf]
    %v4109 = vld [vmem:[#allocation6 + $0x130] sm:$0xf]
    %v4110 = vld [vmem:[#allocation6 + $0x134] sm:$0xf]
    %v4111 = vld [vmem:[#allocation6 + $0x138] sm:$0xf]
    %v4112 = vld [vmem:[#allocation6 + $0x13c] sm:$0xf]
    %v4113 = vld [vmem:[#allocation6 + $0x140] sm:$0xf]
    %v4114 = vld [vmem:[#allocation6 + $0x144] sm:$0xf]
    %v4115 = vld [vmem:[#allocation6 + $0x148] sm:$0xf]
    %v4116 = vld [vmem:[#allocation6 + $0x14c] sm:$0xf]
    %v4117 = vld [vmem:[#allocation6 + $0x150] sm:$0xf]
    %v4118 = vld [vmem:[#allocation6 + $0x154] sm:$0xf]
    %v4119 = vld [vmem:[#allocation6 + $0x158] sm:$0xf]
    %v4120 = vld [vmem:[#allocation6 + $0x15c] sm:$0xf]
    %v4121 = vld [vmem:[#allocation6 + $0x160] sm:$0xf]
    %v4122 = vld [vmem:[#allocation6 + $0x164] sm:$0xf]
    %v4123 = vld [vmem:[#allocation6 + $0x168] sm:$0xf]
    %v4124 = vld [vmem:[#allocation6 + $0x16c] sm:$0xf]
    %v4125 = vld [vmem:[#allocation6 + $0x170] sm:$0xf]
    %v4126 = vld [vmem:[#allocation6 + $0x174] sm:$0xf]
    %v4127 = vld [vmem:[#allocation6 + $0x178] sm:$0xf]
    %v4128 = vld [vmem:[#allocation6 + $0x17c] sm:$0xf]
    %v4129 = vld [vmem:[#allocation6 + $0x180] sm:$0xf]
    %v4130 = vld [vmem:[#allocation6 + $0x184] sm:$0xf]
    %v4131 = vld [vmem:[#allocation6 + $0x188] sm:$0xf]
    %v4132 = vld [vmem:[#allocation6 + $0x18c] sm:$0xf]
    %v4133 = vld [vmem:[#allocation6 + $0x190] sm:$0xf]
    %v4134 = vld [vmem:[#allocation6 + $0x194] sm:$0xf]
    %v4135 = vld [vmem:[#allocation6 + $0x198] sm:$0xf]
    %v4136 = vld [vmem:[#allocation6 + $0x19c] sm:$0xf]
    %v4137 = vld [vmem:[#allocation6 + $0x1a0] sm:$0xf]
    %v4138 = vld [vmem:[#allocation6 + $0x1a4] sm:$0xf]
    %v4139 = vld [vmem:[#allocation6 + $0x1a8] sm:$0xf]
    %v4140 = vld [vmem:[#allocation6 + $0x1ac] sm:$0xf]
    %v4141 = vld [vmem:[#allocation6 + $0x1b0] sm:$0xf]
    %v4142 = vld [vmem:[#allocation6 + $0x1b4] sm:$0xf]
    %v4143 = vld [vmem:[#allocation6 + $0x1b8] sm:$0xf]
    %v4144 = vld [vmem:[#allocation6 + $0x1bc] sm:$0xf]
    %v4145 = vld [vmem:[#allocation6 + $0x1c0] sm:$0xf]
    %v4146 = vld [vmem:[#allocation6 + $0x1c4] sm:$0xf]
    %v4147 = vld [vmem:[#allocation6 + $0x1c8] sm:$0xf]
    %v4148 = vld [vmem:[#allocation6 + $0x1cc] sm:$0xf]
    %v4149 = vld [vmem:[#allocation6 + $0x1d0] sm:$0xf]
    %v4150 = vld [vmem:[#allocation6 + $0x1d4] sm:$0xf]
    %v4151 = vld [vmem:[#allocation6 + $0x1d8] sm:$0xf]
    %v4152 = vld [vmem:[#allocation6 + $0x1dc] sm:$0xf]
    %v4153 = vld [vmem:[#allocation6 + $0x1e0] sm:$0xf]
    %v4154 = vld [vmem:[#allocation6 + $0x1e4] sm:$0xf]
    %v4155 = vld [vmem:[#allocation6 + $0x1e8] sm:$0xf]
    %v4156 = vld [vmem:[#allocation6 + $0x1ec] sm:$0xf]
    %v4157 = vld [vmem:[#allocation6 + $0x1f0] sm:$0xf]
    %v4158 = vld [vmem:[#allocation6 + $0x1f4] sm:$0xf]
    %v4159 = vld [vmem:[#allocation6 + $0x1f8] sm:$0xf]
    %v4160 = vld [vmem:[#allocation6 + $0x1fc] sm:$0xf]
    %v4161 = vld [vmem:[#allocation7] sm:$0x1]
    %v4163 = vperm.slane %v4161, 0
    %v4293 = vunpack.c.l.b16 %v4033
    %v4294 = vunpack.c.l.b16 %v4034
    %v4295 = vunpack.c.l.b16 %v4035
    %v4296 = vunpack.c.l.b16 %v4036
    %v4297 = vunpack.c.l.b16 %v4037
    %v4298 = vunpack.c.l.b16 %v4038
    %v4299 = vunpack.c.l.b16 %v4039
    %v4300 = vunpack.c.l.b16 %v4040
    %v4301 = vunpack.c.l.b16 %v4041
    %v4302 = vunpack.c.l.b16 %v4042
    %v4303 = vunpack.c.l.b16 %v4043
    %v4304 = vunpack.c.l.b16 %v4044
    %v4305 = vunpack.c.l.b16 %v4045
    %v4306 = vunpack.c.l.b16 %v4046
    %v4307 = vunpack.c.l.b16 %v4047
    %v4308 = vunpack.c.l.b16 %v4048
    %v4309 = vunpack.c.l.b16 %v4049
    %v4310 = vunpack.c.l.b16 %v4050
    %v4311 = vunpack.c.l.b16 %v4051
    %v4312 = vunpack.c.l.b16 %v4052
    %v4313 = vunpack.c.l.b16 %v4053
    %v4314 = vunpack.c.l.b16 %v4054
    %v4315 = vunpack.c.l.b16 %v4055
    %v4316 = vunpack.c.l.b16 %v4056
    %v4317 = vunpack.c.l.b16 %v4057
    %v4318 = vunpack.c.l.b16 %v4058
    %v4319 = vunpack.c.l.b16 %v4059
    %v4320 = vunpack.c.l.b16 %v4060
    %v4321 = vunpack.c.l.b16 %v4061
    %v4322 = vunpack.c.l.b16 %v4062
    %v4323 = vunpack.c.l.b16 %v4063
    %v4324 = vunpack.c.l.b16 %v4064
    %v4325 = vunpack.c.l.b16 %v4065
    %v4326 = vunpack.c.l.b16 %v4066
    %v4327 = vunpack.c.l.b16 %v4067
    %v4328 = vunpack.c.l.b16 %v4068
    %v4329 = vunpack.c.l.b16 %v4069
    %v4330 = vunpack.c.l.b16 %v4070
    %v4331 = vunpack.c.l.b16 %v4071
    %v4332 = vunpack.c.l.b16 %v4072
    %v4333 = vunpack.c.l.b16 %v4073
    %v4334 = vunpack.c.l.b16 %v4074
    %v4335 = vunpack.c.l.b16 %v4075
    %v4336 = vunpack.c.l.b16 %v4076
    %v4337 = vunpack.c.l.b16 %v4077
    %v4338 = vunpack.c.l.b16 %v4078
    %v4339 = vunpack.c.l.b16 %v4079
    %v4340 = vunpack.c.l.b16 %v4080
    %v4341 = vunpack.c.l.b16 %v4081
    %v4342 = vunpack.c.l.b16 %v4082
    %v4343 = vunpack.c.l.b16 %v4083
    %v4344 = vunpack.c.l.b16 %v4084
    %v4345 = vunpack.c.l.b16 %v4085
    %v4346 = vunpack.c.l.b16 %v4086
    %v4347 = vunpack.c.l.b16 %v4087
    %v4348 = vunpack.c.l.b16 %v4088
    %v4349 = vunpack.c.l.b16 %v4089
    %v4350 = vunpack.c.l.b16 %v4090
    %v4351 = vunpack.c.l.b16 %v4091
    %v4352 = vunpack.c.l.b16 %v4092
    %v4353 = vunpack.c.l.b16 %v4093
    %v4354 = vunpack.c.l.b16 %v4094
    %v4355 = vunpack.c.l.b16 %v4095
    %v4356 = vunpack.c.l.b16 %v4096
    %v4357 = vunpack.c.l.b16 %v4097
    %v4358 = vunpack.c.l.b16 %v4098
    %v4359 = vunpack.c.l.b16 %v4099
    %v4360 = vunpack.c.l.b16 %v4100
    %v4361 = vunpack.c.l.b16 %v4101
    %v4362 = vunpack.c.l.b16 %v4102
    %v4363 = vunpack.c.l.b16 %v4103
    %v4364 = vunpack.c.l.b16 %v4104
    %v4365 = vunpack.c.l.b16 %v4105
    %v4366 = vunpack.c.l.b16 %v4106
    %v4367 = vunpack.c.l.b16 %v4107
    %v4368 = vunpack.c.l.b16 %v4108
    %v4369 = vunpack.c.l.b16 %v4109
    %v4370 = vunpack.c.l.b16 %v4110
    %v4371 = vunpack.c.l.b16 %v4111
    %v4372 = vunpack.c.l.b16 %v4112
    %v4373 = vunpack.c.l.b16 %v4113
    %v4374 = vunpack.c.l.b16 %v4114
    %v4375 = vunpack.c.l.b16 %v4115
    %v4376 = vunpack.c.l.b16 %v4116
    %v4377 = vunpack.c.l.b16 %v4117
    %v4378 = vunpack.c.l.b16 %v4118
    %v4379 = vunpack.c.l.b16 %v4119
    %v4380 = vunpack.c.l.b16 %v4120
    %v4381 = vunpack.c.l.b16 %v4121
    %v4382 = vunpack.c.l.b16 %v4122
    %v4383 = vunpack.c.l.b16 %v4123
    %v4384 = vunpack.c.l.b16 %v4124
    %v4385 = vunpack.c.l.b16 %v4125
    %v4386 = vunpack.c.l.b16 %v4126
    %v4387 = vunpack.c.l.b16 %v4127
    %v4388 = vunpack.c.l.b16 %v4128
    %v4389 = vunpack.c.l.b16 %v4129
    %v4390 = vunpack.c.l.b16 %v4130
    %v4391 = vunpack.c.l.b16 %v4131
    %v4392 = vunpack.c.l.b16 %v4132
    %v4393 = vunpack.c.l.b16 %v4133
    %v4394 = vunpack.c.l.b16 %v4134
    %v4395 = vunpack.c.l.b16 %v4135
    %v4396 = vunpack.c.l.b16 %v4136
    %v4397 = vunpack.c.l.b16 %v4137
    %v4398 = vunpack.c.l.b16 %v4138
    %v4399 = vunpack.c.l.b16 %v4139
    %v4400 = vunpack.c.l.b16 %v4140
    %v4401 = vunpack.c.l.b16 %v4141
    %v4402 = vunpack.c.l.b16 %v4142
    %v4403 = vunpack.c.l.b16 %v4143
    %v4404 = vunpack.c.l.b16 %v4144
    %v4405 = vunpack.c.l.b16 %v4145
    %v4406 = vunpack.c.l.b16 %v4146
    %v4407 = vunpack.c.l.b16 %v4147
    %v4408 = vunpack.c.l.b16 %v4148
    %v4409 = vunpack.c.l.b16 %v4149
    %v4410 = vunpack.c.l.b16 %v4150
    %v4411 = vunpack.c.l.b16 %v4151
    %v4412 = vunpack.c.l.b16 %v4152
    %v4413 = vunpack.c.l.b16 %v4153
    %v4414 = vunpack.c.l.b16 %v4154
    %v4415 = vunpack.c.l.b16 %v4155
    %v4416 = vunpack.c.l.b16 %v4156
    %v4417 = vunpack.c.l.b16 %v4157
    %v4418 = vunpack.c.l.b16 %v4158
    %v4419 = vunpack.c.l.b16 %v4159
    %v4420 = vunpack.c.l.b16 %v4160
    %v4421 = vpack.c.b16 %v4294, %v4293
    %v4422 = vpack.c.b16 %v4296, %v4295
    %v4423 = vpack.c.b16 %v4298, %v4297
    %v4424 = vpack.c.b16 %v4300, %v4299
    %v4425 = vpack.c.b16 %v4302, %v4301
    %v4426 = vpack.c.b16 %v4304, %v4303
    %v4427 = vpack.c.b16 %v4306, %v4305
    %v4428 = vpack.c.b16 %v4308, %v4307
    %v4429 = vpack.c.b16 %v4310, %v4309
    %v4430 = vpack.c.b16 %v4312, %v4311
    %v4431 = vpack.c.b16 %v4314, %v4313
    %v4432 = vpack.c.b16 %v4316, %v4315
    %v4433 = vpack.c.b16 %v4318, %v4317
    %v4434 = vpack.c.b16 %v4320, %v4319
    %v4435 = vpack.c.b16 %v4322, %v4321
    %v4436 = vpack.c.b16 %v4324, %v4323
    %v4437 = vpack.c.b16 %v4326, %v4325
    %v4438 = vpack.c.b16 %v4328, %v4327
    %v4439 = vpack.c.b16 %v4330, %v4329
    %v4440 = vpack.c.b16 %v4332, %v4331
    %v4441 = vpack.c.b16 %v4334, %v4333
    %v4442 = vpack.c.b16 %v4336, %v4335
    %v4443 = vpack.c.b16 %v4338, %v4337
    %v4444 = vpack.c.b16 %v4340, %v4339
    %v4445 = vpack.c.b16 %v4342, %v4341
    %v4446 = vpack.c.b16 %v4344, %v4343
    %v4447 = vpack.c.b16 %v4346, %v4345
    %v4448 = vpack.c.b16 %v4348, %v4347
    %v4449 = vpack.c.b16 %v4350, %v4349
    %v4450 = vpack.c.b16 %v4352, %v4351
    %v4451 = vpack.c.b16 %v4354, %v4353
    %v4452 = vpack.c.b16 %v4356, %v4355
    %v4453 = vpack.c.b16 %v4358, %v4357
    %v4454 = vpack.c.b16 %v4360, %v4359
    %v4455 = vpack.c.b16 %v4362, %v4361
    %v4456 = vpack.c.b16 %v4364, %v4363
    %v4457 = vpack.c.b16 %v4366, %v4365
    %v4458 = vpack.c.b16 %v4368, %v4367
    %v4459 = vpack.c.b16 %v4370, %v4369
    %v4460 = vpack.c.b16 %v4372, %v4371
    %v4461 = vpack.c.b16 %v4374, %v4373
    %v4462 = vpack.c.b16 %v4376, %v4375
    %v4463 = vpack.c.b16 %v4378, %v4377
    %v4464 = vpack.c.b16 %v4380, %v4379
    %v4465 = vpack.c.b16 %v4382, %v4381
    %v4466 = vpack.c.b16 %v4384, %v4383
    %v4467 = vpack.c.b16 %v4386, %v4385
    %v4468 = vpack.c.b16 %v4388, %v4387
    %v4469 = vpack.c.b16 %v4390, %v4389
    %v4470 = vpack.c.b16 %v4392, %v4391
    %v4471 = vpack.c.b16 %v4394, %v4393
    %v4472 = vpack.c.b16 %v4396, %v4395
    %v4473 = vpack.c.b16 %v4398, %v4397
    %v4474 = vpack.c.b16 %v4400, %v4399
    %v4475 = vpack.c.b16 %v4402, %v4401
    %v4476 = vpack.c.b16 %v4404, %v4403
    %v4477 = vpack.c.b16 %v4406, %v4405
    %v4478 = vpack.c.b16 %v4408, %v4407
    %v4479 = vpack.c.b16 %v4410, %v4409
    %v4480 = vpack.c.b16 %v4412, %v4411
    %v4481 = vpack.c.b16 %v4414, %v4413
    %v4482 = vpack.c.b16 %v4416, %v4415
    %v4483 = vpack.c.b16 %v4418, %v4417
    %v4484 = vpack.c.b16 %v4420, %v4419
    %4549 = vmatpush.bf16.msra.mxu0 %v4428
    %4550 = vmatpush.bf16.msra.mxu0 %v4427
    %4551 = vmatpush.bf16.msra.mxu0 %v4426
    %4552 = vmatpush.bf16.msra.mxu0 %v4425
    %4553 = vmatpush.bf16.msra.mxu0 %v4424
    %4554 = vmatpush.bf16.msra.mxu0 %v4423
    %4555 = vmatpush.bf16.msra.mxu0 %v4422
    %4556 = vmatpush.bf16.msra.mxu0 %v4421
    %4557 = vmatmul.bf16.gmra.mxu0 %v4025
    %v4558 = vpop.f32.mrf.mxu0
    %v4559 = vadd.f32 %v4163, %v4558
    %v4560 = vpop.f32.mrf.mxu0
    %4561 = vdwg.mxu0
    %4562 = vmatpush.bf16.msra.mxu0 %v4436
    %4563 = vmatpush.bf16.msra.mxu0 %v4435
    %4564 = vmatpush.bf16.msra.mxu0 %v4434
    %4565 = vmatpush.bf16.msra.mxu0 %v4433
    %4566 = vmatpush.bf16.msra.mxu0 %v4432
    %4567 = vmatpush.bf16.msra.mxu0 %v4431
    %4568 = vmatpush.bf16.msra.mxu0 %v4430
    %4569 = vmatpush.bf16.msra.mxu0 %v4429
    %4570 = vmatmul.bf16.gmra.mxu0 %v4026
    %v4571 = vpop.f32.mrf.mxu0
    %v4572 = vadd.f32 %v4559, %v4571
    %v4573 = vpop.f32.mrf.mxu0
    %4574 = vdwg.mxu0
    %4575 = vmatpush.bf16.msra.mxu0 %v4444
    %4576 = vmatpush.bf16.msra.mxu0 %v4443
    %4577 = vmatpush.bf16.msra.mxu0 %v4442
    %4578 = vmatpush.bf16.msra.mxu0 %v4441
    %4579 = vmatpush.bf16.msra.mxu0 %v4440
    %4580 = vmatpush.bf16.msra.mxu0 %v4439
    %4581 = vmatpush.bf16.msra.mxu0 %v4438
    %4582 = vmatpush.bf16.msra.mxu0 %v4437
    %4583 = vmatmul.bf16.gmra.mxu0 %v4027
    %v4584 = vpop.f32.mrf.mxu0
    %v4585 = vadd.f32 %v4572, %v4584
    %v4586 = vpop.f32.mrf.mxu0
    %4587 = vdwg.mxu0
    %4588 = vmatpush.bf16.msra.mxu0 %v4452
    %4589 = vmatpush.bf16.msra.mxu0 %v4451
    %4590 = vmatpush.bf16.msra.mxu0 %v4450
    %4591 = vmatpush.bf16.msra.mxu0 %v4449
    %4592 = vmatpush.bf16.msra.mxu0 %v4448
    %4593 = vmatpush.bf16.msra.mxu0 %v4447
    %4594 = vmatpush.bf16.msra.mxu0 %v4446
    %4595 = vmatpush.bf16.msra.mxu0 %v4445
    %4596 = vmatmul.bf16.gmra.mxu0 %v4028
    %v4597 = vpop.f32.mrf.mxu0
    %v4598 = vadd.f32 %v4585, %v4597
    %v4599 = vpop.f32.mrf.mxu0
    %4600 = vdwg.mxu0
    %4601 = vmatpush.bf16.msra.mxu0 %v4460
    %4602 = vmatpush.bf16.msra.mxu0 %v4459
    %4603 = vmatpush.bf16.msra.mxu0 %v4458
    %4604 = vmatpush.bf16.msra.mxu0 %v4457
    %4605 = vmatpush.bf16.msra.mxu0 %v4456
    %4606 = vmatpush.bf16.msra.mxu0 %v4455
    %4607 = vmatpush.bf16.msra.mxu0 %v4454
    %4608 = vmatpush.bf16.msra.mxu0 %v4453
    %4609 = vmatmul.bf16.gmra.mxu0 %v4029
    %v4610 = vpop.f32.mrf.mxu0
    %v4611 = vadd.f32 %v4598, %v4610
    %v4612 = vpop.f32.mrf.mxu0
    %4613 = vdwg.mxu0
    %4614 = vmatpush.bf16.msra.mxu0 %v4468
    %4615 = vmatpush.bf16.msra.mxu0 %v4467
    %4616 = vmatpush.bf16.msra.mxu0 %v4466
    %4617 = vmatpush.bf16.msra.mxu0 %v4465
    %4618 = vmatpush.bf16.msra.mxu0 %v4464
    %4619 = vmatpush.bf16.msra.mxu0 %v4463
    %4620 = vmatpush.bf16.msra.mxu0 %v4462
    %4621 = vmatpush.bf16.msra.mxu0 %v4461
    %4622 = vmatmul.bf16.gmra.mxu0 %v4030
    %v4623 = vpop.f32.mrf.mxu0
    %v4624 = vadd.f32 %v4611, %v4623
    %v4625 = vpop.f32.mrf.mxu0
    %4626 = vdwg.mxu0
    %4627 = vmatpush.bf16.msra.mxu0 %v4476
    %4628 = vmatpush.bf16.msra.mxu0 %v4475
    %4629 = vmatpush.bf16.msra.mxu0 %v4474
    %4630 = vmatpush.bf16.msra.mxu0 %v4473
    %4631 = vmatpush.bf16.msra.mxu0 %v4472
    %4632 = vmatpush.bf16.msra.mxu0 %v4471
    %4633 = vmatpush.bf16.msra.mxu0 %v4470
    %4634 = vmatpush.bf16.msra.mxu0 %v4469
    %4635 = vmatmul.bf16.gmra.mxu0 %v4031
    %v4636 = vpop.f32.mrf.mxu0
    %v4637 = vadd.f32 %v4624, %v4636
    %v4638 = vpop.f32.mrf.mxu0
    %4639 = vdwg.mxu0
    %4640 = vmatpush.bf16.msra.mxu0 %v4484
    %4641 = vmatpush.bf16.msra.mxu0 %v4483
    %4642 = vmatpush.bf16.msra.mxu0 %v4482
    %4643 = vmatpush.bf16.msra.mxu0 %v4481
    %4644 = vmatpush.bf16.msra.mxu0 %v4480
    %4645 = vmatpush.bf16.msra.mxu0 %v4479
    %4646 = vmatpush.bf16.msra.mxu0 %v4478
    %4647 = vmatpush.bf16.msra.mxu0 %v4477
    %4648 = vmatmul.bf16.gmra.mxu0 %v4032
    %v4649 = vpop.f32.mrf.mxu0
    %v4650 = vadd.f32 %v4637, %v4649
    %v4651 = vpop.f32.mrf.mxu0
    %4652 = vdwg.mxu0
    %4653 = vst [vmem:[%s5] sm:$0xff] %v4650
    // Predicated region
    $region38: #{_ds_forward_padded.1} parent=1 // pred_check
      _
    $region39: #{_ds_forward_padded.1} parent=1 // pred_check_branch
      %4655 = sbr.rel (0) target = $region41
    $region40: #{_ds_forward_padded.1} parent=1 // pred_region
      _
    $region41: #{_ds_forward_padded.1} parent=1 // pred_fallthru
      _
    // Predicated region
    $region42: #{_ds_forward_padded.1} parent=1 // pred_check
      _
    $region43: #{_ds_forward_padded.1} parent=1 // pred_check_branch
      %4657 = sbr.rel (0) target = $region45
    $region44: #{_ds_forward_padded.1} parent=1 // pred_region
      _
    $region45: #{_ds_forward_padded.1} parent=1 // pred_fallthru
      _
    %4658 = vsyncpa [#allocation3], 1
    %4659 = vsyncpa [#allocation5], 1
    %4660 = vsyncpa [#allocation8], 1

</llo_original>
